<compile_context>
chip_gen: v7x
topology: tpu7x:2x2x1
jax: 0.10.0
libtpu: 0.0.40
codegen_flags: <defaults>
</compile_context>

<pallas_src>
import numpy as np
import jax
import jax.numpy as jnp
from jax.experimental import pallas as pl
from jax.experimental.pallas import tpu as pltpu

POS_ENC_DIM = 128  # hard-coded `128` inside CriticNetwork._emdedding


def position_encoding_init(n_position, emb_dim):
    """Sinusoid position encoding table (exact port of the torch helper)."""
    pe = np.array(
        [
            [pos / np.power(10000, 2 * (j // 2) / emb_dim) for j in range(emb_dim)]
            if pos != 0
            else np.zeros(emb_dim)
            for pos in range(n_position)
        ]
    )
    pe[1:, 0::2] = np.sin(pe[1:, 0::2])
    pe[1:, 1::2] = np.cos(pe[1:, 1::2])
    return jnp.asarray(pe, dtype=jnp.float32)


def _norm(h, gamma, beta, eps=1e-5):
    # per-sample, per-feature normalization over the node axis (f32 on the VPU path)
    mu = jnp.mean(h, axis=1, keepdims=True)
    var = jnp.mean(jnp.square(h - mu), axis=1, keepdims=True)
    return (h - mu) * jax.lax.rsqrt(var + eps) * gamma + beta


def critic_kernel(
    x_ref,      # (tb, gs, din)  f32 coordinates
    pe_ref,     # (tb, gs, D)    f32 positional encoding
    sp_ref,     # (R, D)         f32 packed small params (w_embed, biases, norm affine, value head)
    bff1_ref,   # (L, F)         f32 FFN hidden bias
    wqkv_ref,   # (L, D, 3D)     bf16 fused q/k/v weights (q pre-scaled by 1/sqrt(D))
    wo_ref,     # (L, D, D)      bf16
    wf1_ref,    # (L, D, F)      bf16
    wf2_ref,    # (L, F, D)      bf16
    wgn_ref,    # (D, D)         bf16 (w_graph + w_node)
    wv1_ref,    # (D, D)         bf16 (value-head layer 1, lane-padded from hidden_dim)
    out_ref,    # (tb, 1, D)     f32 value broadcast across lanes
):
    tb, gs, din = x_ref.shape
    d = pe_ref.shape[-1]
    n_layers = wqkv_ref.shape[0]
    m = tb * gs
    bf16 = jnp.bfloat16
    f32 = jnp.float32

    x = x_ref[...]

    # init_embed + pos_enc via VPU FMAs (K=din is far too small for MXU occupancy).
    h = pe_ref[...] + sp_ref[din:din + 1, :]                      # + b_embed
    for j in range(din):
        h = h + x[:, :, j:j + 1] * sp_ref[j:j + 1, :]             # + x_j * w_embed[j]

    for l in range(n_layers):
        base = din + 1 + 5 * l

        # ---- single-head self attention (fused QKV projection) ----
        hf = h.reshape(m, d).astype(bf16)
        qkv = jnp.dot(hf, wqkv_ref[l], preferred_element_type=f32)   # (m, 3D) f32
        q = qkv[:, :d].reshape(tb, gs, d).astype(bf16)               # already scaled by 1/sqrt(D)
        k = qkv[:, d:2 * d].reshape(tb, gs, d).astype(bf16)
        v = qkv[:, 2 * d:].reshape(tb, gs, d).astype(bf16)

        s = jnp.einsum("bqd,bkd->bqk", q, k, preferred_element_type=f32)
        s = s - jnp.max(s, axis=-1, keepdims=True)
        e = jnp.exp(s)
        attn = e * pl.reciprocal(jnp.sum(e, axis=-1, keepdims=True), approx=True)
        ctx = jnp.einsum("bqk,bkd->bqd", attn.astype(bf16), v,
                         preferred_element_type=f32)

        h = h + jnp.dot(ctx.reshape(m, d).astype(bf16), wo_ref[l],
                        preferred_element_type=f32).reshape(tb, gs, d)
        h = _norm(h, sp_ref[base:base + 1, :], sp_ref[base + 1:base + 2, :])

        # ---- feed forward ----
        ff = jnp.maximum(
            jnp.dot(h.reshape(m, d).astype(bf16), wf1_ref[l],
                    preferred_element_type=f32) + bff1_ref[l:l + 1, :], 0.0)
        ff = jnp.dot(ff.astype(bf16), wf2_ref[l],
                     preferred_element_type=f32) + sp_ref[base + 4:base + 5, :]
        h = h + ff.reshape(tb, gs, d)
        h = _norm(h, sp_ref[base + 2:base + 3, :], sp_ref[base + 3:base + 4, :])

    vbase = din + 1 + 5 * n_layers

    # fusion.mean(1) == mean(h) @ (W_node + W_graph) since both projections are bias-free.
    graph = jnp.mean(h, axis=1)                                              # (tb, D) f32
    pooled = jnp.dot(graph.astype(bf16), wgn_ref[...], preferred_element_type=f32)

    # value head (lane-padded to 128: padded lanes carry zero weight & bias).
    hid = jnp.maximum(
        jnp.dot(pooled.astype(bf16), wv1_ref[...], preferred_element_type=f32)
        + sp_ref[vbase:vbase + 1, :], 0.0)                                   # (tb, D)
    val = jnp.sum(hid * sp_ref[vbase + 1:vbase + 2, :], axis=-1, keepdims=True)  # (tb, 1)

    # lane-dense output: broadcast value (+ b_v2) across all 128 lanes; wrapper slices [:, :1].
    out_ref[...] = (val + sp_ref[vbase + 2:vbase + 3, :])[:, None, :]


def pack_params(params):
    """Prep-time packing: bf16 weights, fused QKV (scale folded into wq), W_graph+W_node summed,
    value head lane-padded, and all tiny bias/norm tensors coalesced into one (R,128) f32 array."""
    din, d = params["w_embed"].shape
    n_layers = params["wq"].shape[0]
    f = params["w_ff1"].shape[-1]
    hid = params["w_v1"].shape[-1]
    assert d == POS_ENC_DIM, "embedding_dim must be 128 (pos-enc is hard-coded to 128)"
    assert f % d == 0 and hid <= d

    f32, bf16 = jnp.float32, jnp.bfloat16

    rows = [params["w_embed"].astype(f32),                      # rows [0:din]
            params["b_embed"].reshape(1, d).astype(f32)]        # row din
    for l in range(n_layers):                                   # 5 rows per layer
        rows += [params["n1_g"][l].reshape(1, d), params["n1_b"][l].reshape(1, d),
                 params["n2_g"][l].reshape(1, d), params["n2_b"][l].reshape(1, d),
                 params["b_ff2"][l].reshape(1, d)]
    rows += [                                                   # value head (lane-padded)
        jnp.zeros((1, d), f32).at[0, :hid].set(params["b_v1"].reshape(-1)),
        jnp.zeros((1, d), f32).at[0, :hid].set(params["w_v2"].reshape(-1)),
        jnp.broadcast_to(params["b_v2"].reshape(1, 1).astype(f32), (1, d)),
    ]
    sp = jnp.concatenate([r.astype(f32) for r in rows], axis=0)
    pad = (-sp.shape[0]) % 8
    if pad:
        sp = jnp.concatenate([sp, jnp.zeros((pad, d), f32)], axis=0)

    scale = 1.0 / np.sqrt(d)  # single head -> key_dim == embed_dim
    return dict(
        sp=sp,
        b_ff1=params["b_ff1"].reshape(n_layers, f).astype(f32),
        wqkv=jnp.concatenate([params["wq"] * scale, params["wk"], params["wv"]],
                             axis=-1).astype(bf16),
        wo=params["wo"].astype(bf16),
        w_ff1=params["w_ff1"].astype(bf16),
        w_ff2=params["w_ff2"].astype(bf16),
        w_gn=(params["w_graph"] + params["w_node"]).astype(bf16),
        w_v1=jnp.zeros((d, d), f32).at[:, :hid].set(params["w_v1"]).astype(bf16),
    )


def critic_forward(packed, inputs, rec, *, batch_block=None):
    """inputs: (bs, gs, input_dim) coords; rec: (bs, gs) tour permutation."""
    bs, gs = rec.shape
    din = inputs.shape[-1]
    d = packed["sp"].shape[-1]
    assert gs % 8 == 0, "graph_size must be a multiple of 8 (pad the tour if needed)"

    enc = position_encoding_init(gs, d)                           # (gs, 128)

    # _emdedding: node_2_cor gathers input[:, i, :] for i = 0..gs-1 -> identity.
    input_info = inputs.astype(jnp.float32)
    # pos_enc[b, i] = enc[t] where rec[b, t] == i  (inverse permutation gather, plain JAX)
    rec_i = rec.astype(jnp.int32)
    inv = jnp.zeros((bs, gs), jnp.int32).at[
        jnp.arange(bs)[:, None], rec_i
    ].set(jnp.broadcast_to(jnp.arange(gs, dtype=jnp.int32)[None, :], (bs, gs)))
    pos_enc = enc[inv]                                            # (bs, gs, 128)

    # Batch tile: big enough that tb*gs rows feed the MXU, but still a grid axis
    # ("parallel") so v7x's two TensorCores can split the batch.
    if batch_block is None:
        batch_block = 1
        for cand in range(1, bs + 1):
            if bs % cand == 0 and cand * gs <= max(256, gs):
                batch_block = cand
    tb = batch_block
    assert bs % tb == 0
    grid = (bs // tb,)

    args = (input_info, pos_enc, packed["sp"], packed["b_ff1"],
            packed["wqkv"], packed["wo"], packed["w_ff1"], packed["w_ff2"],
            packed["w_gn"], packed["w_v1"])

    def full_spec(a):
        return pl.BlockSpec(a.shape, lambda b: (0,) * a.ndim)

    in_specs = [
        pl.BlockSpec((tb, gs, din), lambda b: (b, 0, 0)),
        pl.BlockSpec((tb, gs, d), lambda b: (b, 0, 0)),
    ] + [full_spec(a) for a in args[2:]]
    out_spec = pl.BlockSpec((tb, 1, d), lambda b: (b, 0, 0))

    # VMEM budget from the actual footprint (double-buffered params + activations + headroom),
    # instead of requesting the whole physical VMEM.
    arg_bytes = sum(int(np.prod(a.shape)) * a.dtype.itemsize for a in args)
    act_bytes = tb * gs * (8 * d + packed["w_ff1"].shape[-1]) * 4
    vmem_limit = int(min(32 << 20, max(8 << 20, 2 * arg_bytes + 2 * act_bytes + (2 << 20))))

    out = pl.pallas_call(
        critic_kernel,
        grid=grid,
        out_shape=jax.ShapeDtypeStruct((bs, 1, d), jnp.float32),
        in_specs=in_specs,
        out_specs=out_spec,
        compiler_params=pltpu.CompilerParams(
            dimension_semantics=("parallel",),
            vmem_limit_bytes=vmem_limit,
        ),
    )(*args)

    value = out[:, 0, :1]                                         # (bs, 1)
    return value, input_info, pos_enc


def init_params(key, input_dim, embed_dim, hidden_dim, n_layers, ff_hidden=512):
    ks = jax.random.split(key, 16)

    def rnd(k, shape, scale=0.05):
        return scale * jax.random.normal(k, shape, jnp.float32)

    return dict(
        w_embed=rnd(ks[0], (input_dim, embed_dim)),
        b_embed=rnd(ks[1], (1, embed_dim)),
        wq=rnd(ks[2], (n_layers, embed_dim, embed_dim)),
        wk=rnd(ks[3], (n_layers, embed_dim, embed_dim)),
        wv=rnd(ks[4], (n_layers, embed_dim, embed_dim)),
        wo=rnd(ks[5], (n_layers, embed_dim, embed_dim)),
        n1_g=jnp.ones((n_layers, 1, embed_dim), jnp.float32),
        n1_b=jnp.zeros((n_layers, 1, embed_dim), jnp.float32),
        w_ff1=rnd(ks[6], (n_layers, embed_dim, ff_hidden)),
        b_ff1=rnd(ks[7], (n_layers, 1, ff_hidden)),
        w_ff2=rnd(ks[8], (n_layers, ff_hidden, embed_dim)),
        b_ff2=rnd(ks[9], (n_layers, 1, embed_dim)),
        n2_g=jnp.ones((n_layers, 1, embed_dim), jnp.float32),
        n2_b=jnp.zeros((n_layers, 1, embed_dim), jnp.float32),
        w_graph=rnd(ks[10], (embed_dim, embed_dim)),
        w_node=rnd(ks[11], (embed_dim, embed_dim)),
        w_v1=rnd(ks[12], (embed_dim, hidden_dim)),
        b_v1=rnd(ks[13], (1, hidden_dim)),
        w_v2=rnd(ks[14], (1, hidden_dim)),   # torch Linear(hidden, 1).weight layout
        b_v2=rnd(ks[15], (1, 1)),
    )


if __name__ == "__main__":
    bs, gs = 2, 8
    input_dim, embedding_dim, hidden_dim, n_layers = 2, POS_ENC_DIM, 32, 2

    key = jax.random.PRNGKey(0)
    k_in, k_rec, k_par = jax.random.split(key, 3)

    inputs = jax.random.uniform(k_in, (bs, gs, input_dim), jnp.float32)
    rec = jnp.stack(
        [jax.random.permutation(k, gs) for k in jax.random.split(k_rec, bs)]
    ).astype(jnp.int32)

    params = init_params(k_par, input_dim, embedding_dim, hidden_dim, n_layers)
    packed = pack_params(params)

    value, input_info, pos_enc = critic_forward(packed, inputs, rec)
    jax.block_until_ready((value, input_info, pos_enc))

    assert value.shape == (bs, 1)
    assert input_info.shape == (bs, gs, input_dim)
    assert pos_enc.shape == (bs, gs, POS_ENC_DIM)
    print("KERNEL_OK")
</pallas_src>

<mosaic_0001>
module attributes {stable_mosaic.version = 11 : i64} {
  func.func @critic_kernel(%arg0: i32, %arg1: memref<2x8x2xf32, #tpu.memory_space<vmem>>, %arg2: memref<2x8x128xf32, #tpu.memory_space<vmem>>, %arg3: memref<16x128xf32, #tpu.memory_space<vmem>>, %arg4: memref<2x512xf32, #tpu.memory_space<vmem>>, %arg5: memref<2x128x384xbf16, #tpu.memory_space<vmem>>, %arg6: memref<2x128x128xbf16, #tpu.memory_space<vmem>>, %arg7: memref<2x128x512xbf16, #tpu.memory_space<vmem>>, %arg8: memref<2x512x128xbf16, #tpu.memory_space<vmem>>, %arg9: memref<128x128xbf16, #tpu.memory_space<vmem>>, %arg10: memref<128x128xbf16, #tpu.memory_space<vmem>>, %arg11: memref<2x1x128xf32, #tpu.memory_space<vmem>>) attributes {dimension_semantics = [#tpu.dimension_semantics<parallel>], iteration_bounds = array<i64: 1>, scalar_prefetch = 0 : i64, scratch_operands = 0 : i64, tpu.core_type = #tpu.core_type<tc>, window_params = [{transform_indices = @transform_0, window_bounds = array<i64: 2, 8, 2>}, {transform_indices = @transform_1, window_bounds = array<i64: 2, 8, 128>}, {pipeline_mode = #tpu.pipeline_mode<synchronous>, transform_indices = @transform_2, window_bounds = array<i64: 16, 128>}, {pipeline_mode = #tpu.pipeline_mode<synchronous>, transform_indices = @transform_3, window_bounds = array<i64: 2, 512>}, {pipeline_mode = #tpu.pipeline_mode<synchronous>, transform_indices = @transform_4, window_bounds = array<i64: 2, 128, 384>}, {pipeline_mode = #tpu.pipeline_mode<synchronous>, transform_indices = @transform_5, window_bounds = array<i64: 2, 128, 128>}, {pipeline_mode = #tpu.pipeline_mode<synchronous>, transform_indices = @transform_6, window_bounds = array<i64: 2, 128, 512>}, {pipeline_mode = #tpu.pipeline_mode<synchronous>, transform_indices = @transform_7, window_bounds = array<i64: 2, 512, 128>}, {pipeline_mode = #tpu.pipeline_mode<synchronous>, transform_indices = @transform_8, window_bounds = array<i64: 128, 128>}, {pipeline_mode = #tpu.pipeline_mode<synchronous>, transform_indices = @transform_9, window_bounds = array<i64: 128, 128>}, {transform_indices = @transform_10, window_bounds = array<i64: 2, 1, 128>}]} {
    %c0 = arith.constant 0 : index
    %c0_0 = arith.constant 0 : index
    %c0_1 = arith.constant 0 : index
    %0 = vector.load %arg1[%c0, %c0_0, %c0_1] : memref<2x8x2xf32, #tpu.memory_space<vmem>>, vector<2x8x2xf32>
    %c0_2 = arith.constant 0 : index
    %c0_3 = arith.constant 0 : index
    %c0_4 = arith.constant 0 : index
    %1 = vector.load %arg2[%c0_2, %c0_3, %c0_4] : memref<2x8x128xf32, #tpu.memory_space<vmem>>, vector<2x8x128xf32>
    %c2 = arith.constant 2 : index
    %c0_5 = arith.constant 0 : index
    %2 = vector.load %arg3[%c2, %c0_5] : memref<16x128xf32, #tpu.memory_space<vmem>>, vector<1x128xf32>
    %3 = vector.shape_cast %2 : vector<1x128xf32> to vector<1x1x128xf32>
    %4 = vector.broadcast %3 : vector<1x1x128xf32> to vector<2x8x128xf32>
    %5 = arith.addf %1, %4 : vector<2x8x128xf32>
    %6 = vector.extract_strided_slice %0 {offsets = [0, 0, 0], sizes = [2, 8, 1], strides = [1, 1, 1]} : vector<2x8x2xf32> to vector<2x8x1xf32>
    %c0_6 = arith.constant 0 : index
    %c0_7 = arith.constant 0 : index
    %7 = vector.load %arg3[%c0_6, %c0_7] : memref<16x128xf32, #tpu.memory_space<vmem>>, vector<1x128xf32>
    %8 = vector.shape_cast %7 : vector<1x128xf32> to vector<1x1x128xf32>
    %9 = vector.broadcast %6 : vector<2x8x1xf32> to vector<2x8x128xf32>
    %10 = vector.broadcast %8 : vector<1x1x128xf32> to vector<2x8x128xf32>
    %11 = arith.mulf %9, %10 : vector<2x8x128xf32>
    %12 = arith.addf %5, %11 : vector<2x8x128xf32>
    %13 = vector.extract_strided_slice %0 {offsets = [0, 0, 1], sizes = [2, 8, 1], strides = [1, 1, 1]} : vector<2x8x2xf32> to vector<2x8x1xf32>
    %c1 = arith.constant 1 : index
    %c0_8 = arith.constant 0 : index
    %14 = vector.load %arg3[%c1, %c0_8] : memref<16x128xf32, #tpu.memory_space<vmem>>, vector<1x128xf32>
    %15 = vector.shape_cast %14 : vector<1x128xf32> to vector<1x1x128xf32>
    %16 = vector.broadcast %13 : vector<2x8x1xf32> to vector<2x8x128xf32>
    %17 = vector.broadcast %15 : vector<1x1x128xf32> to vector<2x8x128xf32>
    %18 = arith.mulf %16, %17 : vector<2x8x128xf32>
    %19 = arith.addf %12, %18 : vector<2x8x128xf32>
    %20 = vector.shape_cast %19 : vector<2x8x128xf32> to vector<16x128xf32>
    %21 = arith.truncf %20 : vector<16x128xf32> to vector<16x128xbf16>
    %c0_9 = arith.constant 0 : index
    %c0_10 = arith.constant 0 : index
    %c0_11 = arith.constant 0 : index
    %22 = vector.load %arg5[%c0_9, %c0_10, %c0_11] : memref<2x128x384xbf16, #tpu.memory_space<vmem>>, vector<1x128x384xbf16>
    %23 = vector.shape_cast %22 : vector<1x128x384xbf16> to vector<128x384xbf16>
    %cst = arith.constant dense<0.000000e+00> : vector<16x384xf32>
    %24 = tpu.matmul %21, %23, %cst {dimension_numbers = #tpu.dot_dimension_numbers<[1], [0], [0], [1], [0, 0, 1, 1], [], []>} : vector<16x128xbf16>, vector<128x384xbf16>, vector<16x384xf32> -> vector<16x384xf32>
    %25 = vector.extract_strided_slice %24 {offsets = [0, 0], sizes = [16, 128], strides = [1, 1]} : vector<16x384xf32> to vector<16x128xf32>
    %26 = vector.shape_cast %25 : vector<16x128xf32> to vector<2x8x128xf32>
    %27 = arith.truncf %26 : vector<2x8x128xf32> to vector<2x8x128xbf16>
    %28 = vector.extract_strided_slice %24 {offsets = [0, 128], sizes = [16, 128], strides = [1, 1]} : vector<16x384xf32> to vector<16x128xf32>
    %29 = vector.shape_cast %28 : vector<16x128xf32> to vector<2x8x128xf32>
    %30 = arith.truncf %29 : vector<2x8x128xf32> to vector<2x8x128xbf16>
    %31 = vector.extract_strided_slice %24 {offsets = [0, 256], sizes = [16, 128], strides = [1, 1]} : vector<16x384xf32> to vector<16x128xf32>
    %32 = vector.shape_cast %31 : vector<16x128xf32> to vector<2x8x128xf32>
    %33 = arith.truncf %32 : vector<2x8x128xf32> to vector<2x8x128xbf16>
    "tpu.trace_start"() <{level = 10 : i32, message = "bqd,bkd->bqk"}> : () -> ()
    %cst_12 = arith.constant dense<0.000000e+00> : vector<2x8x8xf32>
    %34 = tpu.matmul %27, %30, %cst_12 {dimension_numbers = #tpu.dot_dimension_numbers<[2], [2], [1], [1], [0, 0, 0, 1, 1, 1], [0], [0]>} : vector<2x8x128xbf16>, vector<2x8x128xbf16>, vector<2x8x8xf32> -> vector<2x8x8xf32>
    "tpu.trace_stop"() : () -> ()
    %cst_13 = arith.constant dense<0xFF800000> : vector<2x8xf32>
    %35 = vector.multi_reduction <maximumf>, %34, %cst_13 [2] : vector<2x8x8xf32> to vector<2x8xf32>
    %36 = vector.shape_cast %35 : vector<2x8xf32> to vector<2x8x1xf32>
    %37 = vector.broadcast %36 : vector<2x8x1xf32> to vector<2x8x8xf32>
    %38 = arith.subf %34, %37 : vector<2x8x8xf32>
    %39 = math.exp %38 : vector<2x8x8xf32>
    %cst_14 = arith.constant dense<0.000000e+00> : vector<2x8xf32>
    %40 = vector.multi_reduction <add>, %39, %cst_14 [2] : vector<2x8x8xf32> to vector<2x8xf32>
    %41 = vector.shape_cast %40 : vector<2x8xf32> to vector<2x8x1xf32>
    %42 = tpu.reciprocal %41 {approx = true} : vector<2x8x1xf32> -> vector<2x8x1xf32>
    %43 = vector.broadcast %42 : vector<2x8x1xf32> to vector<2x8x8xf32>
    %44 = arith.mulf %39, %43 : vector<2x8x8xf32>
    %45 = arith.truncf %44 : vector<2x8x8xf32> to vector<2x8x8xbf16>
    "tpu.trace_start"() <{level = 10 : i32, message = "bqk,bkd->bqd"}> : () -> ()
    %cst_15 = arith.constant dense<0.000000e+00> : vector<2x8x128xf32>
    %46 = tpu.matmul %45, %33, %cst_15 {dimension_numbers = #tpu.dot_dimension_numbers<[2], [1], [1], [2], [0, 0, 0, 1, 1, 2], [0], [0]>} : vector<2x8x8xbf16>, vector<2x8x128xbf16>, vector<2x8x128xf32> -> vector<2x8x128xf32>
    "tpu.trace_stop"() : () -> ()
    %47 = vector.shape_cast %46 : vector<2x8x128xf32> to vector<16x128xf32>
    %48 = arith.truncf %47 : vector<16x128xf32> to vector<16x128xbf16>
    %c0_16 = arith.constant 0 : index
    %c0_17 = arith.constant 0 : index
    %c0_18 = arith.constant 0 : index
    %49 = vector.load %arg6[%c0_16, %c0_17, %c0_18] : memref<2x128x128xbf16, #tpu.memory_space<vmem>>, vector<1x128x128xbf16>
    %50 = vector.shape_cast %49 : vector<1x128x128xbf16> to vector<128x128xbf16>
    %cst_19 = arith.constant dense<0.000000e+00> : vector<16x128xf32>
    %51 = tpu.matmul %48, %50, %cst_19 {dimension_numbers = #tpu.dot_dimension_numbers<[1], [0], [0], [1], [0, 0, 1, 1], [], []>} : vector<16x128xbf16>, vector<128x128xbf16>, vector<16x128xf32> -> vector<16x128xf32>
    %52 = vector.shape_cast %51 : vector<16x128xf32> to vector<2x8x128xf32>
    %53 = arith.addf %19, %52 : vector<2x8x128xf32>
    %c3 = arith.constant 3 : index
    %c0_20 = arith.constant 0 : index
    %54 = vector.load %arg3[%c3, %c0_20] : memref<16x128xf32, #tpu.memory_space<vmem>>, vector<1x128xf32>
    %c4 = arith.constant 4 : index
    %c0_21 = arith.constant 0 : index
    %55 = vector.load %arg3[%c4, %c0_21] : memref<16x128xf32, #tpu.memory_space<vmem>>, vector<1x128xf32>
    %cst_22 = arith.constant dense<0.000000e+00> : vector<2x128xf32>
    %56 = vector.multi_reduction <add>, %53, %cst_22 [1] : vector<2x8x128xf32> to vector<2x128xf32>
    %57 = vector.shape_cast %56 : vector<2x128xf32> to vector<2x1x128xf32>
    %cst_23 = arith.constant 8.000000e+00 : f32
    %58 = vector.broadcast %cst_23 : f32 to vector<2x1x128xf32>
    %59 = arith.divf %57, %58 : vector<2x1x128xf32>
    %60 = vector.broadcast %59 : vector<2x1x128xf32> to vector<2x8x128xf32>
    %61 = arith.subf %53, %60 : vector<2x8x128xf32>
    %62 = arith.mulf %61, %61 : vector<2x8x128xf32>
    %cst_24 = arith.constant dense<0.000000e+00> : vector<2x128xf32>
    %63 = vector.multi_reduction <add>, %62, %cst_24 [1] : vector<2x8x128xf32> to vector<2x128xf32>
    %64 = vector.shape_cast %63 : vector<2x128xf32> to vector<2x1x128xf32>
    %cst_25 = arith.constant 8.000000e+00 : f32
    %65 = vector.broadcast %cst_25 : f32 to vector<2x1x128xf32>
    %66 = arith.divf %64, %65 : vector<2x1x128xf32>
    %67 = vector.broadcast %59 : vector<2x1x128xf32> to vector<2x8x128xf32>
    %68 = arith.subf %53, %67 : vector<2x8x128xf32>
    %cst_26 = arith.constant 9.99999974E-6 : f32
    %69 = vector.broadcast %cst_26 : f32 to vector<2x1x128xf32>
    %70 = arith.addf %66, %69 : vector<2x1x128xf32>
    %71 = math.rsqrt %70 : vector<2x1x128xf32>
    %72 = vector.broadcast %71 : vector<2x1x128xf32> to vector<2x8x128xf32>
    %73 = arith.mulf %68, %72 : vector<2x8x128xf32>
    %74 = vector.shape_cast %54 : vector<1x128xf32> to vector<1x1x128xf32>
    %75 = vector.broadcast %74 : vector<1x1x128xf32> to vector<2x8x128xf32>
    %76 = arith.mulf %73, %75 : vector<2x8x128xf32>
    %77 = vector.shape_cast %55 : vector<1x128xf32> to vector<1x1x128xf32>
    %78 = vector.broadcast %77 : vector<1x1x128xf32> to vector<2x8x128xf32>
    %79 = arith.addf %76, %78 : vector<2x8x128xf32>
    %80 = vector.shape_cast %79 : vector<2x8x128xf32> to vector<16x128xf32>
    %81 = arith.truncf %80 : vector<16x128xf32> to vector<16x128xbf16>
    %c0_27 = arith.constant 0 : index
    %c0_28 = arith.constant 0 : index
    %c0_29 = arith.constant 0 : index
    %82 = vector.load %arg7[%c0_27, %c0_28, %c0_29] : memref<2x128x512xbf16, #tpu.memory_space<vmem>>, vector<1x128x512xbf16>
    %83 = vector.shape_cast %82 : vector<1x128x512xbf16> to vector<128x512xbf16>
    %cst_30 = arith.constant dense<0.000000e+00> : vector<16x512xf32>
    %84 = tpu.matmul %81, %83, %cst_30 {dimension_numbers = #tpu.dot_dimension_numbers<[1], [0], [0], [1], [0, 0, 1, 1], [], []>} : vector<16x128xbf16>, vector<128x512xbf16>, vector<16x512xf32> -> vector<16x512xf32>
    %c0_31 = arith.constant 0 : index
    %c0_32 = arith.constant 0 : index
    %85 = vector.load %arg4[%c0_31, %c0_32] : memref<2x512xf32, #tpu.memory_space<vmem>>, vector<1x512xf32>
    %86 = vector.broadcast %85 : vector<1x512xf32> to vector<16x512xf32>
    %87 = arith.addf %84, %86 : vector<16x512xf32>
    %cst_33 = arith.constant 0.000000e+00 : f32
    %88 = vector.broadcast %cst_33 : f32 to vector<16x512xf32>
    %89 = arith.maximumf %87, %88 : vector<16x512xf32>
    %90 = arith.truncf %89 : vector<16x512xf32> to vector<16x512xbf16>
    %c0_34 = arith.constant 0 : index
    %c0_35 = arith.constant 0 : index
    %c0_36 = arith.constant 0 : index
    %91 = vector.load %arg8[%c0_34, %c0_35, %c0_36] : memref<2x512x128xbf16, #tpu.memory_space<vmem>>, vector<1x512x128xbf16>
    %92 = vector.shape_cast %91 : vector<1x512x128xbf16> to vector<512x128xbf16>
    %cst_37 = arith.constant dense<0.000000e+00> : vector<16x128xf32>
    %93 = tpu.matmul %90, %92, %cst_37 {dimension_numbers = #tpu.dot_dimension_numbers<[1], [0], [0], [1], [0, 0, 1, 1], [], []>} : vector<16x512xbf16>, vector<512x128xbf16>, vector<16x128xf32> -> vector<16x128xf32>
    %c7 = arith.constant 7 : index
    %c0_38 = arith.constant 0 : index
    %94 = vector.load %arg3[%c7, %c0_38] : memref<16x128xf32, #tpu.memory_space<vmem>>, vector<1x128xf32>
    %95 = vector.broadcast %94 : vector<1x128xf32> to vector<16x128xf32>
    %96 = arith.addf %93, %95 : vector<16x128xf32>
    %97 = vector.shape_cast %96 : vector<16x128xf32> to vector<2x8x128xf32>
    %98 = arith.addf %79, %97 : vector<2x8x128xf32>
    %c5 = arith.constant 5 : index
    %c0_39 = arith.constant 0 : index
    %99 = vector.load %arg3[%c5, %c0_39] : memref<16x128xf32, #tpu.memory_space<vmem>>, vector<1x128xf32>
    %c6 = arith.constant 6 : index
    %c0_40 = arith.constant 0 : index
    %100 = vector.load %arg3[%c6, %c0_40] : memref<16x128xf32, #tpu.memory_space<vmem>>, vector<1x128xf32>
    %cst_41 = arith.constant dense<0.000000e+00> : vector<2x128xf32>
    %101 = vector.multi_reduction <add>, %98, %cst_41 [1] : vector<2x8x128xf32> to vector<2x128xf32>
    %102 = vector.shape_cast %101 : vector<2x128xf32> to vector<2x1x128xf32>
    %cst_42 = arith.constant 8.000000e+00 : f32
    %103 = vector.broadcast %cst_42 : f32 to vector<2x1x128xf32>
    %104 = arith.divf %102, %103 : vector<2x1x128xf32>
    %105 = vector.broadcast %104 : vector<2x1x128xf32> to vector<2x8x128xf32>
    %106 = arith.subf %98, %105 : vector<2x8x128xf32>
    %107 = arith.mulf %106, %106 : vector<2x8x128xf32>
    %cst_43 = arith.constant dense<0.000000e+00> : vector<2x128xf32>
    %108 = vector.multi_reduction <add>, %107, %cst_43 [1] : vector<2x8x128xf32> to vector<2x128xf32>
    %109 = vector.shape_cast %108 : vector<2x128xf32> to vector<2x1x128xf32>
    %cst_44 = arith.constant 8.000000e+00 : f32
    %110 = vector.broadcast %cst_44 : f32 to vector<2x1x128xf32>
    %111 = arith.divf %109, %110 : vector<2x1x128xf32>
    %112 = vector.broadcast %104 : vector<2x1x128xf32> to vector<2x8x128xf32>
    %113 = arith.subf %98, %112 : vector<2x8x128xf32>
    %cst_45 = arith.constant 9.99999974E-6 : f32
    %114 = vector.broadcast %cst_45 : f32 to vector<2x1x128xf32>
    %115 = arith.addf %111, %114 : vector<2x1x128xf32>
    %116 = math.rsqrt %115 : vector<2x1x128xf32>
    %117 = vector.broadcast %116 : vector<2x1x128xf32> to vector<2x8x128xf32>
    %118 = arith.mulf %113, %117 : vector<2x8x128xf32>
    %119 = vector.shape_cast %99 : vector<1x128xf32> to vector<1x1x128xf32>
    %120 = vector.broadcast %119 : vector<1x1x128xf32> to vector<2x8x128xf32>
    %121 = arith.mulf %118, %120 : vector<2x8x128xf32>
    %122 = vector.shape_cast %100 : vector<1x128xf32> to vector<1x1x128xf32>
    %123 = vector.broadcast %122 : vector<1x1x128xf32> to vector<2x8x128xf32>
    %124 = arith.addf %121, %123 : vector<2x8x128xf32>
    %125 = vector.shape_cast %124 : vector<2x8x128xf32> to vector<16x128xf32>
    %126 = arith.truncf %125 : vector<16x128xf32> to vector<16x128xbf16>
    %c1_46 = arith.constant 1 : index
    %c0_47 = arith.constant 0 : index
    %c0_48 = arith.constant 0 : index
    %127 = vector.load %arg5[%c1_46, %c0_47, %c0_48] : memref<2x128x384xbf16, #tpu.memory_space<vmem>>, vector<1x128x384xbf16>
    %128 = vector.shape_cast %127 : vector<1x128x384xbf16> to vector<128x384xbf16>
    %cst_49 = arith.constant dense<0.000000e+00> : vector<16x384xf32>
    %129 = tpu.matmul %126, %128, %cst_49 {dimension_numbers = #tpu.dot_dimension_numbers<[1], [0], [0], [1], [0, 0, 1, 1], [], []>} : vector<16x128xbf16>, vector<128x384xbf16>, vector<16x384xf32> -> vector<16x384xf32>
    %130 = vector.extract_strided_slice %129 {offsets = [0, 0], sizes = [16, 128], strides = [1, 1]} : vector<16x384xf32> to vector<16x128xf32>
    %131 = vector.shape_cast %130 : vector<16x128xf32> to vector<2x8x128xf32>
    %132 = arith.truncf %131 : vector<2x8x128xf32> to vector<2x8x128xbf16>
    %133 = vector.extract_strided_slice %129 {offsets = [0, 128], sizes = [16, 128], strides = [1, 1]} : vector<16x384xf32> to vector<16x128xf32>
    %134 = vector.shape_cast %133 : vector<16x128xf32> to vector<2x8x128xf32>
    %135 = arith.truncf %134 : vector<2x8x128xf32> to vector<2x8x128xbf16>
    %136 = vector.extract_strided_slice %129 {offsets = [0, 256], sizes = [16, 128], strides = [1, 1]} : vector<16x384xf32> to vector<16x128xf32>
    %137 = vector.shape_cast %136 : vector<16x128xf32> to vector<2x8x128xf32>
    %138 = arith.truncf %137 : vector<2x8x128xf32> to vector<2x8x128xbf16>
    "tpu.trace_start"() <{level = 10 : i32, message = "bqd,bkd->bqk"}> : () -> ()
    %cst_50 = arith.constant dense<0.000000e+00> : vector<2x8x8xf32>
    %139 = tpu.matmul %132, %135, %cst_50 {dimension_numbers = #tpu.dot_dimension_numbers<[2], [2], [1], [1], [0, 0, 0, 1, 1, 1], [0], [0]>} : vector<2x8x128xbf16>, vector<2x8x128xbf16>, vector<2x8x8xf32> -> vector<2x8x8xf32>
    "tpu.trace_stop"() : () -> ()
    %cst_51 = arith.constant dense<0xFF800000> : vector<2x8xf32>
    %140 = vector.multi_reduction <maximumf>, %139, %cst_51 [2] : vector<2x8x8xf32> to vector<2x8xf32>
    %141 = vector.shape_cast %140 : vector<2x8xf32> to vector<2x8x1xf32>
    %142 = vector.broadcast %141 : vector<2x8x1xf32> to vector<2x8x8xf32>
    %143 = arith.subf %139, %142 : vector<2x8x8xf32>
    %144 = math.exp %143 : vector<2x8x8xf32>
    %cst_52 = arith.constant dense<0.000000e+00> : vector<2x8xf32>
    %145 = vector.multi_reduction <add>, %144, %cst_52 [2] : vector<2x8x8xf32> to vector<2x8xf32>
    %146 = vector.shape_cast %145 : vector<2x8xf32> to vector<2x8x1xf32>
    %147 = tpu.reciprocal %146 {approx = true} : vector<2x8x1xf32> -> vector<2x8x1xf32>
    %148 = vector.broadcast %147 : vector<2x8x1xf32> to vector<2x8x8xf32>
    %149 = arith.mulf %144, %148 : vector<2x8x8xf32>
    %150 = arith.truncf %149 : vector<2x8x8xf32> to vector<2x8x8xbf16>
    "tpu.trace_start"() <{level = 10 : i32, message = "bqk,bkd->bqd"}> : () -> ()
    %cst_53 = arith.constant dense<0.000000e+00> : vector<2x8x128xf32>
    %151 = tpu.matmul %150, %138, %cst_53 {dimension_numbers = #tpu.dot_dimension_numbers<[2], [1], [1], [2], [0, 0, 0, 1, 1, 2], [0], [0]>} : vector<2x8x8xbf16>, vector<2x8x128xbf16>, vector<2x8x128xf32> -> vector<2x8x128xf32>
    "tpu.trace_stop"() : () -> ()
    %152 = vector.shape_cast %151 : vector<2x8x128xf32> to vector<16x128xf32>
    %153 = arith.truncf %152 : vector<16x128xf32> to vector<16x128xbf16>
    %c1_54 = arith.constant 1 : index
    %c0_55 = arith.constant 0 : index
    %c0_56 = arith.constant 0 : index
    %154 = vector.load %arg6[%c1_54, %c0_55, %c0_56] : memref<2x128x128xbf16, #tpu.memory_space<vmem>>, vector<1x128x128xbf16>
    %155 = vector.shape_cast %154 : vector<1x128x128xbf16> to vector<128x128xbf16>
    %cst_57 = arith.constant dense<0.000000e+00> : vector<16x128xf32>
    %156 = tpu.matmul %153, %155, %cst_57 {dimension_numbers = #tpu.dot_dimension_numbers<[1], [0], [0], [1], [0, 0, 1, 1], [], []>} : vector<16x128xbf16>, vector<128x128xbf16>, vector<16x128xf32> -> vector<16x128xf32>
    %157 = vector.shape_cast %156 : vector<16x128xf32> to vector<2x8x128xf32>
    %158 = arith.addf %124, %157 : vector<2x8x128xf32>
    %c8 = arith.constant 8 : index
    %c0_58 = arith.constant 0 : index
    %159 = vector.load %arg3[%c8, %c0_58] : memref<16x128xf32, #tpu.memory_space<vmem>>, vector<1x128xf32>
    %c9 = arith.constant 9 : index
    %c0_59 = arith.constant 0 : index
    %160 = vector.load %arg3[%c9, %c0_59] : memref<16x128xf32, #tpu.memory_space<vmem>>, vector<1x128xf32>
    %cst_60 = arith.constant dense<0.000000e+00> : vector<2x128xf32>
    %161 = vector.multi_reduction <add>, %158, %cst_60 [1] : vector<2x8x128xf32> to vector<2x128xf32>
    %162 = vector.shape_cast %161 : vector<2x128xf32> to vector<2x1x128xf32>
    %cst_61 = arith.constant 8.000000e+00 : f32
    %163 = vector.broadcast %cst_61 : f32 to vector<2x1x128xf32>
    %164 = arith.divf %162, %163 : vector<2x1x128xf32>
    %165 = vector.broadcast %164 : vector<2x1x128xf32> to vector<2x8x128xf32>
    %166 = arith.subf %158, %165 : vector<2x8x128xf32>
    %167 = arith.mulf %166, %166 : vector<2x8x128xf32>
    %cst_62 = arith.constant dense<0.000000e+00> : vector<2x128xf32>
    %168 = vector.multi_reduction <add>, %167, %cst_62 [1] : vector<2x8x128xf32> to vector<2x128xf32>
    %169 = vector.shape_cast %168 : vector<2x128xf32> to vector<2x1x128xf32>
    %cst_63 = arith.constant 8.000000e+00 : f32
    %170 = vector.broadcast %cst_63 : f32 to vector<2x1x128xf32>
    %171 = arith.divf %169, %170 : vector<2x1x128xf32>
    %172 = vector.broadcast %164 : vector<2x1x128xf32> to vector<2x8x128xf32>
    %173 = arith.subf %158, %172 : vector<2x8x128xf32>
    %cst_64 = arith.constant 9.99999974E-6 : f32
    %174 = vector.broadcast %cst_64 : f32 to vector<2x1x128xf32>
    %175 = arith.addf %171, %174 : vector<2x1x128xf32>
    %176 = math.rsqrt %175 : vector<2x1x128xf32>
    %177 = vector.broadcast %176 : vector<2x1x128xf32> to vector<2x8x128xf32>
    %178 = arith.mulf %173, %177 : vector<2x8x128xf32>
    %179 = vector.shape_cast %159 : vector<1x128xf32> to vector<1x1x128xf32>
    %180 = vector.broadcast %179 : vector<1x1x128xf32> to vector<2x8x128xf32>
    %181 = arith.mulf %178, %180 : vector<2x8x128xf32>
    %182 = vector.shape_cast %160 : vector<1x128xf32> to vector<1x1x128xf32>
    %183 = vector.broadcast %182 : vector<1x1x128xf32> to vector<2x8x128xf32>
    %184 = arith.addf %181, %183 : vector<2x8x128xf32>
    %185 = vector.shape_cast %184 : vector<2x8x128xf32> to vector<16x128xf32>
    %186 = arith.truncf %185 : vector<16x128xf32> to vector<16x128xbf16>
    %c1_65 = arith.constant 1 : index
    %c0_66 = arith.constant 0 : index
    %c0_67 = arith.constant 0 : index
    %187 = vector.load %arg7[%c1_65, %c0_66, %c0_67] : memref<2x128x512xbf16, #tpu.memory_space<vmem>>, vector<1x128x512xbf16>
    %188 = vector.shape_cast %187 : vector<1x128x512xbf16> to vector<128x512xbf16>
    %cst_68 = arith.constant dense<0.000000e+00> : vector<16x512xf32>
    %189 = tpu.matmul %186, %188, %cst_68 {dimension_numbers = #tpu.dot_dimension_numbers<[1], [0], [0], [1], [0, 0, 1, 1], [], []>} : vector<16x128xbf16>, vector<128x512xbf16>, vector<16x512xf32> -> vector<16x512xf32>
    %c1_69 = arith.constant 1 : index
    %c0_70 = arith.constant 0 : index
    %190 = vector.load %arg4[%c1_69, %c0_70] : memref<2x512xf32, #tpu.memory_space<vmem>>, vector<1x512xf32>
    %191 = vector.broadcast %190 : vector<1x512xf32> to vector<16x512xf32>
    %192 = arith.addf %189, %191 : vector<16x512xf32>
    %cst_71 = arith.constant 0.000000e+00 : f32
    %193 = vector.broadcast %cst_71 : f32 to vector<16x512xf32>
    %194 = arith.maximumf %192, %193 : vector<16x512xf32>
    %195 = arith.truncf %194 : vector<16x512xf32> to vector<16x512xbf16>
    %c1_72 = arith.constant 1 : index
    %c0_73 = arith.constant 0 : index
    %c0_74 = arith.constant 0 : index
    %196 = vector.load %arg8[%c1_72, %c0_73, %c0_74] : memref<2x512x128xbf16, #tpu.memory_space<vmem>>, vector<1x512x128xbf16>
    %197 = vector.shape_cast %196 : vector<1x512x128xbf16> to vector<512x128xbf16>
    %cst_75 = arith.constant dense<0.000000e+00> : vector<16x128xf32>
    %198 = tpu.matmul %195, %197, %cst_75 {dimension_numbers = #tpu.dot_dimension_numbers<[1], [0], [0], [1], [0, 0, 1, 1], [], []>} : vector<16x512xbf16>, vector<512x128xbf16>, vector<16x128xf32> -> vector<16x128xf32>
    %c12 = arith.constant 12 : index
    %c0_76 = arith.constant 0 : index
    %199 = vector.load %arg3[%c12, %c0_76] : memref<16x128xf32, #tpu.memory_space<vmem>>, vector<1x128xf32>
    %200 = vector.broadcast %199 : vector<1x128xf32> to vector<16x128xf32>
    %201 = arith.addf %198, %200 : vector<16x128xf32>
    %202 = vector.shape_cast %201 : vector<16x128xf32> to vector<2x8x128xf32>
    %203 = arith.addf %184, %202 : vector<2x8x128xf32>
    %c10 = arith.constant 10 : index
    %c0_77 = arith.constant 0 : index
    %204 = vector.load %arg3[%c10, %c0_77] : memref<16x128xf32, #tpu.memory_space<vmem>>, vector<1x128xf32>
    %c11 = arith.constant 11 : index
    %c0_78 = arith.constant 0 : index
    %205 = vector.load %arg3[%c11, %c0_78] : memref<16x128xf32, #tpu.memory_space<vmem>>, vector<1x128xf32>
    %cst_79 = arith.constant dense<0.000000e+00> : vector<2x128xf32>
    %206 = vector.multi_reduction <add>, %203, %cst_79 [1] : vector<2x8x128xf32> to vector<2x128xf32>
    %207 = vector.shape_cast %206 : vector<2x128xf32> to vector<2x1x128xf32>
    %cst_80 = arith.constant 8.000000e+00 : f32
    %208 = vector.broadcast %cst_80 : f32 to vector<2x1x128xf32>
    %209 = arith.divf %207, %208 : vector<2x1x128xf32>
    %210 = vector.broadcast %209 : vector<2x1x128xf32> to vector<2x8x128xf32>
    %211 = arith.subf %203, %210 : vector<2x8x128xf32>
    %212 = arith.mulf %211, %211 : vector<2x8x128xf32>
    %cst_81 = arith.constant dense<0.000000e+00> : vector<2x128xf32>
    %213 = vector.multi_reduction <add>, %212, %cst_81 [1] : vector<2x8x128xf32> to vector<2x128xf32>
    %214 = vector.shape_cast %213 : vector<2x128xf32> to vector<2x1x128xf32>
    %cst_82 = arith.constant 8.000000e+00 : f32
    %215 = vector.broadcast %cst_82 : f32 to vector<2x1x128xf32>
    %216 = arith.divf %214, %215 : vector<2x1x128xf32>
    %217 = vector.broadcast %209 : vector<2x1x128xf32> to vector<2x8x128xf32>
    %218 = arith.subf %203, %217 : vector<2x8x128xf32>
    %cst_83 = arith.constant 9.99999974E-6 : f32
    %219 = vector.broadcast %cst_83 : f32 to vector<2x1x128xf32>
    %220 = arith.addf %216, %219 : vector<2x1x128xf32>
    %221 = math.rsqrt %220 : vector<2x1x128xf32>
    %222 = vector.broadcast %221 : vector<2x1x128xf32> to vector<2x8x128xf32>
    %223 = arith.mulf %218, %222 : vector<2x8x128xf32>
    %224 = vector.shape_cast %204 : vector<1x128xf32> to vector<1x1x128xf32>
    %225 = vector.broadcast %224 : vector<1x1x128xf32> to vector<2x8x128xf32>
    %226 = arith.mulf %223, %225 : vector<2x8x128xf32>
    %227 = vector.shape_cast %205 : vector<1x128xf32> to vector<1x1x128xf32>
    %228 = vector.broadcast %227 : vector<1x1x128xf32> to vector<2x8x128xf32>
    %229 = arith.addf %226, %228 : vector<2x8x128xf32>
    %cst_84 = arith.constant dense<0.000000e+00> : vector<2x128xf32>
    %230 = vector.multi_reduction <add>, %229, %cst_84 [1] : vector<2x8x128xf32> to vector<2x128xf32>
    %cst_85 = arith.constant 8.000000e+00 : f32
    %231 = vector.broadcast %cst_85 : f32 to vector<2x128xf32>
    %232 = arith.divf %230, %231 : vector<2x128xf32>
    %233 = arith.truncf %232 : vector<2x128xf32> to vector<2x128xbf16>
    %c0_86 = arith.constant 0 : index
    %c0_87 = arith.constant 0 : index
    %234 = vector.load %arg9[%c0_86, %c0_87] : memref<128x128xbf16, #tpu.memory_space<vmem>>, vector<128x128xbf16>
    %cst_88 = arith.constant dense<0.000000e+00> : vector<2x128xf32>
    %235 = tpu.matmul %233, %234, %cst_88 {dimension_numbers = #tpu.dot_dimension_numbers<[1], [0], [0], [1], [0, 0, 1, 1], [], []>} : vector<2x128xbf16>, vector<128x128xbf16>, vector<2x128xf32> -> vector<2x128xf32>
    %236 = arith.truncf %235 : vector<2x128xf32> to vector<2x128xbf16>
    %c0_89 = arith.constant 0 : index
    %c0_90 = arith.constant 0 : index
    %237 = vector.load %arg10[%c0_89, %c0_90] : memref<128x128xbf16, #tpu.memory_space<vmem>>, vector<128x128xbf16>
    %cst_91 = arith.constant dense<0.000000e+00> : vector<2x128xf32>
    %238 = tpu.matmul %236, %237, %cst_91 {dimension_numbers = #tpu.dot_dimension_numbers<[1], [0], [0], [1], [0, 0, 1, 1], [], []>} : vector<2x128xbf16>, vector<128x128xbf16>, vector<2x128xf32> -> vector<2x128xf32>
    %c13 = arith.constant 13 : index
    %c0_92 = arith.constant 0 : index
    %239 = vector.load %arg3[%c13, %c0_92] : memref<16x128xf32, #tpu.memory_space<vmem>>, vector<1x128xf32>
    %240 = vector.broadcast %239 : vector<1x128xf32> to vector<2x128xf32>
    %241 = arith.addf %238, %240 : vector<2x128xf32>
    %cst_93 = arith.constant 0.000000e+00 : f32
    %242 = vector.broadcast %cst_93 : f32 to vector<2x128xf32>
    %243 = arith.maximumf %241, %242 : vector<2x128xf32>
    %c14 = arith.constant 14 : index
    %c0_94 = arith.constant 0 : index
    %244 = vector.load %arg3[%c14, %c0_94] : memref<16x128xf32, #tpu.memory_space<vmem>>, vector<1x128xf32>
    %245 = vector.broadcast %244 : vector<1x128xf32> to vector<2x128xf32>
    %246 = arith.mulf %243, %245 : vector<2x128xf32>
    %cst_95 = arith.constant dense<0.000000e+00> : vector<2xf32>
    %247 = vector.multi_reduction <add>, %246, %cst_95 [1] : vector<2x128xf32> to vector<2xf32>
    %248 = vector.shape_cast %247 : vector<2xf32> to vector<2x1xf32>
    %c15 = arith.constant 15 : index
    %c0_96 = arith.constant 0 : index
    %249 = vector.load %arg3[%c15, %c0_96] : memref<16x128xf32, #tpu.memory_space<vmem>>, vector<1x128xf32>
    %250 = vector.broadcast %248 : vector<2x1xf32> to vector<2x128xf32>
    %251 = vector.broadcast %249 : vector<1x128xf32> to vector<2x128xf32>
    %252 = arith.addf %250, %251 : vector<2x128xf32>
    %253 = vector.shape_cast %252 : vector<2x128xf32> to vector<2x1x128xf32>
    %c0_97 = arith.constant 0 : index
    %c0_98 = arith.constant 0 : index
    %c0_99 = arith.constant 0 : index
    %254 = vector.load %arg11[%c0_97, %c0_98, %c0_99] : memref<2x1x128xf32, #tpu.memory_space<vmem>>, vector<2x1x128xf32>
    tpu.vector_store %arg11[%c0_97, %c0_98, %c0_99], %253 {strides = array<i32>} : memref<2x1x128xf32, #tpu.memory_space<vmem>>, vector<2x1x128xf32>,
    return
  }
  func.func @transform_0(%arg0: i32) -> (i32, i32, i32) {
    %c0_i32 = arith.constant 0 : i32
    %c0_i32_0 = arith.constant 0 : i32
    %c0_i32_1 = arith.constant 0 : i32
    return %arg0, %c0_i32, %c0_i32_0 : i32, i32, i32
  }
  func.func @transform_1(%arg0: i32) -> (i32, i32, i32) {
    %c0_i32 = arith.constant 0 : i32
    %c0_i32_0 = arith.constant 0 : i32
    %c0_i32_1 = arith.constant 0 : i32
    return %arg0, %c0_i32, %c0_i32_0 : i32, i32, i32
  }
  func.func @transform_2(%arg0: i32) -> (i32, i32) {
    %c0_i32 = arith.constant 0 : i32
    %c0_i32_0 = arith.constant 0 : i32
    %c0_i32_1 = arith.constant 0 : i32
    return %c0_i32, %c0_i32_0 : i32, i32
  }
  func.func @transform_3(%arg0: i32) -> (i32, i32) {
    %c0_i32 = arith.constant 0 : i32
    %c0_i32_0 = arith.constant 0 : i32
    %c0_i32_1 = arith.constant 0 : i32
    return %c0_i32, %c0_i32_0 : i32, i32
  }
  func.func @transform_4(%arg0: i32) -> (i32, i32, i32) {
    %c0_i32 = arith.constant 0 : i32
    %c0_i32_0 = arith.constant 0 : i32
    %c0_i32_1 = arith.constant 0 : i32
    %c0_i32_2 = arith.constant 0 : i32
    return %c0_i32, %c0_i32_0, %c0_i32_1 : i32, i32, i32
  }
  func.func @transform_5(%arg0: i32) -> (i32, i32, i32) {
    %c0_i32 = arith.constant 0 : i32
    %c0_i32_0 = arith.constant 0 : i32
    %c0_i32_1 = arith.constant 0 : i32
    %c0_i32_2 = arith.constant 0 : i32
    return %c0_i32, %c0_i32_0, %c0_i32_1 : i32, i32, i32
  }
  func.func @transform_6(%arg0: i32) -> (i32, i32, i32) {
    %c0_i32 = arith.constant 0 : i32
    %c0_i32_0 = arith.constant 0 : i32
    %c0_i32_1 = arith.constant 0 : i32
    %c0_i32_2 = arith.constant 0 : i32
    return %c0_i32, %c0_i32_0, %c0_i32_1 : i32, i32, i32
  }
  func.func @transform_7(%arg0: i32) -> (i32, i32, i32) {
    %c0_i32 = arith.constant 0 : i32
    %c0_i32_0 = arith.constant 0 : i32
    %c0_i32_1 = arith.constant 0 : i32
    %c0_i32_2 = arith.constant 0 : i32
    return %c0_i32, %c0_i32_0, %c0_i32_1 : i32, i32, i32
  }
  func.func @transform_8(%arg0: i32) -> (i32, i32) {
    %c0_i32 = arith.constant 0 : i32
    %c0_i32_0 = arith.constant 0 : i32
    %c0_i32_1 = arith.constant 0 : i32
    return %c0_i32, %c0_i32_0 : i32, i32
  }
  func.func @transform_9(%arg0: i32) -> (i32, i32) {
    %c0_i32 = arith.constant 0 : i32
    %c0_i32_0 = arith.constant 0 : i32
    %c0_i32_1 = arith.constant 0 : i32
    return %c0_i32, %c0_i32_0 : i32, i32
  }
  func.func @transform_10(%arg0: i32) -> (i32, i32, i32) {
    %c0_i32 = arith.constant 0 : i32
    %c0_i32_0 = arith.constant 0 : i32
    %c0_i32_1 = arith.constant 0 : i32
    return %arg0, %c0_i32, %c0_i32_0 : i32, i32, i32
  }
}

</mosaic_0001>

<llo_original>
// kernel: tpu_custom_call.1
$region0: #{tpu_custom_call.1}
  #allocation0 [shape = 'u32[]', space=smem, size = 0x4, offset = 0x4, fixed_abs, tag = 'smem constant byte address 0x4 - core index']
  #allocation1 [shape = 'u32[144,128]{1,0:T(1,128)}', space=vmem, size = 0x12000, scoped, tag = 'internal scratch']
  %s0 = inlined_call_operand.vmem [shape: f32[2,8,2], index: 0, kind: input, shape index: {}]
  %s1 = inlined_call_operand.vmem [shape: f32[2,8,128], index: 1, kind: input, shape index: {}]
  %s2 = inlined_call_operand.hbm [shape: f32[16,128], index: 2, kind: input, shape index: {}]
  %s3 = inlined_call_operand.vmem [shape: f32[2,512], index: 3, kind: input, shape index: {}]
  %s4 = inlined_call_operand.hbm [shape: bf16[2,128,384], index: 4, kind: input, shape index: {}]
  %s5 = inlined_call_operand.hbm [shape: bf16[2,128,128], index: 5, kind: input, shape index: {}]
  %s6 = inlined_call_operand.hbm [shape: bf16[2,128,512], index: 6, kind: input, shape index: {}]
  %s7 = inlined_call_operand.hbm [shape: bf16[2,512,128], index: 7, kind: input, shape index: {}]
  %s8 = inlined_call_operand.hbm [shape: bf16[128,128], index: 8, kind: input, shape index: {}]
  %s9 = inlined_call_operand.hbm [shape: bf16[128,128], index: 9, kind: input, shape index: {}]
  %s10 = inlined_call_operand.hbm [shape: f32[2,1,128], index: 10, kind: output, shape index: {}]
  %s11 = sld [smem:[#allocation0]]
  $region78: #{tpu_custom_call.1} parent=0
    _
  %s13 = ssub.s32 1, %s11
  %s14 = scalar_select 0, %s13, %s11
  $region1: #{tpu_custom_call.1} parent=0
    #allocation2 [shape = 'u8[8192]{0}', space=vmem, size = 0x2000, scoped, tag = 'input window, operand 2, single buffered']
    #allocation3 [shape = 's32[1]{0}', space=sflag, size = 0x4, scoped, tag = 'scoped memory for tpu_custom_call.1']
    #allocation4 [shape = 's32[1]{0}', space=sflag, size = 0x4, scoped, tag = 'scoped memory for tpu_custom_call.1']
    #allocation5 [shape = 'u8[196608]{0}', space=vmem, size = 0x30000, scoped, tag = 'input window, operand 4, single buffered']
    #allocation6 [shape = 's32[1]{0}', space=sflag, size = 0x4, scoped, tag = 'scoped memory for tpu_custom_call.1']
    #allocation7 [shape = 'u8[65536]{0}', space=vmem, size = 0x10000, scoped, tag = 'input window, operand 5, single buffered']
    #allocation8 [shape = 'u8[262144]{0}', space=vmem, size = 0x40000, scoped, tag = 'input window, operand 6, single buffered']
    #allocation9 [shape = 's32[1]{0}', space=sflag, size = 0x4, scoped, tag = 'scoped memory for tpu_custom_call.1']
    #allocation10 [shape = 'u8[262144]{0}', space=vmem, size = 0x40000, scoped, tag = 'input window, operand 7, single buffered']
    #allocation11 [shape = 'u8[32768]{0}', space=vmem, size = 0x8000, scoped, tag = 'input window, operand 8, single buffered']
    #allocation12 [shape = 's32[1]{0}', space=sflag, size = 0x4, scoped, tag = 'scoped memory for tpu_custom_call.1']
    #allocation13 [shape = 'u8[32768]{0}', space=vmem, size = 0x8000, scoped, tag = 'input window, operand 9, single buffered']
    #allocation14 [shape = 'u8[1024]{0}', space=vmem, size = 0x400, scoped, tag = 'output window, operand 0, single buffered']
    %15 = vsyncpa [#allocation3], 0
    %16 = vsyncpa [#allocation6], 0
    %17 = vsyncpa [#allocation9], 0
    %18 = vsyncpa [#allocation12], 0
    %19 = vsyncpa [#allocation4], 0
    // Predicated region
    $region2: #{tpu_custom_call.1} parent=1 // pred_check
      _
    $region3: #{tpu_custom_call.1} parent=1 // pred_check_branch
      %21 = sbr.rel (0) target = $region5
    $region4: #{tpu_custom_call.1} parent=1 // pred_region
      _
    $region5: #{tpu_custom_call.1} parent=1 // pred_fallthru
      _
    // Predicated region
    $region6: #{tpu_custom_call.1} parent=1 // pred_check
      _
    $region7: #{tpu_custom_call.1} parent=1 // pred_check_branch
      %23 = sbr.rel (0) target = $region9
    $region8: #{tpu_custom_call.1} parent=1 // pred_region
      _
    $region9: #{tpu_custom_call.1} parent=1 // pred_fallthru
      _
    // Predicated region
    $region10: #{tpu_custom_call.1} parent=1 // pred_check
      _
    $region11: #{tpu_custom_call.1} parent=1 // pred_check_branch
      %25 = sbr.rel (0) target = $region13
    $region12: #{tpu_custom_call.1} parent=1 // pred_region
      %s27 = ssub.s32 256, 256
      %28 = vsyncadd [#allocation3], %s27
      %s29 = sshll.u32 [#allocation2], 4
      %s30 = int_to_ptr.vmem [resolvable:$true] %s29
      %35 = dma.hbm_to_vmem [thread:$0]  %s2, 256, %s30, [#allocation3], 128, 128, 8
    $region13: #{tpu_custom_call.1} parent=1 // pred_fallthru
      _
    // Predicated region
    $region14: #{tpu_custom_call.1} parent=1 // pred_check
      _
    $region15: #{tpu_custom_call.1} parent=1 // pred_check_branch
      %37 = sbr.rel (0) target = $region17
    $region16: #{tpu_custom_call.1} parent=1 // pred_region
      _
    $region17: #{tpu_custom_call.1} parent=1 // pred_fallthru
      _
    // Predicated region
    $region18: #{tpu_custom_call.1} parent=1 // pred_check
      _
    $region19: #{tpu_custom_call.1} parent=1 // pred_check_branch
      %39 = sbr.rel (0) target = $region21
    $region20: #{tpu_custom_call.1} parent=1 // pred_region
      %s41 = ssub.s32 6144, 6144
      %42 = vsyncadd [#allocation6], %s41
      %s43 = sshll.u32 [#allocation5], 4
      %s44 = int_to_ptr.vmem [resolvable:$true] %s43
      %49 = dma.hbm_to_vmem [thread:$0]  %s4, 6144, %s44, [#allocation6], 192, 192, 12
    $region21: #{tpu_custom_call.1} parent=1 // pred_fallthru
      _
    // Predicated region
    $region22: #{tpu_custom_call.1} parent=1 // pred_check
      _
    $region23: #{tpu_custom_call.1} parent=1 // pred_check_branch
      %51 = sbr.rel (0) target = $region25
    $region24: #{tpu_custom_call.1} parent=1 // pred_region
      %s53 = ssub.s32 2048, 2048
      %54 = vsyncadd [#allocation6], %s53
      %s55 = sshll.u32 [#allocation7], 4
      %s56 = int_to_ptr.vmem [resolvable:$true] %s55
      %61 = dma.hbm_to_vmem [thread:$0]  %s5, 2048, %s56, [#allocation6], 64, 64, 4
    $region25: #{tpu_custom_call.1} parent=1 // pred_fallthru
      _
    // Predicated region
    $region26: #{tpu_custom_call.1} parent=1 // pred_check
      _
    $region27: #{tpu_custom_call.1} parent=1 // pred_check_branch
      %63 = sbr.rel (0) target = $region29
    $region28: #{tpu_custom_call.1} parent=1 // pred_region
      %s65 = ssub.s32 8192, 8192
      %66 = vsyncadd [#allocation9], %s65
      %s67 = sshll.u32 [#allocation8], 4
      %s68 = int_to_ptr.vmem [resolvable:$true] %s67
      %73 = dma.hbm_to_vmem [thread:$0]  %s6, 8192, %s68, [#allocation9], 256, 256, 16
    $region29: #{tpu_custom_call.1} parent=1 // pred_fallthru
      _
    // Predicated region
    $region30: #{tpu_custom_call.1} parent=1 // pred_check
      _
    $region31: #{tpu_custom_call.1} parent=1 // pred_check_branch
      %75 = sbr.rel (0) target = $region33
    $region32: #{tpu_custom_call.1} parent=1 // pred_region
      %s77 = ssub.s32 8192, 8192
      %78 = vsyncadd [#allocation9], %s77
      %s79 = sshll.u32 [#allocation10], 4
      %s80 = int_to_ptr.vmem [resolvable:$true] %s79
      %85 = dma.hbm_to_vmem [thread:$0]  %s7, 8192, %s80, [#allocation9], 64, 64, 4
    $region33: #{tpu_custom_call.1} parent=1 // pred_fallthru
      _
    // Predicated region
    $region34: #{tpu_custom_call.1} parent=1 // pred_check
      _
    $region35: #{tpu_custom_call.1} parent=1 // pred_check_branch
      %87 = sbr.rel (0) target = $region37
    $region36: #{tpu_custom_call.1} parent=1 // pred_region
      %s89 = ssub.s32 1024, 1024
      %90 = vsyncadd [#allocation12], %s89
      %s91 = sshll.u32 [#allocation11], 4
      %s92 = int_to_ptr.vmem [resolvable:$true] %s91
      %97 = dma.hbm_to_vmem [thread:$0]  %s8, 1024, %s92, [#allocation12], 64, 64, 4
    $region37: #{tpu_custom_call.1} parent=1 // pred_fallthru
      _
    // Predicated region
    $region38: #{tpu_custom_call.1} parent=1 // pred_check
      _
    $region39: #{tpu_custom_call.1} parent=1 // pred_check_branch
      %99 = sbr.rel (0) target = $region41
    $region40: #{tpu_custom_call.1} parent=1 // pred_region
      %s101 = ssub.s32 1024, 1024
      %102 = vsyncadd [#allocation12], %s101
      %s103 = sshll.u32 [#allocation13], 4
      %s104 = int_to_ptr.vmem [resolvable:$true] %s103
      %109 = dma.hbm_to_vmem [thread:$0]  %s9, 1024, %s104, [#allocation12], 64, 64, 4
    $region41: #{tpu_custom_call.1} parent=1 // pred_fallthru
      _
    // Predicated region
    $region42: #{tpu_custom_call.1} parent=1 // pred_check
      _
    $region43: #{tpu_custom_call.1} parent=1 // pred_check_branch
      %111 = sbr.rel (0) target = $region45
    $region44: #{tpu_custom_call.1} parent=1 // pred_region
      %112 = dma.done [#allocation3], 256
    $region45: #{tpu_custom_call.1} parent=1 // pred_fallthru
      _
    // Predicated region
    $region46: #{tpu_custom_call.1} parent=1 // pred_check
      _
    $region47: #{tpu_custom_call.1} parent=1 // pred_check_branch
      %114 = sbr.rel (0) target = $region49
    $region48: #{tpu_custom_call.1} parent=1 // pred_region
      %115 = dma.done [#allocation6], 6144
    $region49: #{tpu_custom_call.1} parent=1 // pred_fallthru
      _
    // Predicated region
    $region50: #{tpu_custom_call.1} parent=1 // pred_check
      _
    $region51: #{tpu_custom_call.1} parent=1 // pred_check_branch
      %117 = sbr.rel (0) target = $region53
    $region52: #{tpu_custom_call.1} parent=1 // pred_region
      %118 = dma.done [#allocation6], 2048
    $region53: #{tpu_custom_call.1} parent=1 // pred_fallthru
      _
    // Predicated region
    $region54: #{tpu_custom_call.1} parent=1 // pred_check
      _
    $region55: #{tpu_custom_call.1} parent=1 // pred_check_branch
      %120 = sbr.rel (0) target = $region57
    $region56: #{tpu_custom_call.1} parent=1 // pred_region
      %121 = dma.done [#allocation9], 8192
    $region57: #{tpu_custom_call.1} parent=1 // pred_fallthru
      _
    // Predicated region
    $region58: #{tpu_custom_call.1} parent=1 // pred_check
      _
    $region59: #{tpu_custom_call.1} parent=1 // pred_check_branch
      %123 = sbr.rel (0) target = $region61
    $region60: #{tpu_custom_call.1} parent=1 // pred_region
      %124 = dma.done [#allocation9], 8192
    $region61: #{tpu_custom_call.1} parent=1 // pred_fallthru
      _
    // Predicated region
    $region62: #{tpu_custom_call.1} parent=1 // pred_check
      _
    $region63: #{tpu_custom_call.1} parent=1 // pred_check_branch
      %126 = sbr.rel (0) target = $region65
    $region64: #{tpu_custom_call.1} parent=1 // pred_region
      %127 = dma.done [#allocation12], 1024
    $region65: #{tpu_custom_call.1} parent=1 // pred_fallthru
      _
    // Predicated region
    $region66: #{tpu_custom_call.1} parent=1 // pred_check
      _
    $region67: #{tpu_custom_call.1} parent=1 // pred_check_branch
      %129 = sbr.rel (0) target = $region69
    $region68: #{tpu_custom_call.1} parent=1 // pred_region
      %130 = dma.done [#allocation12], 1024
    $region69: #{tpu_custom_call.1} parent=1 // pred_fallthru
      _
    %v132 = vld [vmem:[%s0] sm:$0xff]
    %v133 = vld [vmem:[%s0 + $0x8] sm:$0xff]
    %v134 = vld [vmem:[%s1] sm:$0xff]
    %v135 = vld [vmem:[%s1 + $0x8] sm:$0xff]
    %v136 = vld [vmem:[#allocation2 + $0x2] sm:$0x1]
    %v137 = vlaneseq
    %v138 = vshrl.u32 %v137, 7
    %v139 = vsub.s32 0, %v138
    %v140 = vrot.slane %v136, %v139
    %v141 = vadd.f32 %v134, %v140
    %v142 = vadd.f32 %v135, %v140
    %v143 = vld [vmem:[#allocation2] sm:$0x1]
    %145 = vset.pattern.permute.xlu0 0
    %146 = vperm.xlu0 %145, %v132
    %v147 = vpop.permute.xlu0 %146
    %150 = vset.pattern.permute.xlu0 0
    %151 = vperm.xlu0 %150, %v133
    %v152 = vpop.permute.xlu0 %151
    %v154 = vlaneseq
    %v155 = vshrl.u32 %v154, 7
    %v156 = vsub.s32 0, %v155
    %v157 = vrot.slane %v143, %v156
    %v158 = vmul.f32 %v147, %v157
    %v159 = vmul.f32 %v152, %v157
    %v160 = vadd.f32 %v141, %v158
    %v161 = vadd.f32 %v142, %v159
    %v162 = vld [vmem:[#allocation2 + $0x1] sm:$0x1]
    %163 = vset.pattern.permute.xlu0 1
    %164 = vperm.xlu0 %163, %v132
    %v165 = vpop.permute.xlu0 %164
    %167 = vset.pattern.permute.xlu0 1
    %168 = vperm.xlu0 %167, %v133
    %v169 = vpop.permute.xlu0 %168
    %v171 = vlaneseq
    %v172 = vshrl.u32 %v171, 7
    %v173 = vsub.s32 0, %v172
    %v174 = vrot.slane %v162, %v173
    %v175 = vmul.f32 %v165, %v174
    %v176 = vmul.f32 %v169, %v174
    %v177 = vadd.f32 %v160, %v175
    %v178 = vadd.f32 %v161, %v176
    %v179 = vpack.c.bf16 %v178, %v177
    %v180 = vld [vmem:[#allocation5] sm:$0xff]
    %v181 = vld [vmem:[#allocation5 + $0x8] sm:$0xf]
    %v182 = vld [vmem:[#allocation5 + $0xc] sm:$0xff]
    %v183 = vld [vmem:[#allocation5 + $0x14] sm:$0xf]
    %v184 = vld [vmem:[#allocation5 + $0x18] sm:$0xff]
    %v185 = vld [vmem:[#allocation5 + $0x20] sm:$0xf]
    %v186 = vld [vmem:[#allocation5 + $0x24] sm:$0xff]
    %v187 = vld [vmem:[#allocation5 + $0x2c] sm:$0xf]
    %v188 = vld [vmem:[#allocation5 + $0x30] sm:$0xff]
    %v189 = vld [vmem:[#allocation5 + $0x38] sm:$0xf]
    %v190 = vld [vmem:[#allocation5 + $0x3c] sm:$0xff]
    %v191 = vld [vmem:[#allocation5 + $0x44] sm:$0xf]
    %v192 = vld [vmem:[#allocation5 + $0x48] sm:$0xff]
    %v193 = vld [vmem:[#allocation5 + $0x50] sm:$0xf]
    %v194 = vld [vmem:[#allocation5 + $0x54] sm:$0xff]
    %v195 = vld [vmem:[#allocation5 + $0x5c] sm:$0xf]
    %v196 = vld [vmem:[#allocation5 + $0x60] sm:$0xff]
    %v197 = vld [vmem:[#allocation5 + $0x68] sm:$0xf]
    %v198 = vld [vmem:[#allocation5 + $0x6c] sm:$0xff]
    %v199 = vld [vmem:[#allocation5 + $0x74] sm:$0xf]
    %v200 = vld [vmem:[#allocation5 + $0x78] sm:$0xff]
    %v201 = vld [vmem:[#allocation5 + $0x80] sm:$0xf]
    %v202 = vld [vmem:[#allocation5 + $0x84] sm:$0xff]
    %v203 = vld [vmem:[#allocation5 + $0x8c] sm:$0xf]
    %v204 = vld [vmem:[#allocation5 + $0x90] sm:$0xff]
    %v205 = vld [vmem:[#allocation5 + $0x98] sm:$0xf]
    %v206 = vld [vmem:[#allocation5 + $0x9c] sm:$0xff]
    %v207 = vld [vmem:[#allocation5 + $0xa4] sm:$0xf]
    %v208 = vld [vmem:[#allocation5 + $0xa8] sm:$0xff]
    %v209 = vld [vmem:[#allocation5 + $0xb0] sm:$0xf]
    %v210 = vld [vmem:[#allocation5 + $0xb4] sm:$0xff]
    %v211 = vld [vmem:[#allocation5 + $0xbc] sm:$0xf]
    %v244 = vunpack.c.l.b16 %v180
    %v245 = vunpack.c.h.b16 %v180
    %v246 = vunpack.c.l.b16 %v181
    %v247 = vunpack.c.l.b16 %v182
    %v248 = vunpack.c.h.b16 %v182
    %v249 = vunpack.c.l.b16 %v183
    %v250 = vunpack.c.l.b16 %v184
    %v251 = vunpack.c.h.b16 %v184
    %v252 = vunpack.c.l.b16 %v185
    %v253 = vunpack.c.l.b16 %v186
    %v254 = vunpack.c.h.b16 %v186
    %v255 = vunpack.c.l.b16 %v187
    %v256 = vunpack.c.l.b16 %v188
    %v257 = vunpack.c.h.b16 %v188
    %v258 = vunpack.c.l.b16 %v189
    %v259 = vunpack.c.l.b16 %v190
    %v260 = vunpack.c.h.b16 %v190
    %v261 = vunpack.c.l.b16 %v191
    %v262 = vunpack.c.l.b16 %v192
    %v263 = vunpack.c.h.b16 %v192
    %v264 = vunpack.c.l.b16 %v193
    %v265 = vunpack.c.l.b16 %v194
    %v266 = vunpack.c.h.b16 %v194
    %v267 = vunpack.c.l.b16 %v195
    %v268 = vunpack.c.l.b16 %v196
    %v269 = vunpack.c.h.b16 %v196
    %v270 = vunpack.c.l.b16 %v197
    %v271 = vunpack.c.l.b16 %v198
    %v272 = vunpack.c.h.b16 %v198
    %v273 = vunpack.c.l.b16 %v199
    %v274 = vunpack.c.l.b16 %v200
    %v275 = vunpack.c.h.b16 %v200
    %v276 = vunpack.c.l.b16 %v201
    %v277 = vunpack.c.l.b16 %v202
    %v278 = vunpack.c.h.b16 %v202
    %v279 = vunpack.c.l.b16 %v203
    %v280 = vunpack.c.l.b16 %v204
    %v281 = vunpack.c.h.b16 %v204
    %v282 = vunpack.c.l.b16 %v205
    %v283 = vunpack.c.l.b16 %v206
    %v284 = vunpack.c.h.b16 %v206
    %v285 = vunpack.c.l.b16 %v207
    %v286 = vunpack.c.l.b16 %v208
    %v287 = vunpack.c.h.b16 %v208
    %v288 = vunpack.c.l.b16 %v209
    %v289 = vunpack.c.l.b16 %v210
    %v290 = vunpack.c.h.b16 %v210
    %v291 = vunpack.c.l.b16 %v211
    %v292 = vpack.c.b16 %v247, %v244
    %v293 = vpack.c.b16 %v248, %v245
    %v294 = vpack.c.b16 %v249, %v246
    %v295 = vpack.c.b16 %v253, %v250
    %v296 = vpack.c.b16 %v254, %v251
    %v297 = vpack.c.b16 %v255, %v252
    %v298 = vpack.c.b16 %v259, %v256
    %v299 = vpack.c.b16 %v260, %v257
    %v300 = vpack.c.b16 %v261, %v258
    %v301 = vpack.c.b16 %v265, %v262
    %v302 = vpack.c.b16 %v266, %v263
    %v303 = vpack.c.b16 %v267, %v264
    %v304 = vpack.c.b16 %v271, %v268
    %v305 = vpack.c.b16 %v272, %v269
    %v306 = vpack.c.b16 %v273, %v270
    %v307 = vpack.c.b16 %v277, %v274
    %v308 = vpack.c.b16 %v278, %v275
    %v309 = vpack.c.b16 %v279, %v276
    %v310 = vpack.c.b16 %v283, %v280
    %v311 = vpack.c.b16 %v284, %v281
    %v312 = vpack.c.b16 %v285, %v282
    %v313 = vpack.c.b16 %v289, %v286
    %v314 = vpack.c.b16 %v290, %v287
    %v315 = vpack.c.b16 %v291, %v288
    %340 = vmatprep.subr.bf16.mxu0 %v293
    %341 = vmatpush1.bf16.msra.mxu0 %v292
    %342 = vmatprep.subr.bf16.mxu0 %v296
    %343 = vmatpush1.bf16.msra.mxu0 %v295
    %344 = vmatprep.subr.bf16.mxu0 %v299
    %345 = vmatpush1.bf16.msra.mxu0 %v298
    %346 = vmatprep.subr.bf16.mxu0 %v302
    %347 = vmatpush1.bf16.msra.mxu0 %v301
    %348 = vmatprep.subr.bf16.mxu0 %v305
    %349 = vmatpush1.bf16.msra.mxu0 %v304
    %350 = vmatprep.subr.bf16.mxu0 %v308
    %351 = vmatpush1.bf16.msra.mxu0 %v307
    %352 = vmatprep.subr.bf16.mxu0 %v311
    %353 = vmatpush1.bf16.msra.mxu0 %v310
    %354 = vmatprep.subr.bf16.mxu0 %v314
    %355 = vmatpush1.bf16.msra.mxu0 %v313
    %356 = vmatprep.subr.bf16.mxu0 0
    %357 = vmatpush1.bf16.msra.mxu0 0
    %358 = vmatprep.subr.bf16.mxu0 0
    %359 = vmatpush1.bf16.msra.mxu0 0
    %360 = vmatprep.subr.bf16.mxu0 0
    %361 = vmatpush1.bf16.msra.mxu0 0
    %362 = vmatprep.subr.bf16.mxu0 0
    %363 = vmatpush1.bf16.msra.mxu0 0
    %364 = vmatprep.subr.bf16.mxu0 0
    %365 = vmatpush1.bf16.msra.mxu0 0
    %366 = vmatprep.subr.bf16.mxu0 0
    %367 = vmatpush1.bf16.msra.mxu0 0
    %368 = vmatprep.subr.bf16.mxu0 0
    %369 = vmatpush1.bf16.msra.mxu0 0
    %370 = vmatprep.subr.bf16.mxu0 0
    %371 = vmatpush1.bf16.msra.mxu0 0
    %372 = vmatprep.mubr.bf16.mxu0 0
    %373 = vmatmul.mubr.bf16.gmra.mrb[0].mxu0 %v179
    %v374 = vpop.f32.mrb[0].mxu0
    %v375 = vadd.f32 0.0, %v374
    %v376 = vpop.f32.mrb[0].mxu0
    %v377 = vadd.f32 0.0, %v376
    %v378 = vpop.f32.mrb[0].mxu0
    %v379 = vadd.f32 0.0, %v378
    %v380 = vpop.f32.mrb[0].mxu0
    %v381 = vadd.f32 0.0, %v380
    %382 = vdwg.mxu0
    %383 = vmatprep.subr.bf16.mxu0 0
    %384 = vmatpush1.bf16.msra.mxu0 %v294
    %385 = vmatprep.subr.bf16.mxu0 0
    %386 = vmatpush1.bf16.msra.mxu0 %v297
    %387 = vmatprep.subr.bf16.mxu0 0
    %388 = vmatpush1.bf16.msra.mxu0 %v300
    %389 = vmatprep.subr.bf16.mxu0 0
    %390 = vmatpush1.bf16.msra.mxu0 %v303
    %391 = vmatprep.subr.bf16.mxu0 0
    %392 = vmatpush1.bf16.msra.mxu0 %v306
    %393 = vmatprep.subr.bf16.mxu0 0
    %394 = vmatpush1.bf16.msra.mxu0 %v309
    %395 = vmatprep.subr.bf16.mxu0 0
    %396 = vmatpush1.bf16.msra.mxu0 %v312
    %397 = vmatprep.subr.bf16.mxu0 0
    %398 = vmatpush1.bf16.msra.mxu0 %v315
    %399 = vmatprep.subr.bf16.mxu0 0
    %400 = vmatpush1.bf16.msra.mxu0 0
    %401 = vmatprep.subr.bf16.mxu0 0
    %402 = vmatpush1.bf16.msra.mxu0 0
    %403 = vmatprep.subr.bf16.mxu0 0
    %404 = vmatpush1.bf16.msra.mxu0 0
    %405 = vmatprep.subr.bf16.mxu0 0
    %406 = vmatpush1.bf16.msra.mxu0 0
    %407 = vmatprep.subr.bf16.mxu0 0
    %408 = vmatpush1.bf16.msra.mxu0 0
    %409 = vmatprep.subr.bf16.mxu0 0
    %410 = vmatpush1.bf16.msra.mxu0 0
    %411 = vmatprep.subr.bf16.mxu0 0
    %412 = vmatpush1.bf16.msra.mxu0 0
    %413 = vmatprep.subr.bf16.mxu0 0
    %414 = vmatpush1.bf16.msra.mxu0 0
    %415 = vmatprep.mubr.bf16.mxu0 0
    %416 = vmatmul.mubr.bf16.gmra.mrb[0].mxu0 %v179
    %v417 = vpop.f32.mrb[0].mxu0
    %v418 = vadd.f32 0.0, %v417
    %v419 = vpop.f32.mrb[0].mxu0
    %v420 = vpop.f32.mrb[0].mxu0
    %v421 = vadd.f32 0.0, %v420
    %v422 = vpop.f32.mrb[0].mxu0
    %423 = vdwg.mxu0
    %v424 = vpack.c.bf16 %v375, %v375
    %v425 = vpack.c.bf16 %v379, %v379
    %v426 = vpack.c.bf16 %v377, %v377
    %v427 = vpack.c.bf16 %v381, %v381
    %v428 = vpack.c.bf16 %v418, %v418
    %v429 = vpack.c.bf16 %v421, %v421
    %430 = vmatprep.subr.bf16.mxu0 0
    %431 = vmatpush1.bf16.xpose.msra.mxu0 %v426
    %432 = vmatprep.subr.bf16.mxu0 0
    %433 = vmatpush1.bf16.xpose.msra.mxu0 0
    %434 = vmatprep.subr.bf16.mxu0 0
    %435 = vmatpush1.bf16.xpose.msra.mxu0 0
    %436 = vmatprep.subr.bf16.mxu0 0
    %437 = vmatpush1.bf16.xpose.msra.mxu0 0
    %438 = vmatprep.subr.bf16.mxu0 0
    %439 = vmatpush1.bf16.xpose.msra.mxu0 0
    %440 = vmatprep.subr.bf16.mxu0 0
    %441 = vmatpush1.bf16.xpose.msra.mxu0 0
    %442 = vmatprep.subr.bf16.mxu0 0
    %443 = vmatpush1.bf16.xpose.msra.mxu0 0
    %444 = vmatprep.subr.bf16.mxu0 0
    %445 = vmatpush1.bf16.xpose.msra.mxu0 0
    %446 = vmatprep.subr.bf16.mxu0 0
    %447 = vmatpush1.bf16.xpose.msra.mxu0 0
    %448 = vmatprep.subr.bf16.mxu0 0
    %449 = vmatpush1.bf16.xpose.msra.mxu0 0
    %450 = vmatprep.subr.bf16.mxu0 0
    %451 = vmatpush1.bf16.xpose.msra.mxu0 0
    %452 = vmatprep.subr.bf16.mxu0 0
    %453 = vmatpush1.bf16.xpose.msra.mxu0 0
    %454 = vmatprep.subr.bf16.mxu0 0
    %455 = vmatpush1.bf16.xpose.msra.mxu0 0
    %456 = vmatprep.subr.bf16.mxu0 0
    %457 = vmatpush1.bf16.xpose.msra.mxu0 0
    %458 = vmatprep.subr.bf16.mxu0 0
    %459 = vmatpush1.bf16.xpose.msra.mxu0 0
    %460 = vmatprep.subr.bf16.mxu0 0
    %461 = vmatpush1.bf16.xpose.msra.mxu0 0
    %462 = vmatprep.mubr.bf16.mxu0 0
    %463 = vmatmul.mubr.bf16.gmra.mrb[0].mxu0 %v424
    %v464 = vpop.f32.mrb[0].mxu0
    %v465 = vadd.f32 0.0, %v464
    %v466 = vpop.f32.mrb[0].mxu0
    %v467 = vpop.f32.mrb[0].mxu0
    %v468 = vpop.f32.mrb[0].mxu0
    %469 = vdwg.mxu0
    %470 = vmatprep.subr.bf16.mxu0 0
    %471 = vmatpush1.bf16.xpose.msra.mxu0 %v427
    %472 = vmatprep.subr.bf16.mxu0 0
    %473 = vmatpush1.bf16.xpose.msra.mxu0 0
    %474 = vmatprep.subr.bf16.mxu0 0
    %475 = vmatpush1.bf16.xpose.msra.mxu0 0
    %476 = vmatprep.subr.bf16.mxu0 0
    %477 = vmatpush1.bf16.xpose.msra.mxu0 0
    %478 = vmatprep.subr.bf16.mxu0 0
    %479 = vmatpush1.bf16.xpose.msra.mxu0 0
    %480 = vmatprep.subr.bf16.mxu0 0
    %481 = vmatpush1.bf16.xpose.msra.mxu0 0
    %482 = vmatprep.subr.bf16.mxu0 0
    %483 = vmatpush1.bf16.xpose.msra.mxu0 0
    %484 = vmatprep.subr.bf16.mxu0 0
    %485 = vmatpush1.bf16.xpose.msra.mxu0 0
    %486 = vmatprep.subr.bf16.mxu0 0
    %487 = vmatpush1.bf16.xpose.msra.mxu0 0
    %488 = vmatprep.subr.bf16.mxu0 0
    %489 = vmatpush1.bf16.xpose.msra.mxu0 0
    %490 = vmatprep.subr.bf16.mxu0 0
    %491 = vmatpush1.bf16.xpose.msra.mxu0 0
    %492 = vmatprep.subr.bf16.mxu0 0
    %493 = vmatpush1.bf16.xpose.msra.mxu0 0
    %494 = vmatprep.subr.bf16.mxu0 0
    %495 = vmatpush1.bf16.xpose.msra.mxu0 0
    %496 = vmatprep.subr.bf16.mxu0 0
    %497 = vmatpush1.bf16.xpose.msra.mxu0 0
    %498 = vmatprep.subr.bf16.mxu0 0
    %499 = vmatpush1.bf16.xpose.msra.mxu0 0
    %500 = vmatprep.subr.bf16.mxu0 0
    %501 = vmatpush1.bf16.xpose.msra.mxu0 0
    %502 = vmatprep.mubr.bf16.mxu0 0
    %503 = vmatmul.mubr.bf16.gmra.mrb[0].mxu0 %v425
    %v504 = vpop.f32.mrb[0].mxu0
    %v505 = vadd.f32 0.0, %v504
    %v506 = vpop.f32.mrb[0].mxu0
    %v507 = vpop.f32.mrb[0].mxu0
    %v508 = vpop.f32.mrb[0].mxu0
    %509 = vdwg.mxu0
    %vm510 = vcmask 64512
    %v511 = vsel %vm510, %v465, -inf
    %512 = vmax.xlane.f32.xlu0 %v511
    %v513 = vpop.xlane.xlu0 %512
    %v514 = vsel %vm510, %v505, -inf
    %515 = vmax.xlane.f32.xlu0 %v514
    %v516 = vpop.xlane.xlu0 %515
    %v517 = vsub.f32 %v465, %v513
    %v518 = vsub.f32 %v505, %v516
    %v519 = vmul.f32 %v517, 1.442695
    %v520 = vpow.pop %v519
    %v521 = vmul.f32 %v518, 1.442695
    %v522 = vpow.pop %v521
    %v523 = vsel %vm510, %v520, 0.0
    %524 = vadd.xlane.f32.xlu0 %v523
    %v525 = vpop.xlane.xlu0 %524
    %v526 = vsel %vm510, %v522, 0.0
    %527 = vadd.xlane.f32.xlu0 %v526
    %v528 = vpop.xlane.xlu0 %527
    %v529 = vrcp.pop %v525
    %v530 = vrcp.pop %v528
    %v531 = vmul.f32 %v520, %v529
    %v532 = vmul.f32 %v522, %v530
    %v533 = vpack.c.bf16 %v531, %v531
    %v534 = vpack.c.bf16 %v532, %v532
    %v536 = vsel %vm510, %v533, 0
    %vm538 = vcmask 1043456
    %v540 = vsel %vm538, %v428, 0
    %542 = vmatprep.subr.bf16.mxu0 0
    %543 = vmatpush1.bf16.msra.mxu0 %v540
    %544 = vmatprep.subr.bf16.mxu0 0
    %545 = vmatpush1.bf16.msra.mxu0 0
    %546 = vmatprep.subr.bf16.mxu0 0
    %547 = vmatpush1.bf16.msra.mxu0 0
    %548 = vmatprep.subr.bf16.mxu0 0
    %549 = vmatpush1.bf16.msra.mxu0 0
    %550 = vmatprep.subr.bf16.mxu0 0
    %551 = vmatpush1.bf16.msra.mxu0 0
    %552 = vmatprep.subr.bf16.mxu0 0
    %553 = vmatpush1.bf16.msra.mxu0 0
    %554 = vmatprep.subr.bf16.mxu0 0
    %555 = vmatpush1.bf16.msra.mxu0 0
    %556 = vmatprep.subr.bf16.mxu0 0
    %557 = vmatpush1.bf16.msra.mxu0 0
    %558 = vmatprep.subr.bf16.mxu0 0
    %559 = vmatpush1.bf16.msra.mxu0 0
    %560 = vmatprep.subr.bf16.mxu0 0
    %561 = vmatpush1.bf16.msra.mxu0 0
    %562 = vmatprep.subr.bf16.mxu0 0
    %563 = vmatpush1.bf16.msra.mxu0 0
    %564 = vmatprep.subr.bf16.mxu0 0
    %565 = vmatpush1.bf16.msra.mxu0 0
    %566 = vmatprep.subr.bf16.mxu0 0
    %567 = vmatpush1.bf16.msra.mxu0 0
    %568 = vmatprep.subr.bf16.mxu0 0
    %569 = vmatpush1.bf16.msra.mxu0 0
    %570 = vmatprep.subr.bf16.mxu0 0
    %571 = vmatpush1.bf16.msra.mxu0 0
    %572 = vmatprep.subr.bf16.mxu0 0
    %573 = vmatpush1.bf16.msra.mxu0 0
    %574 = vmatprep.mubr.bf16.mxu0 0
    %575 = vmatmul.mubr.bf16.gmra.mrb[0].mxu0 %v536
    %v576 = vpop.f32.mrb[0].mxu0
    %v577 = vadd.f32 0.0, %v576
    %v578 = vpop.f32.mrb[0].mxu0
    %v579 = vpop.f32.mrb[0].mxu0
    %v580 = vpop.f32.mrb[0].mxu0
    %581 = vdwg.mxu0
    %v583 = vsel %vm510, %v534, 0
    %v586 = vsel %vm538, %v429, 0
    %588 = vmatprep.subr.bf16.mxu0 0
    %589 = vmatpush1.bf16.msra.mxu0 %v586
    %590 = vmatprep.subr.bf16.mxu0 0
    %591 = vmatpush1.bf16.msra.mxu0 0
    %592 = vmatprep.subr.bf16.mxu0 0
    %593 = vmatpush1.bf16.msra.mxu0 0
    %594 = vmatprep.subr.bf16.mxu0 0
    %595 = vmatpush1.bf16.msra.mxu0 0
    %596 = vmatprep.subr.bf16.mxu0 0
    %597 = vmatpush1.bf16.msra.mxu0 0
    %598 = vmatprep.subr.bf16.mxu0 0
    %599 = vmatpush1.bf16.msra.mxu0 0
    %600 = vmatprep.subr.bf16.mxu0 0
    %601 = vmatpush1.bf16.msra.mxu0 0
    %602 = vmatprep.subr.bf16.mxu0 0
    %603 = vmatpush1.bf16.msra.mxu0 0
    %604 = vmatprep.subr.bf16.mxu0 0
    %605 = vmatpush1.bf16.msra.mxu0 0
    %606 = vmatprep.subr.bf16.mxu0 0
    %607 = vmatpush1.bf16.msra.mxu0 0
    %608 = vmatprep.subr.bf16.mxu0 0
    %609 = vmatpush1.bf16.msra.mxu0 0
    %610 = vmatprep.subr.bf16.mxu0 0
    %611 = vmatpush1.bf16.msra.mxu0 0
    %612 = vmatprep.subr.bf16.mxu0 0
    %613 = vmatpush1.bf16.msra.mxu0 0
    %614 = vmatprep.subr.bf16.mxu0 0
    %615 = vmatpush1.bf16.msra.mxu0 0
    %616 = vmatprep.subr.bf16.mxu0 0
    %617 = vmatpush1.bf16.msra.mxu0 0
    %618 = vmatprep.subr.bf16.mxu0 0
    %619 = vmatpush1.bf16.msra.mxu0 0
    %620 = vmatprep.mubr.bf16.mxu0 0
    %621 = vmatmul.mubr.bf16.gmra.mrb[0].mxu0 %v583
    %v622 = vpop.f32.mrb[0].mxu0
    %v623 = vadd.f32 0.0, %v622
    %v624 = vpop.f32.mrb[0].mxu0
    %v625 = vpop.f32.mrb[0].mxu0
    %v626 = vpop.f32.mrb[0].mxu0
    %627 = vdwg.mxu0
    %v628 = vpack.c.bf16 %v623, %v577
    %v629 = vld [vmem:[#allocation7] sm:$0xf]
    %v630 = vld [vmem:[#allocation7 + $0x4] sm:$0xf]
    %v631 = vld [vmem:[#allocation7 + $0x8] sm:$0xf]
    %v632 = vld [vmem:[#allocation7 + $0xc] sm:$0xf]
    %v633 = vld [vmem:[#allocation7 + $0x10] sm:$0xf]
    %v634 = vld [vmem:[#allocation7 + $0x14] sm:$0xf]
    %v635 = vld [vmem:[#allocation7 + $0x18] sm:$0xf]
    %v636 = vld [vmem:[#allocation7 + $0x1c] sm:$0xf]
    %v637 = vld [vmem:[#allocation7 + $0x20] sm:$0xf]
    %v638 = vld [vmem:[#allocation7 + $0x24] sm:$0xf]
    %v639 = vld [vmem:[#allocation7 + $0x28] sm:$0xf]
    %v640 = vld [vmem:[#allocation7 + $0x2c] sm:$0xf]
    %v641 = vld [vmem:[#allocation7 + $0x30] sm:$0xf]
    %v642 = vld [vmem:[#allocation7 + $0x34] sm:$0xf]
    %v643 = vld [vmem:[#allocation7 + $0x38] sm:$0xf]
    %v644 = vld [vmem:[#allocation7 + $0x3c] sm:$0xf]
    %v661 = vunpack.c.l.b16 %v629
    %v662 = vunpack.c.l.b16 %v630
    %v663 = vunpack.c.l.b16 %v631
    %v664 = vunpack.c.l.b16 %v632
    %v665 = vunpack.c.l.b16 %v633
    %v666 = vunpack.c.l.b16 %v634
    %v667 = vunpack.c.l.b16 %v635
    %v668 = vunpack.c.l.b16 %v636
    %v669 = vunpack.c.l.b16 %v637
    %v670 = vunpack.c.l.b16 %v638
    %v671 = vunpack.c.l.b16 %v639
    %v672 = vunpack.c.l.b16 %v640
    %v673 = vunpack.c.l.b16 %v641
    %v674 = vunpack.c.l.b16 %v642
    %v675 = vunpack.c.l.b16 %v643
    %v676 = vunpack.c.l.b16 %v644
    %v677 = vpack.c.b16 %v662, %v661
    %v678 = vpack.c.b16 %v664, %v663
    %v679 = vpack.c.b16 %v666, %v665
    %v680 = vpack.c.b16 %v668, %v667
    %v681 = vpack.c.b16 %v670, %v669
    %v682 = vpack.c.b16 %v672, %v671
    %v683 = vpack.c.b16 %v674, %v673
    %v684 = vpack.c.b16 %v676, %v675
    %693 = vmatprep.subr.bf16.mxu0 0
    %694 = vmatpush1.bf16.msra.mxu0 %v677
    %695 = vmatprep.subr.bf16.mxu0 0
    %696 = vmatpush1.bf16.msra.mxu0 %v678
    %697 = vmatprep.subr.bf16.mxu0 0
    %698 = vmatpush1.bf16.msra.mxu0 %v679
    %699 = vmatprep.subr.bf16.mxu0 0
    %700 = vmatpush1.bf16.msra.mxu0 %v680
    %701 = vmatprep.subr.bf16.mxu0 0
    %702 = vmatpush1.bf16.msra.mxu0 %v681
    %703 = vmatprep.subr.bf16.mxu0 0
    %704 = vmatpush1.bf16.msra.mxu0 %v682
    %705 = vmatprep.subr.bf16.mxu0 0
    %706 = vmatpush1.bf16.msra.mxu0 %v683
    %707 = vmatprep.subr.bf16.mxu0 0
    %708 = vmatpush1.bf16.msra.mxu0 %v684
    %709 = vmatprep.subr.bf16.mxu0 0
    %710 = vmatpush1.bf16.msra.mxu0 0
    %711 = vmatprep.subr.bf16.mxu0 0
    %712 = vmatpush1.bf16.msra.mxu0 0
    %713 = vmatprep.subr.bf16.mxu0 0
    %714 = vmatpush1.bf16.msra.mxu0 0
    %715 = vmatprep.subr.bf16.mxu0 0
    %716 = vmatpush1.bf16.msra.mxu0 0
    %717 = vmatprep.subr.bf16.mxu0 0
    %718 = vmatpush1.bf16.msra.mxu0 0
    %719 = vmatprep.subr.bf16.mxu0 0
    %720 = vmatpush1.bf16.msra.mxu0 0
    %721 = vmatprep.subr.bf16.mxu0 0
    %722 = vmatpush1.bf16.msra.mxu0 0
    %723 = vmatprep.subr.bf16.mxu0 0
    %724 = vmatpush1.bf16.msra.mxu0 0
    %725 = vmatprep.mubr.bf16.mxu0 0
    %726 = vmatmul.mubr.bf16.gmra.mrb[0].mxu0 %v628
    %v727 = vpop.f32.mrb[0].mxu0
    %v728 = vadd.f32 0.0, %v727
    %v729 = vpop.f32.mrb[0].mxu0
    %v730 = vpop.f32.mrb[0].mxu0
    %v731 = vadd.f32 0.0, %v730
    %v732 = vpop.f32.mrb[0].mxu0
    %733 = vdwg.mxu0
    %v734 = vadd.f32 %v177, %v728
    %v735 = vadd.f32 %v178, %v731
    %v736 = vld [vmem:[#allocation2 + $0x3] sm:$0x1]
    %v737 = vld [vmem:[#allocation2 + $0x4] sm:$0x1]
    %v738 = vrot.slane %v734, 4
    %v739 = vadd.f32 %v734, %v738
    %v740 = vrot.slane %v739, 2
    %v741 = vadd.f32 %v739, %v740
    %v742 = vrot.slane %v741, 1
    %v743 = vadd.f32 %v741, %v742
    %v744 = vrot.slane %v735, 4
    %v745 = vadd.f32 %v735, %v744
    %v746 = vrot.slane %v745, 2
    %v747 = vadd.f32 %v745, %v746
    %v748 = vrot.slane %v747, 1
    %v749 = vadd.f32 %v747, %v748
    %v750 = vrcp.pop 8.0
    %v751 = vmul.f32 %v743, %v750
    %v752 = vmul.f32 %v749, %v750
    %v753 = vsub.f32 %v734, %v751
    %v754 = vsub.f32 %v735, %v752
    %v755 = vmul.f32 %v753, %v753
    %v756 = vmul.f32 %v754, %v754
    %v757 = vrot.slane %v755, 4
    %v758 = vadd.f32 %v755, %v757
    %v759 = vrot.slane %v758, 2
    %v760 = vadd.f32 %v758, %v759
    %v761 = vrot.slane %v760, 1
    %v762 = vadd.f32 %v760, %v761
    %v763 = vrot.slane %v756, 4
    %v764 = vadd.f32 %v756, %v763
    %v765 = vrot.slane %v764, 2
    %v766 = vadd.f32 %v764, %v765
    %v767 = vrot.slane %v766, 1
    %v768 = vadd.f32 %v766, %v767
    %v769 = vmul.f32 %v762, %v750
    %v770 = vmul.f32 %v768, %v750
    %v771 = vadd.f32 %v769, 1e-05
    %v772 = vadd.f32 %v770, 1e-05
    %v773 = vrsqrt.pop %v771
    %v774 = vrsqrt.pop %v772
    %v775 = vmul.f32 %v753, %v773
    %v776 = vmul.f32 %v754, %v774
    %v777 = vlaneseq
    %v778 = vshrl.u32 %v777, 7
    %v779 = vsub.s32 0, %v778
    %v780 = vrot.slane %v736, %v779
    %v781 = vmul.f32 %v775, %v780
    %v782 = vmul.f32 %v776, %v780
    %v783 = vlaneseq
    %v784 = vshrl.u32 %v783, 7
    %v785 = vsub.s32 0, %v784
    %v786 = vrot.slane %v737, %v785
    %v787 = vadd.f32 %v781, %v786
    %v788 = vadd.f32 %v782, %v786
    %v789 = vpack.c.bf16 %v788, %v787
    %v790 = vld [vmem:[#allocation8] sm:$0xff]
    %v791 = vld [vmem:[#allocation8 + $0x8] sm:$0xff]
    %v792 = vld [vmem:[#allocation8 + $0x10] sm:$0xff]
    %v793 = vld [vmem:[#allocation8 + $0x18] sm:$0xff]
    %v794 = vld [vmem:[#allocation8 + $0x20] sm:$0xff]
    %v795 = vld [vmem:[#allocation8 + $0x28] sm:$0xff]
    %v796 = vld [vmem:[#allocation8 + $0x30] sm:$0xff]
    %v797 = vld [vmem:[#allocation8 + $0x38] sm:$0xff]
    %v798 = vld [vmem:[#allocation8 + $0x40] sm:$0xff]
    %v799 = vld [vmem:[#allocation8 + $0x48] sm:$0xff]
    %v800 = vld [vmem:[#allocation8 + $0x50] sm:$0xff]
    %v801 = vld [vmem:[#allocation8 + $0x58] sm:$0xff]
    %v802 = vld [vmem:[#allocation8 + $0x60] sm:$0xff]
    %v803 = vld [vmem:[#allocation8 + $0x68] sm:$0xff]
    %v804 = vld [vmem:[#allocation8 + $0x70] sm:$0xff]
    %v805 = vld [vmem:[#allocation8 + $0x78] sm:$0xff]
    %v806 = vld [vmem:[#allocation8 + $0x80] sm:$0xff]
    %v807 = vld [vmem:[#allocation8 + $0x88] sm:$0xff]
    %v808 = vld [vmem:[#allocation8 + $0x90] sm:$0xff]
    %v809 = vld [vmem:[#allocation8 + $0x98] sm:$0xff]
    %v810 = vld [vmem:[#allocation8 + $0xa0] sm:$0xff]
    %v811 = vld [vmem:[#allocation8 + $0xa8] sm:$0xff]
    %v812 = vld [vmem:[#allocation8 + $0xb0] sm:$0xff]
    %v813 = vld [vmem:[#allocation8 + $0xb8] sm:$0xff]
    %v814 = vld [vmem:[#allocation8 + $0xc0] sm:$0xff]
    %v815 = vld [vmem:[#allocation8 + $0xc8] sm:$0xff]
    %v816 = vld [vmem:[#allocation8 + $0xd0] sm:$0xff]
    %v817 = vld [vmem:[#allocation8 + $0xd8] sm:$0xff]
    %v818 = vld [vmem:[#allocation8 + $0xe0] sm:$0xff]
    %v819 = vld [vmem:[#allocation8 + $0xe8] sm:$0xff]
    %v820 = vld [vmem:[#allocation8 + $0xf0] sm:$0xff]
    %v821 = vld [vmem:[#allocation8 + $0xf8] sm:$0xff]
    %v822 = vld [vmem:[%s3] ss:$2 sm:$0xf]
    %v824 = vlaneseq
    %v825 = vshrl.u32 %v824, 7
    %v826 = vsub.s32 0, %v825
    %v827 = vrot.slane %v822, %v826
    %v828 = vlaneseq
    %v829 = vshrl.u32 %v828, 7
    %v830 = vsub.s32 1, %v829
    %v831 = vrot.slane %v822, %v830
    %v832 = vlaneseq
    %v833 = vshrl.u32 %v832, 7
    %v834 = vsub.s32 2, %v833
    %v835 = vrot.slane %v822, %v834
    %v836 = vlaneseq
    %v837 = vshrl.u32 %v836, 7
    %v838 = vsub.s32 3, %v837
    %v839 = vrot.slane %v822, %v838
    %v876 = vunpack.c.l.b16 %v790
    %v877 = vunpack.c.h.b16 %v790
    %v878 = vunpack.c.l.b16 %v791
    %v879 = vunpack.c.h.b16 %v791
    %v880 = vunpack.c.l.b16 %v792
    %v881 = vunpack.c.h.b16 %v792
    %v882 = vunpack.c.l.b16 %v793
    %v883 = vunpack.c.h.b16 %v793
    %v884 = vunpack.c.l.b16 %v794
    %v885 = vunpack.c.h.b16 %v794
    %v886 = vunpack.c.l.b16 %v795
    %v887 = vunpack.c.h.b16 %v795
    %v888 = vunpack.c.l.b16 %v796
    %v889 = vunpack.c.h.b16 %v796
    %v890 = vunpack.c.l.b16 %v797
    %v891 = vunpack.c.h.b16 %v797
    %v892 = vunpack.c.l.b16 %v798
    %v893 = vunpack.c.h.b16 %v798
    %v894 = vunpack.c.l.b16 %v799
    %v895 = vunpack.c.h.b16 %v799
    %v896 = vunpack.c.l.b16 %v800
    %v897 = vunpack.c.h.b16 %v800
    %v898 = vunpack.c.l.b16 %v801
    %v899 = vunpack.c.h.b16 %v801
    %v900 = vunpack.c.l.b16 %v802
    %v901 = vunpack.c.h.b16 %v802
    %v902 = vunpack.c.l.b16 %v803
    %v903 = vunpack.c.h.b16 %v803
    %v904 = vunpack.c.l.b16 %v804
    %v905 = vunpack.c.h.b16 %v804
    %v906 = vunpack.c.l.b16 %v805
    %v907 = vunpack.c.h.b16 %v805
    %v908 = vunpack.c.l.b16 %v806
    %v909 = vunpack.c.h.b16 %v806
    %v910 = vunpack.c.l.b16 %v807
    %v911 = vunpack.c.h.b16 %v807
    %v912 = vunpack.c.l.b16 %v808
    %v913 = vunpack.c.h.b16 %v808
    %v914 = vunpack.c.l.b16 %v809
    %v915 = vunpack.c.h.b16 %v809
    %v916 = vunpack.c.l.b16 %v810
    %v917 = vunpack.c.h.b16 %v810
    %v918 = vunpack.c.l.b16 %v811
    %v919 = vunpack.c.h.b16 %v811
    %v920 = vunpack.c.l.b16 %v812
    %v921 = vunpack.c.h.b16 %v812
    %v922 = vunpack.c.l.b16 %v813
    %v923 = vunpack.c.h.b16 %v813
    %v924 = vunpack.c.l.b16 %v814
    %v925 = vunpack.c.h.b16 %v814
    %v926 = vunpack.c.l.b16 %v815
    %v927 = vunpack.c.h.b16 %v815
    %v928 = vunpack.c.l.b16 %v816
    %v929 = vunpack.c.h.b16 %v816
    %v930 = vunpack.c.l.b16 %v817
    %v931 = vunpack.c.h.b16 %v817
    %v932 = vunpack.c.l.b16 %v818
    %v933 = vunpack.c.h.b16 %v818
    %v934 = vunpack.c.l.b16 %v819
    %v935 = vunpack.c.h.b16 %v819
    %v936 = vunpack.c.l.b16 %v820
    %v937 = vunpack.c.h.b16 %v820
    %v938 = vunpack.c.l.b16 %v821
    %v939 = vunpack.c.h.b16 %v821
    %v940 = vpack.c.b16 %v880, %v876
    %v941 = vpack.c.b16 %v881, %v877
    %v942 = vpack.c.b16 %v882, %v878
    %v943 = vpack.c.b16 %v883, %v879
    %v944 = vpack.c.b16 %v888, %v884
    %v945 = vpack.c.b16 %v889, %v885
    %v946 = vpack.c.b16 %v890, %v886
    %v947 = vpack.c.b16 %v891, %v887
    %v948 = vpack.c.b16 %v896, %v892
    %v949 = vpack.c.b16 %v897, %v893
    %v950 = vpack.c.b16 %v898, %v894
    %v951 = vpack.c.b16 %v899, %v895
    %v952 = vpack.c.b16 %v904, %v900
    %v953 = vpack.c.b16 %v905, %v901
    %v954 = vpack.c.b16 %v906, %v902
    %v955 = vpack.c.b16 %v907, %v903
    %v956 = vpack.c.b16 %v912, %v908
    %v957 = vpack.c.b16 %v913, %v909
    %v958 = vpack.c.b16 %v914, %v910
    %v959 = vpack.c.b16 %v915, %v911
    %v960 = vpack.c.b16 %v920, %v916
    %v961 = vpack.c.b16 %v921, %v917
    %v962 = vpack.c.b16 %v922, %v918
    %v963 = vpack.c.b16 %v923, %v919
    %v964 = vpack.c.b16 %v928, %v924
    %v965 = vpack.c.b16 %v929, %v925
    %v966 = vpack.c.b16 %v930, %v926
    %v967 = vpack.c.b16 %v931, %v927
    %v968 = vpack.c.b16 %v936, %v932
    %v969 = vpack.c.b16 %v937, %v933
    %v970 = vpack.c.b16 %v938, %v934
    %v971 = vpack.c.b16 %v939, %v935
    %1004 = vmatprep.subr.bf16.mxu0 %v941
    %1005 = vmatpush1.bf16.msra.mxu0 %v940
    %1006 = vmatprep.subr.bf16.mxu0 %v945
    %1007 = vmatpush1.bf16.msra.mxu0 %v944
    %1008 = vmatprep.subr.bf16.mxu0 %v949
    %1009 = vmatpush1.bf16.msra.mxu0 %v948
    %1010 = vmatprep.subr.bf16.mxu0 %v953
    %1011 = vmatpush1.bf16.msra.mxu0 %v952
    %1012 = vmatprep.subr.bf16.mxu0 %v957
    %1013 = vmatpush1.bf16.msra.mxu0 %v956
    %1014 = vmatprep.subr.bf16.mxu0 %v961
    %1015 = vmatpush1.bf16.msra.mxu0 %v960
    %1016 = vmatprep.subr.bf16.mxu0 %v965
    %1017 = vmatpush1.bf16.msra.mxu0 %v964
    %1018 = vmatprep.subr.bf16.mxu0 %v969
    %1019 = vmatpush1.bf16.msra.mxu0 %v968
    %1020 = vmatprep.subr.bf16.mxu0 0
    %1021 = vmatpush1.bf16.msra.mxu0 0
    %1022 = vmatprep.subr.bf16.mxu0 0
    %1023 = vmatpush1.bf16.msra.mxu0 0
    %1024 = vmatprep.subr.bf16.mxu0 0
    %1025 = vmatpush1.bf16.msra.mxu0 0
    %1026 = vmatprep.subr.bf16.mxu0 0
    %1027 = vmatpush1.bf16.msra.mxu0 0
    %1028 = vmatprep.subr.bf16.mxu0 0
    %1029 = vmatpush1.bf16.msra.mxu0 0
    %1030 = vmatprep.subr.bf16.mxu0 0
    %1031 = vmatpush1.bf16.msra.mxu0 0
    %1032 = vmatprep.subr.bf16.mxu0 0
    %1033 = vmatpush1.bf16.msra.mxu0 0
    %1034 = vmatprep.subr.bf16.mxu0 0
    %1035 = vmatpush1.bf16.msra.mxu0 0
    %1036 = vmatprep.mubr.bf16.mxu0 0
    %1037 = vmatmul.mubr.bf16.gmra.mrb[0].mxu0 %v789
    %v1038 = vpop.f32.mrb[0].mxu0
    %v1039 = vadd.f32 %v827, %v1038
    %v1040 = vpop.f32.mrb[0].mxu0
    %v1041 = vadd.f32 %v831, %v1040
    %v1042 = vpop.f32.mrb[0].mxu0
    %v1043 = vadd.f32 %v827, %v1042
    %v1044 = vpop.f32.mrb[0].mxu0
    %v1045 = vadd.f32 %v831, %v1044
    %1046 = vdwg.mxu0
    %1047 = vmatprep.subr.bf16.mxu0 %v943
    %1048 = vmatpush1.bf16.msra.mxu0 %v942
    %1049 = vmatprep.subr.bf16.mxu0 %v947
    %1050 = vmatpush1.bf16.msra.mxu0 %v946
    %1051 = vmatprep.subr.bf16.mxu0 %v951
    %1052 = vmatpush1.bf16.msra.mxu0 %v950
    %1053 = vmatprep.subr.bf16.mxu0 %v955
    %1054 = vmatpush1.bf16.msra.mxu0 %v954
    %1055 = vmatprep.subr.bf16.mxu0 %v959
    %1056 = vmatpush1.bf16.msra.mxu0 %v958
    %1057 = vmatprep.subr.bf16.mxu0 %v963
    %1058 = vmatpush1.bf16.msra.mxu0 %v962
    %1059 = vmatprep.subr.bf16.mxu0 %v967
    %1060 = vmatpush1.bf16.msra.mxu0 %v966
    %1061 = vmatprep.subr.bf16.mxu0 %v971
    %1062 = vmatpush1.bf16.msra.mxu0 %v970
    %1063 = vmatprep.subr.bf16.mxu0 0
    %1064 = vmatpush1.bf16.msra.mxu0 0
    %1065 = vmatprep.subr.bf16.mxu0 0
    %1066 = vmatpush1.bf16.msra.mxu0 0
    %1067 = vmatprep.subr.bf16.mxu0 0
    %1068 = vmatpush1.bf16.msra.mxu0 0
    %1069 = vmatprep.subr.bf16.mxu0 0
    %1070 = vmatpush1.bf16.msra.mxu0 0
    %1071 = vmatprep.subr.bf16.mxu0 0
    %1072 = vmatpush1.bf16.msra.mxu0 0
    %1073 = vmatprep.subr.bf16.mxu0 0
    %1074 = vmatpush1.bf16.msra.mxu0 0
    %1075 = vmatprep.subr.bf16.mxu0 0
    %1076 = vmatpush1.bf16.msra.mxu0 0
    %1077 = vmatprep.subr.bf16.mxu0 0
    %1078 = vmatpush1.bf16.msra.mxu0 0
    %1079 = vmatprep.mubr.bf16.mxu0 0
    %1080 = vmatmul.mubr.bf16.gmra.mrb[0].mxu0 %v789
    %v1081 = vpop.f32.mrb[0].mxu0
    %v1082 = vadd.f32 %v835, %v1081
    %v1083 = vpop.f32.mrb[0].mxu0
    %v1084 = vadd.f32 %v839, %v1083
    %v1085 = vpop.f32.mrb[0].mxu0
    %v1086 = vadd.f32 %v835, %v1085
    %v1087 = vpop.f32.mrb[0].mxu0
    %v1088 = vadd.f32 %v839, %v1087
    %1089 = vdwg.mxu0
    %v1090 = vmax.f32 %v1039, 0.0
    %v1091 = vmax.f32 %v1041, 0.0
    %v1092 = vmax.f32 %v1082, 0.0
    %v1093 = vmax.f32 %v1084, 0.0
    %v1094 = vmax.f32 %v1043, 0.0
    %v1095 = vmax.f32 %v1045, 0.0
    %v1096 = vmax.f32 %v1086, 0.0
    %v1097 = vmax.f32 %v1088, 0.0
    %v1098 = vpack.c.bf16 %v1094, %v1090
    %v1099 = vpack.c.bf16 %v1095, %v1091
    %v1100 = vpack.c.bf16 %v1096, %v1092
    %v1101 = vpack.c.bf16 %v1097, %v1093
    %v1102 = vld [vmem:[#allocation10] sm:$0xf]
    %v1103 = vld [vmem:[#allocation10 + $0x4] sm:$0xf]
    %v1104 = vld [vmem:[#allocation10 + $0x8] sm:$0xf]
    %v1105 = vld [vmem:[#allocation10 + $0xc] sm:$0xf]
    %v1106 = vld [vmem:[#allocation10 + $0x10] sm:$0xf]
    %v1107 = vld [vmem:[#allocation10 + $0x14] sm:$0xf]
    %v1108 = vld [vmem:[#allocation10 + $0x18] sm:$0xf]
    %v1109 = vld [vmem:[#allocation10 + $0x1c] sm:$0xf]
    %v1110 = vld [vmem:[#allocation10 + $0x20] sm:$0xf]
    %v1111 = vld [vmem:[#allocation10 + $0x24] sm:$0xf]
    %v1112 = vld [vmem:[#allocation10 + $0x28] sm:$0xf]
    %v1113 = vld [vmem:[#allocation10 + $0x2c] sm:$0xf]
    %v1114 = vld [vmem:[#allocation10 + $0x30] sm:$0xf]
    %v1115 = vld [vmem:[#allocation10 + $0x34] sm:$0xf]
    %v1116 = vld [vmem:[#allocation10 + $0x38] sm:$0xf]
    %v1117 = vld [vmem:[#allocation10 + $0x3c] sm:$0xf]
    %v1118 = vld [vmem:[#allocation10 + $0x40] sm:$0xf]
    %v1119 = vld [vmem:[#allocation10 + $0x44] sm:$0xf]
    %v1120 = vld [vmem:[#allocation10 + $0x48] sm:$0xf]
    %v1121 = vld [vmem:[#allocation10 + $0x4c] sm:$0xf]
    %v1122 = vld [vmem:[#allocation10 + $0x50] sm:$0xf]
    %v1123 = vld [vmem:[#allocation10 + $0x54] sm:$0xf]
    %v1124 = vld [vmem:[#allocation10 + $0x58] sm:$0xf]
    %v1125 = vld [vmem:[#allocation10 + $0x5c] sm:$0xf]
    %v1126 = vld [vmem:[#allocation10 + $0x60] sm:$0xf]
    %v1127 = vld [vmem:[#allocation10 + $0x64] sm:$0xf]
    %v1128 = vld [vmem:[#allocation10 + $0x68] sm:$0xf]
    %v1129 = vld [vmem:[#allocation10 + $0x6c] sm:$0xf]
    %v1130 = vld [vmem:[#allocation10 + $0x70] sm:$0xf]
    %v1131 = vld [vmem:[#allocation10 + $0x74] sm:$0xf]
    %v1132 = vld [vmem:[#allocation10 + $0x78] sm:$0xf]
    %v1133 = vld [vmem:[#allocation10 + $0x7c] sm:$0xf]
    %v1134 = vld [vmem:[#allocation10 + $0x80] sm:$0xf]
    %v1135 = vld [vmem:[#allocation10 + $0x84] sm:$0xf]
    %v1136 = vld [vmem:[#allocation10 + $0x88] sm:$0xf]
    %v1137 = vld [vmem:[#allocation10 + $0x8c] sm:$0xf]
    %v1138 = vld [vmem:[#allocation10 + $0x90] sm:$0xf]
    %v1139 = vld [vmem:[#allocation10 + $0x94] sm:$0xf]
    %v1140 = vld [vmem:[#allocation10 + $0x98] sm:$0xf]
    %v1141 = vld [vmem:[#allocation10 + $0x9c] sm:$0xf]
    %v1142 = vld [vmem:[#allocation10 + $0xa0] sm:$0xf]
    %v1143 = vld [vmem:[#allocation10 + $0xa4] sm:$0xf]
    %v1144 = vld [vmem:[#allocation10 + $0xa8] sm:$0xf]
    %v1145 = vld [vmem:[#allocation10 + $0xac] sm:$0xf]
    %v1146 = vld [vmem:[#allocation10 + $0xb0] sm:$0xf]
    %v1147 = vld [vmem:[#allocation10 + $0xb4] sm:$0xf]
    %v1148 = vld [vmem:[#allocation10 + $0xb8] sm:$0xf]
    %v1149 = vld [vmem:[#allocation10 + $0xbc] sm:$0xf]
    %v1150 = vld [vmem:[#allocation10 + $0xc0] sm:$0xf]
    %v1151 = vld [vmem:[#allocation10 + $0xc4] sm:$0xf]
    %v1152 = vld [vmem:[#allocation10 + $0xc8] sm:$0xf]
    %v1153 = vld [vmem:[#allocation10 + $0xcc] sm:$0xf]
    %v1154 = vld [vmem:[#allocation10 + $0xd0] sm:$0xf]
    %v1155 = vld [vmem:[#allocation10 + $0xd4] sm:$0xf]
    %v1156 = vld [vmem:[#allocation10 + $0xd8] sm:$0xf]
    %v1157 = vld [vmem:[#allocation10 + $0xdc] sm:$0xf]
    %v1158 = vld [vmem:[#allocation10 + $0xe0] sm:$0xf]
    %v1159 = vld [vmem:[#allocation10 + $0xe4] sm:$0xf]
    %v1160 = vld [vmem:[#allocation10 + $0xe8] sm:$0xf]
    %v1161 = vld [vmem:[#allocation10 + $0xec] sm:$0xf]
    %v1162 = vld [vmem:[#allocation10 + $0xf0] sm:$0xf]
    %v1163 = vld [vmem:[#allocation10 + $0xf4] sm:$0xf]
    %v1164 = vld [vmem:[#allocation10 + $0xf8] sm:$0xf]
    %v1165 = vld [vmem:[#allocation10 + $0xfc] sm:$0xf]
    %v1166 = vld [vmem:[#allocation2 + $0x7] sm:$0x1]
    %v1167 = vlaneseq
    %v1168 = vshrl.u32 %v1167, 7
    %v1169 = vsub.s32 0, %v1168
    %v1170 = vrot.slane %v1166, %v1169
    %v1235 = vunpack.c.l.b16 %v1102
    %v1236 = vunpack.c.l.b16 %v1103
    %v1237 = vunpack.c.l.b16 %v1104
    %v1238 = vunpack.c.l.b16 %v1105
    %v1239 = vunpack.c.l.b16 %v1106
    %v1240 = vunpack.c.l.b16 %v1107
    %v1241 = vunpack.c.l.b16 %v1108
    %v1242 = vunpack.c.l.b16 %v1109
    %v1243 = vunpack.c.l.b16 %v1110
    %v1244 = vunpack.c.l.b16 %v1111
    %v1245 = vunpack.c.l.b16 %v1112
    %v1246 = vunpack.c.l.b16 %v1113
    %v1247 = vunpack.c.l.b16 %v1114
    %v1248 = vunpack.c.l.b16 %v1115
    %v1249 = vunpack.c.l.b16 %v1116
    %v1250 = vunpack.c.l.b16 %v1117
    %v1251 = vunpack.c.l.b16 %v1118
    %v1252 = vunpack.c.l.b16 %v1119
    %v1253 = vunpack.c.l.b16 %v1120
    %v1254 = vunpack.c.l.b16 %v1121
    %v1255 = vunpack.c.l.b16 %v1122
    %v1256 = vunpack.c.l.b16 %v1123
    %v1257 = vunpack.c.l.b16 %v1124
    %v1258 = vunpack.c.l.b16 %v1125
    %v1259 = vunpack.c.l.b16 %v1126
    %v1260 = vunpack.c.l.b16 %v1127
    %v1261 = vunpack.c.l.b16 %v1128
    %v1262 = vunpack.c.l.b16 %v1129
    %v1263 = vunpack.c.l.b16 %v1130
    %v1264 = vunpack.c.l.b16 %v1131
    %v1265 = vunpack.c.l.b16 %v1132
    %v1266 = vunpack.c.l.b16 %v1133
    %v1267 = vunpack.c.l.b16 %v1134
    %v1268 = vunpack.c.l.b16 %v1135
    %v1269 = vunpack.c.l.b16 %v1136
    %v1270 = vunpack.c.l.b16 %v1137
    %v1271 = vunpack.c.l.b16 %v1138
    %v1272 = vunpack.c.l.b16 %v1139
    %v1273 = vunpack.c.l.b16 %v1140
    %v1274 = vunpack.c.l.b16 %v1141
    %v1275 = vunpack.c.l.b16 %v1142
    %v1276 = vunpack.c.l.b16 %v1143
    %v1277 = vunpack.c.l.b16 %v1144
    %v1278 = vunpack.c.l.b16 %v1145
    %v1279 = vunpack.c.l.b16 %v1146
    %v1280 = vunpack.c.l.b16 %v1147
    %v1281 = vunpack.c.l.b16 %v1148
    %v1282 = vunpack.c.l.b16 %v1149
    %v1283 = vunpack.c.l.b16 %v1150
    %v1284 = vunpack.c.l.b16 %v1151
    %v1285 = vunpack.c.l.b16 %v1152
    %v1286 = vunpack.c.l.b16 %v1153
    %v1287 = vunpack.c.l.b16 %v1154
    %v1288 = vunpack.c.l.b16 %v1155
    %v1289 = vunpack.c.l.b16 %v1156
    %v1290 = vunpack.c.l.b16 %v1157
    %v1291 = vunpack.c.l.b16 %v1158
    %v1292 = vunpack.c.l.b16 %v1159
    %v1293 = vunpack.c.l.b16 %v1160
    %v1294 = vunpack.c.l.b16 %v1161
    %v1295 = vunpack.c.l.b16 %v1162
    %v1296 = vunpack.c.l.b16 %v1163
    %v1297 = vunpack.c.l.b16 %v1164
    %v1298 = vunpack.c.l.b16 %v1165
    %v1299 = vpack.c.b16 %v1236, %v1235
    %v1300 = vpack.c.b16 %v1238, %v1237
    %v1301 = vpack.c.b16 %v1240, %v1239
    %v1302 = vpack.c.b16 %v1242, %v1241
    %v1303 = vpack.c.b16 %v1244, %v1243
    %v1304 = vpack.c.b16 %v1246, %v1245
    %v1305 = vpack.c.b16 %v1248, %v1247
    %v1306 = vpack.c.b16 %v1250, %v1249
    %v1307 = vpack.c.b16 %v1252, %v1251
    %v1308 = vpack.c.b16 %v1254, %v1253
    %v1309 = vpack.c.b16 %v1256, %v1255
    %v1310 = vpack.c.b16 %v1258, %v1257
    %v1311 = vpack.c.b16 %v1260, %v1259
    %v1312 = vpack.c.b16 %v1262, %v1261
    %v1313 = vpack.c.b16 %v1264, %v1263
    %v1314 = vpack.c.b16 %v1266, %v1265
    %v1315 = vpack.c.b16 %v1268, %v1267
    %v1316 = vpack.c.b16 %v1270, %v1269
    %v1317 = vpack.c.b16 %v1272, %v1271
    %v1318 = vpack.c.b16 %v1274, %v1273
    %v1319 = vpack.c.b16 %v1276, %v1275
    %v1320 = vpack.c.b16 %v1278, %v1277
    %v1321 = vpack.c.b16 %v1280, %v1279
    %v1322 = vpack.c.b16 %v1282, %v1281
    %v1323 = vpack.c.b16 %v1284, %v1283
    %v1324 = vpack.c.b16 %v1286, %v1285
    %v1325 = vpack.c.b16 %v1288, %v1287
    %v1326 = vpack.c.b16 %v1290, %v1289
    %v1327 = vpack.c.b16 %v1292, %v1291
    %v1328 = vpack.c.b16 %v1294, %v1293
    %v1329 = vpack.c.b16 %v1296, %v1295
    %v1330 = vpack.c.b16 %v1298, %v1297
    %1363 = vmatprep.subr.bf16.mxu0 0
    %1364 = vmatpush1.bf16.msra.mxu0 %v1299
    %1365 = vmatprep.subr.bf16.mxu0 0
    %1366 = vmatpush1.bf16.msra.mxu0 %v1300
    %1367 = vmatprep.subr.bf16.mxu0 0
    %1368 = vmatpush1.bf16.msra.mxu0 %v1301
    %1369 = vmatprep.subr.bf16.mxu0 0
    %1370 = vmatpush1.bf16.msra.mxu0 %v1302
    %1371 = vmatprep.subr.bf16.mxu0 0
    %1372 = vmatpush1.bf16.msra.mxu0 %v1303
    %1373 = vmatprep.subr.bf16.mxu0 0
    %1374 = vmatpush1.bf16.msra.mxu0 %v1304
    %1375 = vmatprep.subr.bf16.mxu0 0
    %1376 = vmatpush1.bf16.msra.mxu0 %v1305
    %1377 = vmatprep.subr.bf16.mxu0 0
    %1378 = vmatpush1.bf16.msra.mxu0 %v1306
    %1379 = vmatprep.subr.bf16.mxu0 0
    %1380 = vmatpush1.bf16.msra.mxu0 %v1307
    %1381 = vmatprep.subr.bf16.mxu0 0
    %1382 = vmatpush1.bf16.msra.mxu0 %v1308
    %1383 = vmatprep.subr.bf16.mxu0 0
    %1384 = vmatpush1.bf16.msra.mxu0 %v1309
    %1385 = vmatprep.subr.bf16.mxu0 0
    %1386 = vmatpush1.bf16.msra.mxu0 %v1310
    %1387 = vmatprep.subr.bf16.mxu0 0
    %1388 = vmatpush1.bf16.msra.mxu0 %v1311
    %1389 = vmatprep.subr.bf16.mxu0 0
    %1390 = vmatpush1.bf16.msra.mxu0 %v1312
    %1391 = vmatprep.subr.bf16.mxu0 0
    %1392 = vmatpush1.bf16.msra.mxu0 %v1313
    %1393 = vmatprep.subr.bf16.mxu0 0
    %1394 = vmatpush1.bf16.msra.mxu0 %v1314
    %1395 = vmatprep.mubr.bf16.mxu0 %v1099
    %1396 = vmatmul.mubr.bf16.gmra.mrb[0].mxu0 %v1098
    %v1397 = vpop.f32.mrb[0].mxu0
    %v1398 = vadd.f32 %v1170, %v1397
    %v1399 = vpop.f32.mrb[0].mxu0
    %v1400 = vpop.f32.mrb[0].mxu0
    %v1401 = vadd.f32 %v1170, %v1400
    %v1402 = vpop.f32.mrb[0].mxu0
    %1403 = vdwg.mxu0
    %1404 = vmatprep.subr.bf16.mxu0 0
    %1405 = vmatpush1.bf16.msra.mxu0 %v1315
    %1406 = vmatprep.subr.bf16.mxu0 0
    %1407 = vmatpush1.bf16.msra.mxu0 %v1316
    %1408 = vmatprep.subr.bf16.mxu0 0
    %1409 = vmatpush1.bf16.msra.mxu0 %v1317
    %1410 = vmatprep.subr.bf16.mxu0 0
    %1411 = vmatpush1.bf16.msra.mxu0 %v1318
    %1412 = vmatprep.subr.bf16.mxu0 0
    %1413 = vmatpush1.bf16.msra.mxu0 %v1319
    %1414 = vmatprep.subr.bf16.mxu0 0
    %1415 = vmatpush1.bf16.msra.mxu0 %v1320
    %1416 = vmatprep.subr.bf16.mxu0 0
    %1417 = vmatpush1.bf16.msra.mxu0 %v1321
    %1418 = vmatprep.subr.bf16.mxu0 0
    %1419 = vmatpush1.bf16.msra.mxu0 %v1322
    %1420 = vmatprep.subr.bf16.mxu0 0
    %1421 = vmatpush1.bf16.msra.mxu0 %v1323
    %1422 = vmatprep.subr.bf16.mxu0 0
    %1423 = vmatpush1.bf16.msra.mxu0 %v1324
    %1424 = vmatprep.subr.bf16.mxu0 0
    %1425 = vmatpush1.bf16.msra.mxu0 %v1325
    %1426 = vmatprep.subr.bf16.mxu0 0
    %1427 = vmatpush1.bf16.msra.mxu0 %v1326
    %1428 = vmatprep.subr.bf16.mxu0 0
    %1429 = vmatpush1.bf16.msra.mxu0 %v1327
    %1430 = vmatprep.subr.bf16.mxu0 0
    %1431 = vmatpush1.bf16.msra.mxu0 %v1328
    %1432 = vmatprep.subr.bf16.mxu0 0
    %1433 = vmatpush1.bf16.msra.mxu0 %v1329
    %1434 = vmatprep.subr.bf16.mxu0 0
    %1435 = vmatpush1.bf16.msra.mxu0 %v1330
    %1436 = vmatprep.mubr.bf16.mxu0 %v1101
    %1437 = vmatmul.mubr.bf16.gmra.mrb[0].mxu0 %v1100
    %v1438 = vpop.f32.mrb[0].mxu0
    %v1439 = vadd.f32 %v1398, %v1438
    %v1440 = vpop.f32.mrb[0].mxu0
    %v1441 = vpop.f32.mrb[0].mxu0
    %v1442 = vadd.f32 %v1401, %v1441
    %v1443 = vpop.f32.mrb[0].mxu0
    %1444 = vdwg.mxu0
    %v1445 = vadd.f32 %v787, %v1439
    %v1446 = vadd.f32 %v788, %v1442
    %v1447 = vld [vmem:[#allocation2 + $0x5] sm:$0x1]
    %v1448 = vld [vmem:[#allocation2 + $0x6] sm:$0x1]
    %v1449 = vrot.slane %v1445, 4
    %v1450 = vadd.f32 %v1445, %v1449
    %v1451 = vrot.slane %v1450, 2
    %v1452 = vadd.f32 %v1450, %v1451
    %v1453 = vrot.slane %v1452, 1
    %v1454 = vadd.f32 %v1452, %v1453
    %v1455 = vrot.slane %v1446, 4
    %v1456 = vadd.f32 %v1446, %v1455
    %v1457 = vrot.slane %v1456, 2
    %v1458 = vadd.f32 %v1456, %v1457
    %v1459 = vrot.slane %v1458, 1
    %v1460 = vadd.f32 %v1458, %v1459
    %v1461 = vmul.f32 %v1454, %v750
    %v1462 = vmul.f32 %v1460, %v750
    %v1463 = vsub.f32 %v1445, %v1461
    %v1464 = vsub.f32 %v1446, %v1462
    %v1465 = vmul.f32 %v1463, %v1463
    %v1466 = vmul.f32 %v1464, %v1464
    %v1467 = vrot.slane %v1465, 4
    %v1468 = vadd.f32 %v1465, %v1467
    %v1469 = vrot.slane %v1468, 2
    %v1470 = vadd.f32 %v1468, %v1469
    %v1471 = vrot.slane %v1470, 1
    %v1472 = vadd.f32 %v1470, %v1471
    %v1473 = vrot.slane %v1466, 4
    %v1474 = vadd.f32 %v1466, %v1473
    %v1475 = vrot.slane %v1474, 2
    %v1476 = vadd.f32 %v1474, %v1475
    %v1477 = vrot.slane %v1476, 1
    %v1478 = vadd.f32 %v1476, %v1477
    %v1479 = vmul.f32 %v1472, %v750
    %v1480 = vmul.f32 %v1478, %v750
    %v1481 = vadd.f32 %v1479, 1e-05
    %v1482 = vadd.f32 %v1480, 1e-05
    %v1483 = vrsqrt.pop %v1481
    %v1484 = vrsqrt.pop %v1482
    %v1485 = vmul.f32 %v1463, %v1483
    %v1486 = vmul.f32 %v1464, %v1484
    %v1487 = vlaneseq
    %v1488 = vshrl.u32 %v1487, 7
    %v1489 = vsub.s32 0, %v1488
    %v1490 = vrot.slane %v1447, %v1489
    %v1491 = vmul.f32 %v1485, %v1490
    %v1492 = vmul.f32 %v1486, %v1490
    %v1493 = vlaneseq
    %v1494 = vshrl.u32 %v1493, 7
    %v1495 = vsub.s32 0, %v1494
    %v1496 = vrot.slane %v1448, %v1495
    %v1497 = vadd.f32 %v1491, %v1496
    %v1498 = vadd.f32 %v1492, %v1496
    %v1499 = vpack.c.bf16 %v1498, %v1497
    %s1500 = scalar_lea.vmem [#allocation5], 192
    %v1501 = vld [vmem:[%s1500] sm:$0xff]
    %v1502 = vld [vmem:[%s1500 + $0x8] sm:$0xf]
    %v1503 = vld [vmem:[%s1500 + $0xc] sm:$0xff]
    %v1504 = vld [vmem:[%s1500 + $0x14] sm:$0xf]
    %v1505 = vld [vmem:[%s1500 + $0x18] sm:$0xff]
    %v1506 = vld [vmem:[%s1500 + $0x20] sm:$0xf]
    %v1507 = vld [vmem:[%s1500 + $0x24] sm:$0xff]
    %v1508 = vld [vmem:[%s1500 + $0x2c] sm:$0xf]
    %v1509 = vld [vmem:[%s1500 + $0x30] sm:$0xff]
    %v1510 = vld [vmem:[%s1500 + $0x38] sm:$0xf]
    %v1511 = vld [vmem:[%s1500 + $0x3c] sm:$0xff]
    %v1512 = vld [vmem:[%s1500 + $0x44] sm:$0xf]
    %v1513 = vld [vmem:[%s1500 + $0x48] sm:$0xff]
    %v1514 = vld [vmem:[%s1500 + $0x50] sm:$0xf]
    %v1515 = vld [vmem:[%s1500 + $0x54] sm:$0xff]
    %v1516 = vld [vmem:[%s1500 + $0x5c] sm:$0xf]
    %v1517 = vld [vmem:[%s1500 + $0x60] sm:$0xff]
    %v1518 = vld [vmem:[%s1500 + $0x68] sm:$0xf]
    %v1519 = vld [vmem:[%s1500 + $0x6c] sm:$0xff]
    %v1520 = vld [vmem:[%s1500 + $0x74] sm:$0xf]
    %v1521 = vld [vmem:[%s1500 + $0x78] sm:$0xff]
    %v1522 = vld [vmem:[%s1500 + $0x80] sm:$0xf]
    %v1523 = vld [vmem:[%s1500 + $0x84] sm:$0xff]
    %v1524 = vld [vmem:[%s1500 + $0x8c] sm:$0xf]
    %v1525 = vld [vmem:[%s1500 + $0x90] sm:$0xff]
    %v1526 = vld [vmem:[%s1500 + $0x98] sm:$0xf]
    %v1527 = vld [vmem:[%s1500 + $0x9c] sm:$0xff]
    %v1528 = vld [vmem:[%s1500 + $0xa4] sm:$0xf]
    %v1529 = vld [vmem:[%s1500 + $0xa8] sm:$0xff]
    %v1530 = vld [vmem:[%s1500 + $0xb0] sm:$0xf]
    %v1531 = vld [vmem:[%s1500 + $0xb4] sm:$0xff]
    %v1532 = vld [vmem:[%s1500 + $0xbc] sm:$0xf]
    %v1565 = vunpack.c.l.b16 %v1501
    %v1566 = vunpack.c.h.b16 %v1501
    %v1567 = vunpack.c.l.b16 %v1502
    %v1568 = vunpack.c.l.b16 %v1503
    %v1569 = vunpack.c.h.b16 %v1503
    %v1570 = vunpack.c.l.b16 %v1504
    %v1571 = vunpack.c.l.b16 %v1505
    %v1572 = vunpack.c.h.b16 %v1505
    %v1573 = vunpack.c.l.b16 %v1506
    %v1574 = vunpack.c.l.b16 %v1507
    %v1575 = vunpack.c.h.b16 %v1507
    %v1576 = vunpack.c.l.b16 %v1508
    %v1577 = vunpack.c.l.b16 %v1509
    %v1578 = vunpack.c.h.b16 %v1509
    %v1579 = vunpack.c.l.b16 %v1510
    %v1580 = vunpack.c.l.b16 %v1511
    %v1581 = vunpack.c.h.b16 %v1511
    %v1582 = vunpack.c.l.b16 %v1512
    %v1583 = vunpack.c.l.b16 %v1513
    %v1584 = vunpack.c.h.b16 %v1513
    %v1585 = vunpack.c.l.b16 %v1514
    %v1586 = vunpack.c.l.b16 %v1515
    %v1587 = vunpack.c.h.b16 %v1515
    %v1588 = vunpack.c.l.b16 %v1516
    %v1589 = vunpack.c.l.b16 %v1517
    %v1590 = vunpack.c.h.b16 %v1517
    %v1591 = vunpack.c.l.b16 %v1518
    %v1592 = vunpack.c.l.b16 %v1519
    %v1593 = vunpack.c.h.b16 %v1519
    %v1594 = vunpack.c.l.b16 %v1520
    %v1595 = vunpack.c.l.b16 %v1521
    %v1596 = vunpack.c.h.b16 %v1521
    %v1597 = vunpack.c.l.b16 %v1522
    %v1598 = vunpack.c.l.b16 %v1523
    %v1599 = vunpack.c.h.b16 %v1523
    %v1600 = vunpack.c.l.b16 %v1524
    %v1601 = vunpack.c.l.b16 %v1525
    %v1602 = vunpack.c.h.b16 %v1525
    %v1603 = vunpack.c.l.b16 %v1526
    %v1604 = vunpack.c.l.b16 %v1527
    %v1605 = vunpack.c.h.b16 %v1527
    %v1606 = vunpack.c.l.b16 %v1528
    %v1607 = vunpack.c.l.b16 %v1529
    %v1608 = vunpack.c.h.b16 %v1529
    %v1609 = vunpack.c.l.b16 %v1530
    %v1610 = vunpack.c.l.b16 %v1531
    %v1611 = vunpack.c.h.b16 %v1531
    %v1612 = vunpack.c.l.b16 %v1532
    %v1613 = vpack.c.b16 %v1568, %v1565
    %v1614 = vpack.c.b16 %v1569, %v1566
    %v1615 = vpack.c.b16 %v1570, %v1567
    %v1616 = vpack.c.b16 %v1574, %v1571
    %v1617 = vpack.c.b16 %v1575, %v1572
    %v1618 = vpack.c.b16 %v1576, %v1573
    %v1619 = vpack.c.b16 %v1580, %v1577
    %v1620 = vpack.c.b16 %v1581, %v1578
    %v1621 = vpack.c.b16 %v1582, %v1579
    %v1622 = vpack.c.b16 %v1586, %v1583
    %v1623 = vpack.c.b16 %v1587, %v1584
    %v1624 = vpack.c.b16 %v1588, %v1585
    %v1625 = vpack.c.b16 %v1592, %v1589
    %v1626 = vpack.c.b16 %v1593, %v1590
    %v1627 = vpack.c.b16 %v1594, %v1591
    %v1628 = vpack.c.b16 %v1598, %v1595
    %v1629 = vpack.c.b16 %v1599, %v1596
    %v1630 = vpack.c.b16 %v1600, %v1597
    %v1631 = vpack.c.b16 %v1604, %v1601
    %v1632 = vpack.c.b16 %v1605, %v1602
    %v1633 = vpack.c.b16 %v1606, %v1603
    %v1634 = vpack.c.b16 %v1610, %v1607
    %v1635 = vpack.c.b16 %v1611, %v1608
    %v1636 = vpack.c.b16 %v1612, %v1609
    %1661 = vmatprep.subr.bf16.mxu0 %v1614
    %1662 = vmatpush1.bf16.msra.mxu0 %v1613
    %1663 = vmatprep.subr.bf16.mxu0 %v1617
    %1664 = vmatpush1.bf16.msra.mxu0 %v1616
    %1665 = vmatprep.subr.bf16.mxu0 %v1620
    %1666 = vmatpush1.bf16.msra.mxu0 %v1619
    %1667 = vmatprep.subr.bf16.mxu0 %v1623
    %1668 = vmatpush1.bf16.msra.mxu0 %v1622
    %1669 = vmatprep.subr.bf16.mxu0 %v1626
    %1670 = vmatpush1.bf16.msra.mxu0 %v1625
    %1671 = vmatprep.subr.bf16.mxu0 %v1629
    %1672 = vmatpush1.bf16.msra.mxu0 %v1628
    %1673 = vmatprep.subr.bf16.mxu0 %v1632
    %1674 = vmatpush1.bf16.msra.mxu0 %v1631
    %1675 = vmatprep.subr.bf16.mxu0 %v1635
    %1676 = vmatpush1.bf16.msra.mxu0 %v1634
    %1677 = vmatprep.subr.bf16.mxu0 0
    %1678 = vmatpush1.bf16.msra.mxu0 0
    %1679 = vmatprep.subr.bf16.mxu0 0
    %1680 = vmatpush1.bf16.msra.mxu0 0
    %1681 = vmatprep.subr.bf16.mxu0 0
    %1682 = vmatpush1.bf16.msra.mxu0 0
    %1683 = vmatprep.subr.bf16.mxu0 0
    %1684 = vmatpush1.bf16.msra.mxu0 0
    %1685 = vmatprep.subr.bf16.mxu0 0
    %1686 = vmatpush1.bf16.msra.mxu0 0
    %1687 = vmatprep.subr.bf16.mxu0 0
    %1688 = vmatpush1.bf16.msra.mxu0 0
    %1689 = vmatprep.subr.bf16.mxu0 0
    %1690 = vmatpush1.bf16.msra.mxu0 0
    %1691 = vmatprep.subr.bf16.mxu0 0
    %1692 = vmatpush1.bf16.msra.mxu0 0
    %1693 = vmatprep.mubr.bf16.mxu0 0
    %1694 = vmatmul.mubr.bf16.gmra.mrb[0].mxu0 %v1499
    %v1695 = vpop.f32.mrb[0].mxu0
    %v1696 = vadd.f32 0.0, %v1695
    %v1697 = vpop.f32.mrb[0].mxu0
    %v1698 = vadd.f32 0.0, %v1697
    %v1699 = vpop.f32.mrb[0].mxu0
    %v1700 = vadd.f32 0.0, %v1699
    %v1701 = vpop.f32.mrb[0].mxu0
    %v1702 = vadd.f32 0.0, %v1701
    %1703 = vdwg.mxu0
    %1704 = vmatprep.subr.bf16.mxu0 0
    %1705 = vmatpush1.bf16.msra.mxu0 %v1615
    %1706 = vmatprep.subr.bf16.mxu0 0
    %1707 = vmatpush1.bf16.msra.mxu0 %v1618
    %1708 = vmatprep.subr.bf16.mxu0 0
    %1709 = vmatpush1.bf16.msra.mxu0 %v1621
    %1710 = vmatprep.subr.bf16.mxu0 0
    %1711 = vmatpush1.bf16.msra.mxu0 %v1624
    %1712 = vmatprep.subr.bf16.mxu0 0
    %1713 = vmatpush1.bf16.msra.mxu0 %v1627
    %1714 = vmatprep.subr.bf16.mxu0 0
    %1715 = vmatpush1.bf16.msra.mxu0 %v1630
    %1716 = vmatprep.subr.bf16.mxu0 0
    %1717 = vmatpush1.bf16.msra.mxu0 %v1633
    %1718 = vmatprep.subr.bf16.mxu0 0
    %1719 = vmatpush1.bf16.msra.mxu0 %v1636
    %1720 = vmatprep.subr.bf16.mxu0 0
    %1721 = vmatpush1.bf16.msra.mxu0 0
    %1722 = vmatprep.subr.bf16.mxu0 0
    %1723 = vmatpush1.bf16.msra.mxu0 0
    %1724 = vmatprep.subr.bf16.mxu0 0
    %1725 = vmatpush1.bf16.msra.mxu0 0
    %1726 = vmatprep.subr.bf16.mxu0 0
    %1727 = vmatpush1.bf16.msra.mxu0 0
    %1728 = vmatprep.subr.bf16.mxu0 0
    %1729 = vmatpush1.bf16.msra.mxu0 0
    %1730 = vmatprep.subr.bf16.mxu0 0
    %1731 = vmatpush1.bf16.msra.mxu0 0
    %1732 = vmatprep.subr.bf16.mxu0 0
    %1733 = vmatpush1.bf16.msra.mxu0 0
    %1734 = vmatprep.subr.bf16.mxu0 0
    %1735 = vmatpush1.bf16.msra.mxu0 0
    %1736 = vmatprep.mubr.bf16.mxu0 0
    %1737 = vmatmul.mubr.bf16.gmra.mrb[0].mxu0 %v1499
    %v1738 = vpop.f32.mrb[0].mxu0
    %v1739 = vadd.f32 0.0, %v1738
    %v1740 = vpop.f32.mrb[0].mxu0
    %v1741 = vpop.f32.mrb[0].mxu0
    %v1742 = vadd.f32 0.0, %v1741
    %v1743 = vpop.f32.mrb[0].mxu0
    %1744 = vdwg.mxu0
    %v1745 = vpack.c.bf16 %v1696, %v1696
    %v1746 = vpack.c.bf16 %v1700, %v1700
    %v1747 = vpack.c.bf16 %v1698, %v1698
    %v1748 = vpack.c.bf16 %v1702, %v1702
    %v1749 = vpack.c.bf16 %v1739, %v1739
    %v1750 = vpack.c.bf16 %v1742, %v1742
    %1751 = vmatprep.subr.bf16.mxu0 0
    %1752 = vmatpush1.bf16.xpose.msra.mxu0 %v1747
    %1753 = vmatprep.subr.bf16.mxu0 0
    %1754 = vmatpush1.bf16.xpose.msra.mxu0 0
    %1755 = vmatprep.subr.bf16.mxu0 0
    %1756 = vmatpush1.bf16.xpose.msra.mxu0 0
    %1757 = vmatprep.subr.bf16.mxu0 0
    %1758 = vmatpush1.bf16.xpose.msra.mxu0 0
    %1759 = vmatprep.subr.bf16.mxu0 0
    %1760 = vmatpush1.bf16.xpose.msra.mxu0 0
    %1761 = vmatprep.subr.bf16.mxu0 0
    %1762 = vmatpush1.bf16.xpose.msra.mxu0 0
    %1763 = vmatprep.subr.bf16.mxu0 0
    %1764 = vmatpush1.bf16.xpose.msra.mxu0 0
    %1765 = vmatprep.subr.bf16.mxu0 0
    %1766 = vmatpush1.bf16.xpose.msra.mxu0 0
    %1767 = vmatprep.subr.bf16.mxu0 0
    %1768 = vmatpush1.bf16.xpose.msra.mxu0 0
    %1769 = vmatprep.subr.bf16.mxu0 0
    %1770 = vmatpush1.bf16.xpose.msra.mxu0 0
    %1771 = vmatprep.subr.bf16.mxu0 0
    %1772 = vmatpush1.bf16.xpose.msra.mxu0 0
    %1773 = vmatprep.subr.bf16.mxu0 0
    %1774 = vmatpush1.bf16.xpose.msra.mxu0 0
    %1775 = vmatprep.subr.bf16.mxu0 0
    %1776 = vmatpush1.bf16.xpose.msra.mxu0 0
    %1777 = vmatprep.subr.bf16.mxu0 0
    %1778 = vmatpush1.bf16.xpose.msra.mxu0 0
    %1779 = vmatprep.subr.bf16.mxu0 0
    %1780 = vmatpush1.bf16.xpose.msra.mxu0 0
    %1781 = vmatprep.subr.bf16.mxu0 0
    %1782 = vmatpush1.bf16.xpose.msra.mxu0 0
    %1783 = vmatprep.mubr.bf16.mxu0 0
    %1784 = vmatmul.mubr.bf16.gmra.mrb[0].mxu0 %v1745
    %v1785 = vpop.f32.mrb[0].mxu0
    %v1786 = vadd.f32 0.0, %v1785
    %v1787 = vpop.f32.mrb[0].mxu0
    %v1788 = vpop.f32.mrb[0].mxu0
    %v1789 = vpop.f32.mrb[0].mxu0
    %1790 = vdwg.mxu0
    %1791 = vmatprep.subr.bf16.mxu0 0
    %1792 = vmatpush1.bf16.xpose.msra.mxu0 %v1748
    %1793 = vmatprep.subr.bf16.mxu0 0
    %1794 = vmatpush1.bf16.xpose.msra.mxu0 0
    %1795 = vmatprep.subr.bf16.mxu0 0
    %1796 = vmatpush1.bf16.xpose.msra.mxu0 0
    %1797 = vmatprep.subr.bf16.mxu0 0
    %1798 = vmatpush1.bf16.xpose.msra.mxu0 0
    %1799 = vmatprep.subr.bf16.mxu0 0
    %1800 = vmatpush1.bf16.xpose.msra.mxu0 0
    %1801 = vmatprep.subr.bf16.mxu0 0
    %1802 = vmatpush1.bf16.xpose.msra.mxu0 0
    %1803 = vmatprep.subr.bf16.mxu0 0
    %1804 = vmatpush1.bf16.xpose.msra.mxu0 0
    %1805 = vmatprep.subr.bf16.mxu0 0
    %1806 = vmatpush1.bf16.xpose.msra.mxu0 0
    %1807 = vmatprep.subr.bf16.mxu0 0
    %1808 = vmatpush1.bf16.xpose.msra.mxu0 0
    %1809 = vmatprep.subr.bf16.mxu0 0
    %1810 = vmatpush1.bf16.xpose.msra.mxu0 0
    %1811 = vmatprep.subr.bf16.mxu0 0
    %1812 = vmatpush1.bf16.xpose.msra.mxu0 0
    %1813 = vmatprep.subr.bf16.mxu0 0
    %1814 = vmatpush1.bf16.xpose.msra.mxu0 0
    %1815 = vmatprep.subr.bf16.mxu0 0
    %1816 = vmatpush1.bf16.xpose.msra.mxu0 0
    %1817 = vmatprep.subr.bf16.mxu0 0
    %1818 = vmatpush1.bf16.xpose.msra.mxu0 0
    %1819 = vmatprep.subr.bf16.mxu0 0
    %1820 = vmatpush1.bf16.xpose.msra.mxu0 0
    %1821 = vmatprep.subr.bf16.mxu0 0
    %1822 = vmatpush1.bf16.xpose.msra.mxu0 0
    %1823 = vmatprep.mubr.bf16.mxu0 0
    %1824 = vmatmul.mubr.bf16.gmra.mrb[0].mxu0 %v1746
    %v1825 = vpop.f32.mrb[0].mxu0
    %v1826 = vadd.f32 0.0, %v1825
    %v1827 = vpop.f32.mrb[0].mxu0
    %v1828 = vpop.f32.mrb[0].mxu0
    %v1829 = vpop.f32.mrb[0].mxu0
    %1830 = vdwg.mxu0
    %v1831 = vsel %vm510, %v1786, -inf
    %1832 = vmax.xlane.f32.xlu0 %v1831
    %v1833 = vpop.xlane.xlu0 %1832
    %v1834 = vsel %vm510, %v1826, -inf
    %1835 = vmax.xlane.f32.xlu0 %v1834
    %v1836 = vpop.xlane.xlu0 %1835
    %v1837 = vsub.f32 %v1786, %v1833
    %v1838 = vsub.f32 %v1826, %v1836
    %v1839 = vmul.f32 %v1837, 1.442695
    %v1840 = vpow.pop %v1839
    %v1841 = vmul.f32 %v1838, 1.442695
    %v1842 = vpow.pop %v1841
    %v1843 = vsel %vm510, %v1840, 0.0
    %1844 = vadd.xlane.f32.xlu0 %v1843
    %v1845 = vpop.xlane.xlu0 %1844
    %v1846 = vsel %vm510, %v1842, 0.0
    %1847 = vadd.xlane.f32.xlu0 %v1846
    %v1848 = vpop.xlane.xlu0 %1847
    %v1849 = vrcp.pop %v1845
    %v1850 = vrcp.pop %v1848
    %v1851 = vmul.f32 %v1840, %v1849
    %v1852 = vmul.f32 %v1842, %v1850
    %v1853 = vpack.c.bf16 %v1851, %v1851
    %v1854 = vpack.c.bf16 %v1852, %v1852
    %v1856 = vsel %vm510, %v1853, 0
    %v1859 = vsel %vm538, %v1749, 0
    %1861 = vmatprep.subr.bf16.mxu0 0
    %1862 = vmatpush1.bf16.msra.mxu0 %v1859
    %1863 = vmatprep.subr.bf16.mxu0 0
    %1864 = vmatpush1.bf16.msra.mxu0 0
    %1865 = vmatprep.subr.bf16.mxu0 0
    %1866 = vmatpush1.bf16.msra.mxu0 0
    %1867 = vmatprep.subr.bf16.mxu0 0
    %1868 = vmatpush1.bf16.msra.mxu0 0
    %1869 = vmatprep.subr.bf16.mxu0 0
    %1870 = vmatpush1.bf16.msra.mxu0 0
    %1871 = vmatprep.subr.bf16.mxu0 0
    %1872 = vmatpush1.bf16.msra.mxu0 0
    %1873 = vmatprep.subr.bf16.mxu0 0
    %1874 = vmatpush1.bf16.msra.mxu0 0
    %1875 = vmatprep.subr.bf16.mxu0 0
    %1876 = vmatpush1.bf16.msra.mxu0 0
    %1877 = vmatprep.subr.bf16.mxu0 0
    %1878 = vmatpush1.bf16.msra.mxu0 0
    %1879 = vmatprep.subr.bf16.mxu0 0
    %1880 = vmatpush1.bf16.msra.mxu0 0
    %1881 = vmatprep.subr.bf16.mxu0 0
    %1882 = vmatpush1.bf16.msra.mxu0 0
    %1883 = vmatprep.subr.bf16.mxu0 0
    %1884 = vmatpush1.bf16.msra.mxu0 0
    %1885 = vmatprep.subr.bf16.mxu0 0
    %1886 = vmatpush1.bf16.msra.mxu0 0
    %1887 = vmatprep.subr.bf16.mxu0 0
    %1888 = vmatpush1.bf16.msra.mxu0 0
    %1889 = vmatprep.subr.bf16.mxu0 0
    %1890 = vmatpush1.bf16.msra.mxu0 0
    %1891 = vmatprep.subr.bf16.mxu0 0
    %1892 = vmatpush1.bf16.msra.mxu0 0
    %1893 = vmatprep.mubr.bf16.mxu0 0
    %1894 = vmatmul.mubr.bf16.gmra.mrb[0].mxu0 %v1856
    %v1895 = vpop.f32.mrb[0].mxu0
    %v1896 = vadd.f32 0.0, %v1895
    %v1897 = vpop.f32.mrb[0].mxu0
    %v1898 = vpop.f32.mrb[0].mxu0
    %v1899 = vpop.f32.mrb[0].mxu0
    %1900 = vdwg.mxu0
    %v1902 = vsel %vm510, %v1854, 0
    %v1905 = vsel %vm538, %v1750, 0
    %1907 = vmatprep.subr.bf16.mxu0 0
    %1908 = vmatpush1.bf16.msra.mxu0 %v1905
    %1909 = vmatprep.subr.bf16.mxu0 0
    %1910 = vmatpush1.bf16.msra.mxu0 0
    %1911 = vmatprep.subr.bf16.mxu0 0
    %1912 = vmatpush1.bf16.msra.mxu0 0
    %1913 = vmatprep.subr.bf16.mxu0 0
    %1914 = vmatpush1.bf16.msra.mxu0 0
    %1915 = vmatprep.subr.bf16.mxu0 0
    %1916 = vmatpush1.bf16.msra.mxu0 0
    %1917 = vmatprep.subr.bf16.mxu0 0
    %1918 = vmatpush1.bf16.msra.mxu0 0
    %1919 = vmatprep.subr.bf16.mxu0 0
    %1920 = vmatpush1.bf16.msra.mxu0 0
    %1921 = vmatprep.subr.bf16.mxu0 0
    %1922 = vmatpush1.bf16.msra.mxu0 0
    %1923 = vmatprep.subr.bf16.mxu0 0
    %1924 = vmatpush1.bf16.msra.mxu0 0
    %1925 = vmatprep.subr.bf16.mxu0 0
    %1926 = vmatpush1.bf16.msra.mxu0 0
    %1927 = vmatprep.subr.bf16.mxu0 0
    %1928 = vmatpush1.bf16.msra.mxu0 0
    %1929 = vmatprep.subr.bf16.mxu0 0
    %1930 = vmatpush1.bf16.msra.mxu0 0
    %1931 = vmatprep.subr.bf16.mxu0 0
    %1932 = vmatpush1.bf16.msra.mxu0 0
    %1933 = vmatprep.subr.bf16.mxu0 0
    %1934 = vmatpush1.bf16.msra.mxu0 0
    %1935 = vmatprep.subr.bf16.mxu0 0
    %1936 = vmatpush1.bf16.msra.mxu0 0
    %1937 = vmatprep.subr.bf16.mxu0 0
    %1938 = vmatpush1.bf16.msra.mxu0 0
    %1939 = vmatprep.mubr.bf16.mxu0 0
    %1940 = vmatmul.mubr.bf16.gmra.mrb[0].mxu0 %v1902
    %v1941 = vpop.f32.mrb[0].mxu0
    %v1942 = vadd.f32 0.0, %v1941
    %v1943 = vpop.f32.mrb[0].mxu0
    %v1944 = vpop.f32.mrb[0].mxu0
    %v1945 = vpop.f32.mrb[0].mxu0
    %1946 = vdwg.mxu0
    %v1947 = vpack.c.bf16 %v1942, %v1896
    %s1948 = scalar_lea.vmem [#allocation7], 64
    %v1949 = vld [vmem:[%s1948] sm:$0xf]
    %v1950 = vld [vmem:[%s1948 + $0x4] sm:$0xf]
    %v1951 = vld [vmem:[%s1948 + $0x8] sm:$0xf]
    %v1952 = vld [vmem:[%s1948 + $0xc] sm:$0xf]
    %v1953 = vld [vmem:[%s1948 + $0x10] sm:$0xf]
    %v1954 = vld [vmem:[%s1948 + $0x14] sm:$0xf]
    %v1955 = vld [vmem:[%s1948 + $0x18] sm:$0xf]
    %v1956 = vld [vmem:[%s1948 + $0x1c] sm:$0xf]
    %v1957 = vld [vmem:[%s1948 + $0x20] sm:$0xf]
    %v1958 = vld [vmem:[%s1948 + $0x24] sm:$0xf]
    %v1959 = vld [vmem:[%s1948 + $0x28] sm:$0xf]
    %v1960 = vld [vmem:[%s1948 + $0x2c] sm:$0xf]
    %v1961 = vld [vmem:[%s1948 + $0x30] sm:$0xf]
    %v1962 = vld [vmem:[%s1948 + $0x34] sm:$0xf]
    %v1963 = vld [vmem:[%s1948 + $0x38] sm:$0xf]
    %v1964 = vld [vmem:[%s1948 + $0x3c] sm:$0xf]
    %v1981 = vunpack.c.l.b16 %v1949
    %v1982 = vunpack.c.l.b16 %v1950
    %v1983 = vunpack.c.l.b16 %v1951
    %v1984 = vunpack.c.l.b16 %v1952
    %v1985 = vunpack.c.l.b16 %v1953
    %v1986 = vunpack.c.l.b16 %v1954
    %v1987 = vunpack.c.l.b16 %v1955
    %v1988 = vunpack.c.l.b16 %v1956
    %v1989 = vunpack.c.l.b16 %v1957
    %v1990 = vunpack.c.l.b16 %v1958
    %v1991 = vunpack.c.l.b16 %v1959
    %v1992 = vunpack.c.l.b16 %v1960
    %v1993 = vunpack.c.l.b16 %v1961
    %v1994 = vunpack.c.l.b16 %v1962
    %v1995 = vunpack.c.l.b16 %v1963
    %v1996 = vunpack.c.l.b16 %v1964
    %v1997 = vpack.c.b16 %v1982, %v1981
    %v1998 = vpack.c.b16 %v1984, %v1983
    %v1999 = vpack.c.b16 %v1986, %v1985
    %v2000 = vpack.c.b16 %v1988, %v1987
    %v2001 = vpack.c.b16 %v1990, %v1989
    %v2002 = vpack.c.b16 %v1992, %v1991
    %v2003 = vpack.c.b16 %v1994, %v1993
    %v2004 = vpack.c.b16 %v1996, %v1995
    %2013 = vmatprep.subr.bf16.mxu0 0
    %2014 = vmatpush1.bf16.msra.mxu0 %v1997
    %2015 = vmatprep.subr.bf16.mxu0 0
    %2016 = vmatpush1.bf16.msra.mxu0 %v1998
    %2017 = vmatprep.subr.bf16.mxu0 0
    %2018 = vmatpush1.bf16.msra.mxu0 %v1999
    %2019 = vmatprep.subr.bf16.mxu0 0
    %2020 = vmatpush1.bf16.msra.mxu0 %v2000
    %2021 = vmatprep.subr.bf16.mxu0 0
    %2022 = vmatpush1.bf16.msra.mxu0 %v2001
    %2023 = vmatprep.subr.bf16.mxu0 0
    %2024 = vmatpush1.bf16.msra.mxu0 %v2002
    %2025 = vmatprep.subr.bf16.mxu0 0
    %2026 = vmatpush1.bf16.msra.mxu0 %v2003
    %2027 = vmatprep.subr.bf16.mxu0 0
    %2028 = vmatpush1.bf16.msra.mxu0 %v2004
    %2029 = vmatprep.subr.bf16.mxu0 0
    %2030 = vmatpush1.bf16.msra.mxu0 0
    %2031 = vmatprep.subr.bf16.mxu0 0
    %2032 = vmatpush1.bf16.msra.mxu0 0
    %2033 = vmatprep.subr.bf16.mxu0 0
    %2034 = vmatpush1.bf16.msra.mxu0 0
    %2035 = vmatprep.subr.bf16.mxu0 0
    %2036 = vmatpush1.bf16.msra.mxu0 0
    %2037 = vmatprep.subr.bf16.mxu0 0
    %2038 = vmatpush1.bf16.msra.mxu0 0
    %2039 = vmatprep.subr.bf16.mxu0 0
    %2040 = vmatpush1.bf16.msra.mxu0 0
    %2041 = vmatprep.subr.bf16.mxu0 0
    %2042 = vmatpush1.bf16.msra.mxu0 0
    %2043 = vmatprep.subr.bf16.mxu0 0
    %2044 = vmatpush1.bf16.msra.mxu0 0
    %2045 = vmatprep.mubr.bf16.mxu0 0
    %2046 = vmatmul.mubr.bf16.gmra.mrb[0].mxu0 %v1947
    %v2047 = vpop.f32.mrb[0].mxu0
    %v2048 = vadd.f32 0.0, %v2047
    %v2049 = vpop.f32.mrb[0].mxu0
    %v2050 = vpop.f32.mrb[0].mxu0
    %v2051 = vadd.f32 0.0, %v2050
    %v2052 = vpop.f32.mrb[0].mxu0
    %2053 = vdwg.mxu0
    %v2054 = vadd.f32 %v1497, %v2048
    %v2055 = vadd.f32 %v1498, %v2051
    %v2056 = vld [vmem:[#allocation2 + $0x8] sm:$0x1]
    %v2057 = vld [vmem:[#allocation2 + $0x9] sm:$0x1]
    %v2058 = vrot.slane %v2054, 4
    %v2059 = vadd.f32 %v2054, %v2058
    %v2060 = vrot.slane %v2059, 2
    %v2061 = vadd.f32 %v2059, %v2060
    %v2062 = vrot.slane %v2061, 1
    %v2063 = vadd.f32 %v2061, %v2062
    %v2064 = vrot.slane %v2055, 4
    %v2065 = vadd.f32 %v2055, %v2064
    %v2066 = vrot.slane %v2065, 2
    %v2067 = vadd.f32 %v2065, %v2066
    %v2068 = vrot.slane %v2067, 1
    %v2069 = vadd.f32 %v2067, %v2068
    %v2070 = vmul.f32 %v2063, %v750
    %v2071 = vmul.f32 %v2069, %v750
    %v2072 = vsub.f32 %v2054, %v2070
    %v2073 = vsub.f32 %v2055, %v2071
    %v2074 = vmul.f32 %v2072, %v2072
    %v2075 = vmul.f32 %v2073, %v2073
    %v2076 = vrot.slane %v2074, 4
    %v2077 = vadd.f32 %v2074, %v2076
    %v2078 = vrot.slane %v2077, 2
    %v2079 = vadd.f32 %v2077, %v2078
    %v2080 = vrot.slane %v2079, 1
    %v2081 = vadd.f32 %v2079, %v2080
    %v2082 = vrot.slane %v2075, 4
    %v2083 = vadd.f32 %v2075, %v2082
    %v2084 = vrot.slane %v2083, 2
    %v2085 = vadd.f32 %v2083, %v2084
    %v2086 = vrot.slane %v2085, 1
    %v2087 = vadd.f32 %v2085, %v2086
    %v2088 = vmul.f32 %v2081, %v750
    %v2089 = vmul.f32 %v2087, %v750
    %v2090 = vadd.f32 %v2088, 1e-05
    %v2091 = vadd.f32 %v2089, 1e-05
    %v2092 = vrsqrt.pop %v2090
    %v2093 = vrsqrt.pop %v2091
    %v2094 = vmul.f32 %v2072, %v2092
    %v2095 = vmul.f32 %v2073, %v2093
    %v2096 = vlaneseq
    %v2097 = vshrl.u32 %v2096, 7
    %v2098 = vsub.s32 0, %v2097
    %v2099 = vrot.slane %v2056, %v2098
    %v2100 = vmul.f32 %v2094, %v2099
    %v2101 = vmul.f32 %v2095, %v2099
    %v2102 = vlaneseq
    %v2103 = vshrl.u32 %v2102, 7
    %v2104 = vsub.s32 0, %v2103
    %v2105 = vrot.slane %v2057, %v2104
    %v2106 = vadd.f32 %v2100, %v2105
    %v2107 = vadd.f32 %v2101, %v2105
    %v2108 = vpack.c.bf16 %v2107, %v2106
    %s2109 = scalar_lea.vmem [#allocation8], 256
    %v2110 = vld [vmem:[%s2109] sm:$0xff]
    %v2111 = vld [vmem:[%s2109 + $0x8] sm:$0xff]
    %v2112 = vld [vmem:[%s2109 + $0x10] sm:$0xff]
    %v2113 = vld [vmem:[%s2109 + $0x18] sm:$0xff]
    %v2114 = vld [vmem:[%s2109 + $0x20] sm:$0xff]
    %v2115 = vld [vmem:[%s2109 + $0x28] sm:$0xff]
    %v2116 = vld [vmem:[%s2109 + $0x30] sm:$0xff]
    %v2117 = vld [vmem:[%s2109 + $0x38] sm:$0xff]
    %v2118 = vld [vmem:[%s2109 + $0x40] sm:$0xff]
    %v2119 = vld [vmem:[%s2109 + $0x48] sm:$0xff]
    %v2120 = vld [vmem:[%s2109 + $0x50] sm:$0xff]
    %v2121 = vld [vmem:[%s2109 + $0x58] sm:$0xff]
    %v2122 = vld [vmem:[%s2109 + $0x60] sm:$0xff]
    %v2123 = vld [vmem:[%s2109 + $0x68] sm:$0xff]
    %v2124 = vld [vmem:[%s2109 + $0x70] sm:$0xff]
    %v2125 = vld [vmem:[%s2109 + $0x78] sm:$0xff]
    %v2126 = vld [vmem:[%s2109 + $0x80] sm:$0xff]
    %v2127 = vld [vmem:[%s2109 + $0x88] sm:$0xff]
    %v2128 = vld [vmem:[%s2109 + $0x90] sm:$0xff]
    %v2129 = vld [vmem:[%s2109 + $0x98] sm:$0xff]
    %v2130 = vld [vmem:[%s2109 + $0xa0] sm:$0xff]
    %v2131 = vld [vmem:[%s2109 + $0xa8] sm:$0xff]
    %v2132 = vld [vmem:[%s2109 + $0xb0] sm:$0xff]
    %v2133 = vld [vmem:[%s2109 + $0xb8] sm:$0xff]
    %v2134 = vld [vmem:[%s2109 + $0xc0] sm:$0xff]
    %v2135 = vld [vmem:[%s2109 + $0xc8] sm:$0xff]
    %v2136 = vld [vmem:[%s2109 + $0xd0] sm:$0xff]
    %v2137 = vld [vmem:[%s2109 + $0xd8] sm:$0xff]
    %v2138 = vld [vmem:[%s2109 + $0xe0] sm:$0xff]
    %v2139 = vld [vmem:[%s2109 + $0xe8] sm:$0xff]
    %v2140 = vld [vmem:[%s2109 + $0xf0] sm:$0xff]
    %v2141 = vld [vmem:[%s2109 + $0xf8] sm:$0xff]
    %s2142 = scalar_lea.vmem %s3, 1
    %v2143 = vld [vmem:[%s2142] ss:$2 sm:$0xf]
    %v2145 = vlaneseq
    %v2146 = vshrl.u32 %v2145, 7
    %v2147 = vsub.s32 0, %v2146
    %v2148 = vrot.slane %v2143, %v2147
    %v2149 = vlaneseq
    %v2150 = vshrl.u32 %v2149, 7
    %v2151 = vsub.s32 1, %v2150
    %v2152 = vrot.slane %v2143, %v2151
    %v2153 = vlaneseq
    %v2154 = vshrl.u32 %v2153, 7
    %v2155 = vsub.s32 2, %v2154
    %v2156 = vrot.slane %v2143, %v2155
    %v2157 = vlaneseq
    %v2158 = vshrl.u32 %v2157, 7
    %v2159 = vsub.s32 3, %v2158
    %v2160 = vrot.slane %v2143, %v2159
    %v2197 = vunpack.c.l.b16 %v2110
    %v2198 = vunpack.c.h.b16 %v2110
    %v2199 = vunpack.c.l.b16 %v2111
    %v2200 = vunpack.c.h.b16 %v2111
    %v2201 = vunpack.c.l.b16 %v2112
    %v2202 = vunpack.c.h.b16 %v2112
    %v2203 = vunpack.c.l.b16 %v2113
    %v2204 = vunpack.c.h.b16 %v2113
    %v2205 = vunpack.c.l.b16 %v2114
    %v2206 = vunpack.c.h.b16 %v2114
    %v2207 = vunpack.c.l.b16 %v2115
    %v2208 = vunpack.c.h.b16 %v2115
    %v2209 = vunpack.c.l.b16 %v2116
    %v2210 = vunpack.c.h.b16 %v2116
    %v2211 = vunpack.c.l.b16 %v2117
    %v2212 = vunpack.c.h.b16 %v2117
    %v2213 = vunpack.c.l.b16 %v2118
    %v2214 = vunpack.c.h.b16 %v2118
    %v2215 = vunpack.c.l.b16 %v2119
    %v2216 = vunpack.c.h.b16 %v2119
    %v2217 = vunpack.c.l.b16 %v2120
    %v2218 = vunpack.c.h.b16 %v2120
    %v2219 = vunpack.c.l.b16 %v2121
    %v2220 = vunpack.c.h.b16 %v2121
    %v2221 = vunpack.c.l.b16 %v2122
    %v2222 = vunpack.c.h.b16 %v2122
    %v2223 = vunpack.c.l.b16 %v2123
    %v2224 = vunpack.c.h.b16 %v2123
    %v2225 = vunpack.c.l.b16 %v2124
    %v2226 = vunpack.c.h.b16 %v2124
    %v2227 = vunpack.c.l.b16 %v2125
    %v2228 = vunpack.c.h.b16 %v2125
    %v2229 = vunpack.c.l.b16 %v2126
    %v2230 = vunpack.c.h.b16 %v2126
    %v2231 = vunpack.c.l.b16 %v2127
    %v2232 = vunpack.c.h.b16 %v2127
    %v2233 = vunpack.c.l.b16 %v2128
    %v2234 = vunpack.c.h.b16 %v2128
    %v2235 = vunpack.c.l.b16 %v2129
    %v2236 = vunpack.c.h.b16 %v2129
    %v2237 = vunpack.c.l.b16 %v2130
    %v2238 = vunpack.c.h.b16 %v2130
    %v2239 = vunpack.c.l.b16 %v2131
    %v2240 = vunpack.c.h.b16 %v2131
    %v2241 = vunpack.c.l.b16 %v2132
    %v2242 = vunpack.c.h.b16 %v2132
    %v2243 = vunpack.c.l.b16 %v2133
    %v2244 = vunpack.c.h.b16 %v2133
    %v2245 = vunpack.c.l.b16 %v2134
    %v2246 = vunpack.c.h.b16 %v2134
    %v2247 = vunpack.c.l.b16 %v2135
    %v2248 = vunpack.c.h.b16 %v2135
    %v2249 = vunpack.c.l.b16 %v2136
    %v2250 = vunpack.c.h.b16 %v2136
    %v2251 = vunpack.c.l.b16 %v2137
    %v2252 = vunpack.c.h.b16 %v2137
    %v2253 = vunpack.c.l.b16 %v2138
    %v2254 = vunpack.c.h.b16 %v2138
    %v2255 = vunpack.c.l.b16 %v2139
    %v2256 = vunpack.c.h.b16 %v2139
    %v2257 = vunpack.c.l.b16 %v2140
    %v2258 = vunpack.c.h.b16 %v2140
    %v2259 = vunpack.c.l.b16 %v2141
    %v2260 = vunpack.c.h.b16 %v2141
    %v2261 = vpack.c.b16 %v2201, %v2197
    %v2262 = vpack.c.b16 %v2202, %v2198
    %v2263 = vpack.c.b16 %v2203, %v2199
    %v2264 = vpack.c.b16 %v2204, %v2200
    %v2265 = vpack.c.b16 %v2209, %v2205
    %v2266 = vpack.c.b16 %v2210, %v2206
    %v2267 = vpack.c.b16 %v2211, %v2207
    %v2268 = vpack.c.b16 %v2212, %v2208
    %v2269 = vpack.c.b16 %v2217, %v2213
    %v2270 = vpack.c.b16 %v2218, %v2214
    %v2271 = vpack.c.b16 %v2219, %v2215
    %v2272 = vpack.c.b16 %v2220, %v2216
    %v2273 = vpack.c.b16 %v2225, %v2221
    %v2274 = vpack.c.b16 %v2226, %v2222
    %v2275 = vpack.c.b16 %v2227, %v2223
    %v2276 = vpack.c.b16 %v2228, %v2224
    %v2277 = vpack.c.b16 %v2233, %v2229
    %v2278 = vpack.c.b16 %v2234, %v2230
    %v2279 = vpack.c.b16 %v2235, %v2231
    %v2280 = vpack.c.b16 %v2236, %v2232
    %v2281 = vpack.c.b16 %v2241, %v2237
    %v2282 = vpack.c.b16 %v2242, %v2238
    %v2283 = vpack.c.b16 %v2243, %v2239
    %v2284 = vpack.c.b16 %v2244, %v2240
    %v2285 = vpack.c.b16 %v2249, %v2245
    %v2286 = vpack.c.b16 %v2250, %v2246
    %v2287 = vpack.c.b16 %v2251, %v2247
    %v2288 = vpack.c.b16 %v2252, %v2248
    %v2289 = vpack.c.b16 %v2257, %v2253
    %v2290 = vpack.c.b16 %v2258, %v2254
    %v2291 = vpack.c.b16 %v2259, %v2255
    %v2292 = vpack.c.b16 %v2260, %v2256
    %2325 = vmatprep.subr.bf16.mxu0 %v2262
    %2326 = vmatpush1.bf16.msra.mxu0 %v2261
    %2327 = vmatprep.subr.bf16.mxu0 %v2266
    %2328 = vmatpush1.bf16.msra.mxu0 %v2265
    %2329 = vmatprep.subr.bf16.mxu0 %v2270
    %2330 = vmatpush1.bf16.msra.mxu0 %v2269
    %2331 = vmatprep.subr.bf16.mxu0 %v2274
    %2332 = vmatpush1.bf16.msra.mxu0 %v2273
    %2333 = vmatprep.subr.bf16.mxu0 %v2278
    %2334 = vmatpush1.bf16.msra.mxu0 %v2277
    %2335 = vmatprep.subr.bf16.mxu0 %v2282
    %2336 = vmatpush1.bf16.msra.mxu0 %v2281
    %2337 = vmatprep.subr.bf16.mxu0 %v2286
    %2338 = vmatpush1.bf16.msra.mxu0 %v2285
    %2339 = vmatprep.subr.bf16.mxu0 %v2290
    %2340 = vmatpush1.bf16.msra.mxu0 %v2289
    %2341 = vmatprep.subr.bf16.mxu0 0
    %2342 = vmatpush1.bf16.msra.mxu0 0
    %2343 = vmatprep.subr.bf16.mxu0 0
    %2344 = vmatpush1.bf16.msra.mxu0 0
    %2345 = vmatprep.subr.bf16.mxu0 0
    %2346 = vmatpush1.bf16.msra.mxu0 0
    %2347 = vmatprep.subr.bf16.mxu0 0
    %2348 = vmatpush1.bf16.msra.mxu0 0
    %2349 = vmatprep.subr.bf16.mxu0 0
    %2350 = vmatpush1.bf16.msra.mxu0 0
    %2351 = vmatprep.subr.bf16.mxu0 0
    %2352 = vmatpush1.bf16.msra.mxu0 0
    %2353 = vmatprep.subr.bf16.mxu0 0
    %2354 = vmatpush1.bf16.msra.mxu0 0
    %2355 = vmatprep.subr.bf16.mxu0 0
    %2356 = vmatpush1.bf16.msra.mxu0 0
    %2357 = vmatprep.mubr.bf16.mxu0 0
    %2358 = vmatmul.mubr.bf16.gmra.mrb[0].mxu0 %v2108
    %v2359 = vpop.f32.mrb[0].mxu0
    %v2360 = vadd.f32 %v2148, %v2359
    %v2361 = vpop.f32.mrb[0].mxu0
    %v2362 = vadd.f32 %v2152, %v2361
    %v2363 = vpop.f32.mrb[0].mxu0
    %v2364 = vadd.f32 %v2148, %v2363
    %v2365 = vpop.f32.mrb[0].mxu0
    %v2366 = vadd.f32 %v2152, %v2365
    %2367 = vdwg.mxu0
    %2368 = vmatprep.subr.bf16.mxu0 %v2264
    %2369 = vmatpush1.bf16.msra.mxu0 %v2263
    %2370 = vmatprep.subr.bf16.mxu0 %v2268
    %2371 = vmatpush1.bf16.msra.mxu0 %v2267
    %2372 = vmatprep.subr.bf16.mxu0 %v2272
    %2373 = vmatpush1.bf16.msra.mxu0 %v2271
    %2374 = vmatprep.subr.bf16.mxu0 %v2276
    %2375 = vmatpush1.bf16.msra.mxu0 %v2275
    %2376 = vmatprep.subr.bf16.mxu0 %v2280
    %2377 = vmatpush1.bf16.msra.mxu0 %v2279
    %2378 = vmatprep.subr.bf16.mxu0 %v2284
    %2379 = vmatpush1.bf16.msra.mxu0 %v2283
    %2380 = vmatprep.subr.bf16.mxu0 %v2288
    %2381 = vmatpush1.bf16.msra.mxu0 %v2287
    %2382 = vmatprep.subr.bf16.mxu0 %v2292
    %2383 = vmatpush1.bf16.msra.mxu0 %v2291
    %2384 = vmatprep.subr.bf16.mxu0 0
    %2385 = vmatpush1.bf16.msra.mxu0 0
    %2386 = vmatprep.subr.bf16.mxu0 0
    %2387 = vmatpush1.bf16.msra.mxu0 0
    %2388 = vmatprep.subr.bf16.mxu0 0
    %2389 = vmatpush1.bf16.msra.mxu0 0
    %2390 = vmatprep.subr.bf16.mxu0 0
    %2391 = vmatpush1.bf16.msra.mxu0 0
    %2392 = vmatprep.subr.bf16.mxu0 0
    %2393 = vmatpush1.bf16.msra.mxu0 0
    %2394 = vmatprep.subr.bf16.mxu0 0
    %2395 = vmatpush1.bf16.msra.mxu0 0
    %2396 = vmatprep.subr.bf16.mxu0 0
    %2397 = vmatpush1.bf16.msra.mxu0 0
    %2398 = vmatprep.subr.bf16.mxu0 0
    %2399 = vmatpush1.bf16.msra.mxu0 0
    %2400 = vmatprep.mubr.bf16.mxu0 0
    %2401 = vmatmul.mubr.bf16.gmra.mrb[0].mxu0 %v2108
    %v2402 = vpop.f32.mrb[0].mxu0
    %v2403 = vadd.f32 %v2156, %v2402
    %v2404 = vpop.f32.mrb[0].mxu0
    %v2405 = vadd.f32 %v2160, %v2404
    %v2406 = vpop.f32.mrb[0].mxu0
    %v2407 = vadd.f32 %v2156, %v2406
    %v2408 = vpop.f32.mrb[0].mxu0
    %v2409 = vadd.f32 %v2160, %v2408
    %2410 = vdwg.mxu0
    %v2411 = vmax.f32 %v2360, 0.0
    %v2412 = vmax.f32 %v2362, 0.0
    %v2413 = vmax.f32 %v2403, 0.0
    %v2414 = vmax.f32 %v2405, 0.0
    %v2415 = vmax.f32 %v2364, 0.0
    %v2416 = vmax.f32 %v2366, 0.0
    %v2417 = vmax.f32 %v2407, 0.0
    %v2418 = vmax.f32 %v2409, 0.0
    %v2419 = vpack.c.bf16 %v2415, %v2411
    %v2420 = vpack.c.bf16 %v2416, %v2412
    %v2421 = vpack.c.bf16 %v2417, %v2413
    %v2422 = vpack.c.bf16 %v2418, %v2414
    %s2423 = scalar_lea.vmem [#allocation10], 256
    %v2424 = vld [vmem:[%s2423] sm:$0xf]
    %v2425 = vld [vmem:[%s2423 + $0x4] sm:$0xf]
    %v2426 = vld [vmem:[%s2423 + $0x8] sm:$0xf]
    %v2427 = vld [vmem:[%s2423 + $0xc] sm:$0xf]
    %v2428 = vld [vmem:[%s2423 + $0x10] sm:$0xf]
    %v2429 = vld [vmem:[%s2423 + $0x14] sm:$0xf]
    %v2430 = vld [vmem:[%s2423 + $0x18] sm:$0xf]
    %v2431 = vld [vmem:[%s2423 + $0x1c] sm:$0xf]
    %v2432 = vld [vmem:[%s2423 + $0x20] sm:$0xf]
    %v2433 = vld [vmem:[%s2423 + $0x24] sm:$0xf]
    %v2434 = vld [vmem:[%s2423 + $0x28] sm:$0xf]
    %v2435 = vld [vmem:[%s2423 + $0x2c] sm:$0xf]
    %v2436 = vld [vmem:[%s2423 + $0x30] sm:$0xf]
    %v2437 = vld [vmem:[%s2423 + $0x34] sm:$0xf]
    %v2438 = vld [vmem:[%s2423 + $0x38] sm:$0xf]
    %v2439 = vld [vmem:[%s2423 + $0x3c] sm:$0xf]
    %v2440 = vld [vmem:[%s2423 + $0x40] sm:$0xf]
    %v2441 = vld [vmem:[%s2423 + $0x44] sm:$0xf]
    %v2442 = vld [vmem:[%s2423 + $0x48] sm:$0xf]
    %v2443 = vld [vmem:[%s2423 + $0x4c] sm:$0xf]
    %v2444 = vld [vmem:[%s2423 + $0x50] sm:$0xf]
    %v2445 = vld [vmem:[%s2423 + $0x54] sm:$0xf]
    %v2446 = vld [vmem:[%s2423 + $0x58] sm:$0xf]
    %v2447 = vld [vmem:[%s2423 + $0x5c] sm:$0xf]
    %v2448 = vld [vmem:[%s2423 + $0x60] sm:$0xf]
    %v2449 = vld [vmem:[%s2423 + $0x64] sm:$0xf]
    %v2450 = vld [vmem:[%s2423 + $0x68] sm:$0xf]
    %v2451 = vld [vmem:[%s2423 + $0x6c] sm:$0xf]
    %v2452 = vld [vmem:[%s2423 + $0x70] sm:$0xf]
    %v2453 = vld [vmem:[%s2423 + $0x74] sm:$0xf]
    %v2454 = vld [vmem:[%s2423 + $0x78] sm:$0xf]
    %v2455 = vld [vmem:[%s2423 + $0x7c] sm:$0xf]
    %v2456 = vld [vmem:[%s2423 + $0x80] sm:$0xf]
    %v2457 = vld [vmem:[%s2423 + $0x84] sm:$0xf]
    %v2458 = vld [vmem:[%s2423 + $0x88] sm:$0xf]
    %v2459 = vld [vmem:[%s2423 + $0x8c] sm:$0xf]
    %v2460 = vld [vmem:[%s2423 + $0x90] sm:$0xf]
    %v2461 = vld [vmem:[%s2423 + $0x94] sm:$0xf]
    %v2462 = vld [vmem:[%s2423 + $0x98] sm:$0xf]
    %v2463 = vld [vmem:[%s2423 + $0x9c] sm:$0xf]
    %v2464 = vld [vmem:[%s2423 + $0xa0] sm:$0xf]
    %v2465 = vld [vmem:[%s2423 + $0xa4] sm:$0xf]
    %v2466 = vld [vmem:[%s2423 + $0xa8] sm:$0xf]
    %v2467 = vld [vmem:[%s2423 + $0xac] sm:$0xf]
    %v2468 = vld [vmem:[%s2423 + $0xb0] sm:$0xf]
    %v2469 = vld [vmem:[%s2423 + $0xb4] sm:$0xf]
    %v2470 = vld [vmem:[%s2423 + $0xb8] sm:$0xf]
    %v2471 = vld [vmem:[%s2423 + $0xbc] sm:$0xf]
    %v2472 = vld [vmem:[%s2423 + $0xc0] sm:$0xf]
    %v2473 = vld [vmem:[%s2423 + $0xc4] sm:$0xf]
    %v2474 = vld [vmem:[%s2423 + $0xc8] sm:$0xf]
    %v2475 = vld [vmem:[%s2423 + $0xcc] sm:$0xf]
    %v2476 = vld [vmem:[%s2423 + $0xd0] sm:$0xf]
    %v2477 = vld [vmem:[%s2423 + $0xd4] sm:$0xf]
    %v2478 = vld [vmem:[%s2423 + $0xd8] sm:$0xf]
    %v2479 = vld [vmem:[%s2423 + $0xdc] sm:$0xf]
    %v2480 = vld [vmem:[%s2423 + $0xe0] sm:$0xf]
    %v2481 = vld [vmem:[%s2423 + $0xe4] sm:$0xf]
    %v2482 = vld [vmem:[%s2423 + $0xe8] sm:$0xf]
    %v2483 = vld [vmem:[%s2423 + $0xec] sm:$0xf]
    %v2484 = vld [vmem:[%s2423 + $0xf0] sm:$0xf]
    %v2485 = vld [vmem:[%s2423 + $0xf4] sm:$0xf]
    %v2486 = vld [vmem:[%s2423 + $0xf8] sm:$0xf]
    %v2487 = vld [vmem:[%s2423 + $0xfc] sm:$0xf]
    %v2488 = vld [vmem:[#allocation2 + $0xc] sm:$0x1]
    %v2489 = vlaneseq
    %v2490 = vshrl.u32 %v2489, 7
    %v2491 = vsub.s32 0, %v2490
    %v2492 = vrot.slane %v2488, %v2491
    %v2557 = vunpack.c.l.b16 %v2424
    %v2558 = vunpack.c.l.b16 %v2425
    %v2559 = vunpack.c.l.b16 %v2426
    %v2560 = vunpack.c.l.b16 %v2427
    %v2561 = vunpack.c.l.b16 %v2428
    %v2562 = vunpack.c.l.b16 %v2429
    %v2563 = vunpack.c.l.b16 %v2430
    %v2564 = vunpack.c.l.b16 %v2431
    %v2565 = vunpack.c.l.b16 %v2432
    %v2566 = vunpack.c.l.b16 %v2433
    %v2567 = vunpack.c.l.b16 %v2434
    %v2568 = vunpack.c.l.b16 %v2435
    %v2569 = vunpack.c.l.b16 %v2436
    %v2570 = vunpack.c.l.b16 %v2437
    %v2571 = vunpack.c.l.b16 %v2438
    %v2572 = vunpack.c.l.b16 %v2439
    %v2573 = vunpack.c.l.b16 %v2440
    %v2574 = vunpack.c.l.b16 %v2441
    %v2575 = vunpack.c.l.b16 %v2442
    %v2576 = vunpack.c.l.b16 %v2443
    %v2577 = vunpack.c.l.b16 %v2444
    %v2578 = vunpack.c.l.b16 %v2445
    %v2579 = vunpack.c.l.b16 %v2446
    %v2580 = vunpack.c.l.b16 %v2447
    %v2581 = vunpack.c.l.b16 %v2448
    %v2582 = vunpack.c.l.b16 %v2449
    %v2583 = vunpack.c.l.b16 %v2450
    %v2584 = vunpack.c.l.b16 %v2451
    %v2585 = vunpack.c.l.b16 %v2452
    %v2586 = vunpack.c.l.b16 %v2453
    %v2587 = vunpack.c.l.b16 %v2454
    %v2588 = vunpack.c.l.b16 %v2455
    %v2589 = vunpack.c.l.b16 %v2456
    %v2590 = vunpack.c.l.b16 %v2457
    %v2591 = vunpack.c.l.b16 %v2458
    %v2592 = vunpack.c.l.b16 %v2459
    %v2593 = vunpack.c.l.b16 %v2460
    %v2594 = vunpack.c.l.b16 %v2461
    %v2595 = vunpack.c.l.b16 %v2462
    %v2596 = vunpack.c.l.b16 %v2463
    %v2597 = vunpack.c.l.b16 %v2464
    %v2598 = vunpack.c.l.b16 %v2465
    %v2599 = vunpack.c.l.b16 %v2466
    %v2600 = vunpack.c.l.b16 %v2467
    %v2601 = vunpack.c.l.b16 %v2468
    %v2602 = vunpack.c.l.b16 %v2469
    %v2603 = vunpack.c.l.b16 %v2470
    %v2604 = vunpack.c.l.b16 %v2471
    %v2605 = vunpack.c.l.b16 %v2472
    %v2606 = vunpack.c.l.b16 %v2473
    %v2607 = vunpack.c.l.b16 %v2474
    %v2608 = vunpack.c.l.b16 %v2475
    %v2609 = vunpack.c.l.b16 %v2476
    %v2610 = vunpack.c.l.b16 %v2477
    %v2611 = vunpack.c.l.b16 %v2478
    %v2612 = vunpack.c.l.b16 %v2479
    %v2613 = vunpack.c.l.b16 %v2480
    %v2614 = vunpack.c.l.b16 %v2481
    %v2615 = vunpack.c.l.b16 %v2482
    %v2616 = vunpack.c.l.b16 %v2483
    %v2617 = vunpack.c.l.b16 %v2484
    %v2618 = vunpack.c.l.b16 %v2485
    %v2619 = vunpack.c.l.b16 %v2486
    %v2620 = vunpack.c.l.b16 %v2487
    %v2621 = vpack.c.b16 %v2558, %v2557
    %v2622 = vpack.c.b16 %v2560, %v2559
    %v2623 = vpack.c.b16 %v2562, %v2561
    %v2624 = vpack.c.b16 %v2564, %v2563
    %v2625 = vpack.c.b16 %v2566, %v2565
    %v2626 = vpack.c.b16 %v2568, %v2567
    %v2627 = vpack.c.b16 %v2570, %v2569
    %v2628 = vpack.c.b16 %v2572, %v2571
    %v2629 = vpack.c.b16 %v2574, %v2573
    %v2630 = vpack.c.b16 %v2576, %v2575
    %v2631 = vpack.c.b16 %v2578, %v2577
    %v2632 = vpack.c.b16 %v2580, %v2579
    %v2633 = vpack.c.b16 %v2582, %v2581
    %v2634 = vpack.c.b16 %v2584, %v2583
    %v2635 = vpack.c.b16 %v2586, %v2585
    %v2636 = vpack.c.b16 %v2588, %v2587
    %v2637 = vpack.c.b16 %v2590, %v2589
    %v2638 = vpack.c.b16 %v2592, %v2591
    %v2639 = vpack.c.b16 %v2594, %v2593
    %v2640 = vpack.c.b16 %v2596, %v2595
    %v2641 = vpack.c.b16 %v2598, %v2597
    %v2642 = vpack.c.b16 %v2600, %v2599
    %v2643 = vpack.c.b16 %v2602, %v2601
    %v2644 = vpack.c.b16 %v2604, %v2603
    %v2645 = vpack.c.b16 %v2606, %v2605
    %v2646 = vpack.c.b16 %v2608, %v2607
    %v2647 = vpack.c.b16 %v2610, %v2609
    %v2648 = vpack.c.b16 %v2612, %v2611
    %v2649 = vpack.c.b16 %v2614, %v2613
    %v2650 = vpack.c.b16 %v2616, %v2615
    %v2651 = vpack.c.b16 %v2618, %v2617
    %v2652 = vpack.c.b16 %v2620, %v2619
    %2685 = vmatprep.subr.bf16.mxu0 0
    %2686 = vmatpush1.bf16.msra.mxu0 %v2621
    %2687 = vmatprep.subr.bf16.mxu0 0
    %2688 = vmatpush1.bf16.msra.mxu0 %v2622
    %2689 = vmatprep.subr.bf16.mxu0 0
    %2690 = vmatpush1.bf16.msra.mxu0 %v2623
    %2691 = vmatprep.subr.bf16.mxu0 0
    %2692 = vmatpush1.bf16.msra.mxu0 %v2624
    %2693 = vmatprep.subr.bf16.mxu0 0
    %2694 = vmatpush1.bf16.msra.mxu0 %v2625
    %2695 = vmatprep.subr.bf16.mxu0 0
    %2696 = vmatpush1.bf16.msra.mxu0 %v2626
    %2697 = vmatprep.subr.bf16.mxu0 0
    %2698 = vmatpush1.bf16.msra.mxu0 %v2627
    %2699 = vmatprep.subr.bf16.mxu0 0
    %2700 = vmatpush1.bf16.msra.mxu0 %v2628
    %2701 = vmatprep.subr.bf16.mxu0 0
    %2702 = vmatpush1.bf16.msra.mxu0 %v2629
    %2703 = vmatprep.subr.bf16.mxu0 0
    %2704 = vmatpush1.bf16.msra.mxu0 %v2630
    %2705 = vmatprep.subr.bf16.mxu0 0
    %2706 = vmatpush1.bf16.msra.mxu0 %v2631
    %2707 = vmatprep.subr.bf16.mxu0 0
    %2708 = vmatpush1.bf16.msra.mxu0 %v2632
    %2709 = vmatprep.subr.bf16.mxu0 0
    %2710 = vmatpush1.bf16.msra.mxu0 %v2633
    %2711 = vmatprep.subr.bf16.mxu0 0
    %2712 = vmatpush1.bf16.msra.mxu0 %v2634
    %2713 = vmatprep.subr.bf16.mxu0 0
    %2714 = vmatpush1.bf16.msra.mxu0 %v2635
    %2715 = vmatprep.subr.bf16.mxu0 0
    %2716 = vmatpush1.bf16.msra.mxu0 %v2636
    %2717 = vmatprep.mubr.bf16.mxu0 %v2420
    %2718 = vmatmul.mubr.bf16.gmra.mrb[0].mxu0 %v2419
    %v2719 = vpop.f32.mrb[0].mxu0
    %v2720 = vadd.f32 %v2492, %v2719
    %v2721 = vpop.f32.mrb[0].mxu0
    %v2722 = vpop.f32.mrb[0].mxu0
    %v2723 = vadd.f32 %v2492, %v2722
    %v2724 = vpop.f32.mrb[0].mxu0
    %2725 = vdwg.mxu0
    %2726 = vmatprep.subr.bf16.mxu0 0
    %2727 = vmatpush1.bf16.msra.mxu0 %v2637
    %2728 = vmatprep.subr.bf16.mxu0 0
    %2729 = vmatpush1.bf16.msra.mxu0 %v2638
    %2730 = vmatprep.subr.bf16.mxu0 0
    %2731 = vmatpush1.bf16.msra.mxu0 %v2639
    %2732 = vmatprep.subr.bf16.mxu0 0
    %2733 = vmatpush1.bf16.msra.mxu0 %v2640
    %2734 = vmatprep.subr.bf16.mxu0 0
    %2735 = vmatpush1.bf16.msra.mxu0 %v2641
    %2736 = vmatprep.subr.bf16.mxu0 0
    %2737 = vmatpush1.bf16.msra.mxu0 %v2642
    %2738 = vmatprep.subr.bf16.mxu0 0
    %2739 = vmatpush1.bf16.msra.mxu0 %v2643
    %2740 = vmatprep.subr.bf16.mxu0 0
    %2741 = vmatpush1.bf16.msra.mxu0 %v2644
    %2742 = vmatprep.subr.bf16.mxu0 0
    %2743 = vmatpush1.bf16.msra.mxu0 %v2645
    %2744 = vmatprep.subr.bf16.mxu0 0
    %2745 = vmatpush1.bf16.msra.mxu0 %v2646
    %2746 = vmatprep.subr.bf16.mxu0 0
    %2747 = vmatpush1.bf16.msra.mxu0 %v2647
    %2748 = vmatprep.subr.bf16.mxu0 0
    %2749 = vmatpush1.bf16.msra.mxu0 %v2648
    %2750 = vmatprep.subr.bf16.mxu0 0
    %2751 = vmatpush1.bf16.msra.mxu0 %v2649
    %2752 = vmatprep.subr.bf16.mxu0 0
    %2753 = vmatpush1.bf16.msra.mxu0 %v2650
    %2754 = vmatprep.subr.bf16.mxu0 0
    %2755 = vmatpush1.bf16.msra.mxu0 %v2651
    %2756 = vmatprep.subr.bf16.mxu0 0
    %2757 = vmatpush1.bf16.msra.mxu0 %v2652
    %2758 = vmatprep.mubr.bf16.mxu0 %v2422
    %2759 = vmatmul.mubr.bf16.gmra.mrb[0].mxu0 %v2421
    %v2760 = vpop.f32.mrb[0].mxu0
    %v2761 = vadd.f32 %v2720, %v2760
    %v2762 = vpop.f32.mrb[0].mxu0
    %v2763 = vpop.f32.mrb[0].mxu0
    %v2764 = vadd.f32 %v2723, %v2763
    %v2765 = vpop.f32.mrb[0].mxu0
    %2766 = vdwg.mxu0
    %v2767 = vadd.f32 %v2106, %v2761
    %v2768 = vadd.f32 %v2107, %v2764
    %v2769 = vld [vmem:[#allocation2 + $0xa] sm:$0x1]
    %v2770 = vld [vmem:[#allocation2 + $0xb] sm:$0x1]
    %v2771 = vrot.slane %v2767, 4
    %v2772 = vadd.f32 %v2767, %v2771
    %v2773 = vrot.slane %v2772, 2
    %v2774 = vadd.f32 %v2772, %v2773
    %v2775 = vrot.slane %v2774, 1
    %v2776 = vadd.f32 %v2774, %v2775
    %v2777 = vrot.slane %v2768, 4
    %v2778 = vadd.f32 %v2768, %v2777
    %v2779 = vrot.slane %v2778, 2
    %v2780 = vadd.f32 %v2778, %v2779
    %v2781 = vrot.slane %v2780, 1
    %v2782 = vadd.f32 %v2780, %v2781
    %v2783 = vmul.f32 %v2776, %v750
    %v2784 = vmul.f32 %v2782, %v750
    %v2785 = vsub.f32 %v2767, %v2783
    %v2786 = vsub.f32 %v2768, %v2784
    %v2787 = vmul.f32 %v2785, %v2785
    %v2788 = vmul.f32 %v2786, %v2786
    %v2789 = vrot.slane %v2787, 4
    %v2790 = vadd.f32 %v2787, %v2789
    %v2791 = vrot.slane %v2790, 2
    %v2792 = vadd.f32 %v2790, %v2791
    %v2793 = vrot.slane %v2792, 1
    %v2794 = vadd.f32 %v2792, %v2793
    %v2795 = vrot.slane %v2788, 4
    %v2796 = vadd.f32 %v2788, %v2795
    %v2797 = vrot.slane %v2796, 2
    %v2798 = vadd.f32 %v2796, %v2797
    %v2799 = vrot.slane %v2798, 1
    %v2800 = vadd.f32 %v2798, %v2799
    %v2801 = vmul.f32 %v2794, %v750
    %v2802 = vmul.f32 %v2800, %v750
    %v2803 = vadd.f32 %v2801, 1e-05
    %v2804 = vadd.f32 %v2802, 1e-05
    %v2805 = vrsqrt.pop %v2803
    %v2806 = vrsqrt.pop %v2804
    %v2807 = vmul.f32 %v2785, %v2805
    %v2808 = vmul.f32 %v2786, %v2806
    %v2809 = vlaneseq
    %v2810 = vshrl.u32 %v2809, 7
    %v2811 = vsub.s32 0, %v2810
    %v2812 = vrot.slane %v2769, %v2811
    %v2813 = vmul.f32 %v2807, %v2812
    %v2814 = vmul.f32 %v2808, %v2812
    %v2815 = vlaneseq
    %v2816 = vshrl.u32 %v2815, 7
    %v2817 = vsub.s32 0, %v2816
    %v2818 = vrot.slane %v2770, %v2817
    %v2819 = vadd.f32 %v2813, %v2818
    %v2820 = vadd.f32 %v2814, %v2818
    %v2821 = vrot.slane %v2819, 4
    %v2822 = vadd.f32 %v2819, %v2821
    %v2823 = vrot.slane %v2822, 2
    %v2824 = vadd.f32 %v2822, %v2823
    %v2825 = vrot.slane %v2824, 1
    %v2826 = vadd.f32 %v2824, %v2825
    %v2827 = vrot.slane %v2820, 4
    %v2828 = vadd.f32 %v2820, %v2827
    %v2829 = vrot.slane %v2828, 2
    %v2830 = vadd.f32 %v2828, %v2829
    %v2831 = vrot.slane %v2830, 1
    %v2832 = vadd.f32 %v2830, %v2831
    %v2833 = vmul.f32 %v2826, %v750
    %v2834 = vmul.f32 %v2832, %v750
    %v2835 = vpack.c.bf16 %v2833, %v2833
    %v2836 = vpack.c.bf16 %v2834, %v2834
    %v2837 = vld [vmem:[#allocation11] sm:$0xf]
    %v2838 = vld [vmem:[#allocation11 + $0x4] sm:$0xf]
    %v2839 = vld [vmem:[#allocation11 + $0x8] sm:$0xf]
    %v2840 = vld [vmem:[#allocation11 + $0xc] sm:$0xf]
    %v2841 = vld [vmem:[#allocation11 + $0x10] sm:$0xf]
    %v2842 = vld [vmem:[#allocation11 + $0x14] sm:$0xf]
    %v2843 = vld [vmem:[#allocation11 + $0x18] sm:$0xf]
    %v2844 = vld [vmem:[#allocation11 + $0x1c] sm:$0xf]
    %v2845 = vld [vmem:[#allocation11 + $0x20] sm:$0xf]
    %v2846 = vld [vmem:[#allocation11 + $0x24] sm:$0xf]
    %v2847 = vld [vmem:[#allocation11 + $0x28] sm:$0xf]
    %v2848 = vld [vmem:[#allocation11 + $0x2c] sm:$0xf]
    %v2849 = vld [vmem:[#allocation11 + $0x30] sm:$0xf]
    %v2850 = vld [vmem:[#allocation11 + $0x34] sm:$0xf]
    %v2851 = vld [vmem:[#allocation11 + $0x38] sm:$0xf]
    %v2852 = vld [vmem:[#allocation11 + $0x3c] sm:$0xf]
    %v2855 = vunpack.c.l.b16 %v2835
    %v2856 = vunpack.c.l.b16 %v2836
    %vm2857 = vcmask 1041409
    %v2858 = vsel %vm2857, %v2856, %v2855
    %v2859 = vpack.c.b16 %v2858, %v2858
    %v2877 = vunpack.c.l.b16 %v2837
    %v2878 = vunpack.c.l.b16 %v2838
    %v2879 = vunpack.c.l.b16 %v2839
    %v2880 = vunpack.c.l.b16 %v2840
    %v2881 = vunpack.c.l.b16 %v2841
    %v2882 = vunpack.c.l.b16 %v2842
    %v2883 = vunpack.c.l.b16 %v2843
    %v2884 = vunpack.c.l.b16 %v2844
    %v2885 = vunpack.c.l.b16 %v2845
    %v2886 = vunpack.c.l.b16 %v2846
    %v2887 = vunpack.c.l.b16 %v2847
    %v2888 = vunpack.c.l.b16 %v2848
    %v2889 = vunpack.c.l.b16 %v2849
    %v2890 = vunpack.c.l.b16 %v2850
    %v2891 = vunpack.c.l.b16 %v2851
    %v2892 = vunpack.c.l.b16 %v2852
    %v2893 = vpack.c.b16 %v2878, %v2877
    %v2894 = vpack.c.b16 %v2880, %v2879
    %v2895 = vpack.c.b16 %v2882, %v2881
    %v2896 = vpack.c.b16 %v2884, %v2883
    %v2897 = vpack.c.b16 %v2886, %v2885
    %v2898 = vpack.c.b16 %v2888, %v2887
    %v2899 = vpack.c.b16 %v2890, %v2889
    %v2900 = vpack.c.b16 %v2892, %v2891
    %2909 = vmatprep.subr.bf16.mxu0 0
    %2910 = vmatpush1.bf16.msra.mxu0 %v2893
    %2911 = vmatprep.subr.bf16.mxu0 0
    %2912 = vmatpush1.bf16.msra.mxu0 %v2894
    %2913 = vmatprep.subr.bf16.mxu0 0
    %2914 = vmatpush1.bf16.msra.mxu0 %v2895
    %2915 = vmatprep.subr.bf16.mxu0 0
    %2916 = vmatpush1.bf16.msra.mxu0 %v2896
    %2917 = vmatprep.subr.bf16.mxu0 0
    %2918 = vmatpush1.bf16.msra.mxu0 %v2897
    %2919 = vmatprep.subr.bf16.mxu0 0
    %2920 = vmatpush1.bf16.msra.mxu0 %v2898
    %2921 = vmatprep.subr.bf16.mxu0 0
    %2922 = vmatpush1.bf16.msra.mxu0 %v2899
    %2923 = vmatprep.subr.bf16.mxu0 0
    %2924 = vmatpush1.bf16.msra.mxu0 %v2900
    %2925 = vmatprep.subr.bf16.mxu0 0
    %2926 = vmatpush1.bf16.msra.mxu0 0
    %2927 = vmatprep.subr.bf16.mxu0 0
    %2928 = vmatpush1.bf16.msra.mxu0 0
    %2929 = vmatprep.subr.bf16.mxu0 0
    %2930 = vmatpush1.bf16.msra.mxu0 0
    %2931 = vmatprep.subr.bf16.mxu0 0
    %2932 = vmatpush1.bf16.msra.mxu0 0
    %2933 = vmatprep.subr.bf16.mxu0 0
    %2934 = vmatpush1.bf16.msra.mxu0 0
    %2935 = vmatprep.subr.bf16.mxu0 0
    %2936 = vmatpush1.bf16.msra.mxu0 0
    %2937 = vmatprep.subr.bf16.mxu0 0
    %2938 = vmatpush1.bf16.msra.mxu0 0
    %2939 = vmatprep.subr.bf16.mxu0 0
    %2940 = vmatpush1.bf16.msra.mxu0 0
    %2941 = vmatprep.mubr.bf16.mxu0 0
    %2942 = vmatmul.mubr.bf16.gmra.mrb[0].mxu0 %v2859
    %v2943 = vpop.f32.mrb[0].mxu0
    %v2944 = vadd.f32 0.0, %v2943
    %v2945 = vpop.f32.mrb[0].mxu0
    %v2946 = vpop.f32.mrb[0].mxu0
    %v2947 = vpop.f32.mrb[0].mxu0
    %2948 = vdwg.mxu0
    %v2949 = vpack.c.bf16 %v2944, %v2944
    %v2950 = vld [vmem:[#allocation13] sm:$0xf]
    %v2951 = vld [vmem:[#allocation13 + $0x4] sm:$0xf]
    %v2952 = vld [vmem:[#allocation13 + $0x8] sm:$0xf]
    %v2953 = vld [vmem:[#allocation13 + $0xc] sm:$0xf]
    %v2954 = vld [vmem:[#allocation13 + $0x10] sm:$0xf]
    %v2955 = vld [vmem:[#allocation13 + $0x14] sm:$0xf]
    %v2956 = vld [vmem:[#allocation13 + $0x18] sm:$0xf]
    %v2957 = vld [vmem:[#allocation13 + $0x1c] sm:$0xf]
    %v2958 = vld [vmem:[#allocation13 + $0x20] sm:$0xf]
    %v2959 = vld [vmem:[#allocation13 + $0x24] sm:$0xf]
    %v2960 = vld [vmem:[#allocation13 + $0x28] sm:$0xf]
    %v2961 = vld [vmem:[#allocation13 + $0x2c] sm:$0xf]
    %v2962 = vld [vmem:[#allocation13 + $0x30] sm:$0xf]
    %v2963 = vld [vmem:[#allocation13 + $0x34] sm:$0xf]
    %v2964 = vld [vmem:[#allocation13 + $0x38] sm:$0xf]
    %v2965 = vld [vmem:[#allocation13 + $0x3c] sm:$0xf]
    %v2966 = vld [vmem:[#allocation2 + $0xd] sm:$0x1]
    %v2967 = vlaneseq
    %v2968 = vshrl.u32 %v2967, 7
    %v2969 = vsub.s32 0, %v2968
    %v2970 = vrot.slane %v2966, %v2969
    %v2987 = vunpack.c.l.b16 %v2950
    %v2988 = vunpack.c.l.b16 %v2951
    %v2989 = vunpack.c.l.b16 %v2952
    %v2990 = vunpack.c.l.b16 %v2953
    %v2991 = vunpack.c.l.b16 %v2954
    %v2992 = vunpack.c.l.b16 %v2955
    %v2993 = vunpack.c.l.b16 %v2956
    %v2994 = vunpack.c.l.b16 %v2957
    %v2995 = vunpack.c.l.b16 %v2958
    %v2996 = vunpack.c.l.b16 %v2959
    %v2997 = vunpack.c.l.b16 %v2960
    %v2998 = vunpack.c.l.b16 %v2961
    %v2999 = vunpack.c.l.b16 %v2962
    %v3000 = vunpack.c.l.b16 %v2963
    %v3001 = vunpack.c.l.b16 %v2964
    %v3002 = vunpack.c.l.b16 %v2965
    %v3003 = vpack.c.b16 %v2988, %v2987
    %v3004 = vpack.c.b16 %v2990, %v2989
    %v3005 = vpack.c.b16 %v2992, %v2991
    %v3006 = vpack.c.b16 %v2994, %v2993
    %v3007 = vpack.c.b16 %v2996, %v2995
    %v3008 = vpack.c.b16 %v2998, %v2997
    %v3009 = vpack.c.b16 %v3000, %v2999
    %v3010 = vpack.c.b16 %v3002, %v3001
    %3019 = vmatprep.subr.bf16.mxu0 0
    %3020 = vmatpush1.bf16.msra.mxu0 %v3003
    %3021 = vmatprep.subr.bf16.mxu0 0
    %3022 = vmatpush1.bf16.msra.mxu0 %v3004
    %3023 = vmatprep.subr.bf16.mxu0 0
    %3024 = vmatpush1.bf16.msra.mxu0 %v3005
    %3025 = vmatprep.subr.bf16.mxu0 0
    %3026 = vmatpush1.bf16.msra.mxu0 %v3006
    %3027 = vmatprep.subr.bf16.mxu0 0
    %3028 = vmatpush1.bf16.msra.mxu0 %v3007
    %3029 = vmatprep.subr.bf16.mxu0 0
    %3030 = vmatpush1.bf16.msra.mxu0 %v3008
    %3031 = vmatprep.subr.bf16.mxu0 0
    %3032 = vmatpush1.bf16.msra.mxu0 %v3009
    %3033 = vmatprep.subr.bf16.mxu0 0
    %3034 = vmatpush1.bf16.msra.mxu0 %v3010
    %3035 = vmatprep.subr.bf16.mxu0 0
    %3036 = vmatpush1.bf16.msra.mxu0 0
    %3037 = vmatprep.subr.bf16.mxu0 0
    %3038 = vmatpush1.bf16.msra.mxu0 0
    %3039 = vmatprep.subr.bf16.mxu0 0
    %3040 = vmatpush1.bf16.msra.mxu0 0
    %3041 = vmatprep.subr.bf16.mxu0 0
    %3042 = vmatpush1.bf16.msra.mxu0 0
    %3043 = vmatprep.subr.bf16.mxu0 0
    %3044 = vmatpush1.bf16.msra.mxu0 0
    %3045 = vmatprep.subr.bf16.mxu0 0
    %3046 = vmatpush1.bf16.msra.mxu0 0
    %3047 = vmatprep.subr.bf16.mxu0 0
    %3048 = vmatpush1.bf16.msra.mxu0 0
    %3049 = vmatprep.subr.bf16.mxu0 0
    %3050 = vmatpush1.bf16.msra.mxu0 0
    %3051 = vmatprep.mubr.bf16.mxu0 0
    %3052 = vmatmul.mubr.bf16.gmra.mrb[0].mxu0 %v2949
    %v3053 = vpop.f32.mrb[0].mxu0
    %v3054 = vadd.f32 %v2970, %v3053
    %v3055 = vpop.f32.mrb[0].mxu0
    %v3056 = vpop.f32.mrb[0].mxu0
    %v3057 = vpop.f32.mrb[0].mxu0
    %3058 = vdwg.mxu0
    %v3059 = vmax.f32 %v3054, 0.0
    %v3060 = vld [vmem:[#allocation2 + $0xe] sm:$0x1]
    %v3061 = vlaneseq
    %v3062 = vshrl.u32 %v3061, 7
    %v3063 = vsub.s32 0, %v3062
    %v3064 = vrot.slane %v3060, %v3063
    %v3065 = vmul.f32 %v3059, %v3064
    %vm3066 = vcmask 1041408
    %v3067 = vsel %vm3066, %v3065, 0.0
    %3068 = vadd.xlane.f32.xlu0 %v3067
    %v3069 = vpop.xlane.xlu0 %3068
    %v3070 = vld [vmem:[#allocation2 + $0xf] sm:$0x1]
    %v3071 = vlaneseq
    %v3072 = vshrl.u32 %v3071, 7
    %v3073 = vsub.s32 0, %v3072
    %v3074 = vrot.slane %v3070, %v3073
    %v3075 = vadd.f32 %v3069, %v3074
    %v3078 = vunpack.c.l.s4 1966171168
    %v3079 = vunpack.c.0.s8 %v3078
    %v3080 = vlaneseq
    %v3081 = vshrl.u32 %v3080, 7
    %v3082 = vsub.s32 %v3079, %v3081
    %v3083 = vrot.slane %v3075, %v3082
    %v3084 = vcombine.high %v3083, %v3083
    %v3086 = vunpack.c.l.s4 1966171168
    %v3087 = vunpack.c.0.s8 %v3086
    %v3088 = vlaneseq
    %v3089 = vshrl.u32 %v3088, 7
    %v3090 = vsub.s32 %v3087, %v3089
    %v3091 = vrot.slane %v3083, %v3090
    %v3093 = vunpack.c.l.s4 1966171168
    %v3094 = vunpack.c.0.s8 %v3093
    %v3095 = vlaneseq
    %v3096 = vshrl.u32 %v3095, 7
    %v3097 = vsub.s32 %v3094, %v3096
    %v3098 = vrot.slane %v3084, %v3097
    %3101 = vst [vmem:[#allocation14] sm:$0x1] %v3091
    %3102 = vst [vmem:[#allocation14 + $0x1] sm:$0x1] %v3098
    // Predicated region
    $region70: #{tpu_custom_call.1} parent=1 // pred_check
      _
    $region71: #{tpu_custom_call.1} parent=1 // pred_check_branch
      %3104 = sbr.rel (0) target = $region73
    $region72: #{tpu_custom_call.1} parent=1 // pred_region
      %s3106 = ssub.s32 32, 32
      %3107 = vsyncadd [#allocation4], %s3106
      %s3108 = sshll.u32 [#allocation14], 4
      %s3109 = int_to_ptr.vmem [resolvable:$true] %s3108
      %3114 = dma.vmem_to_hbm [thread:$0]  %s3109, 32, %s10, [#allocation4], 16, 16, 1
    $region73: #{tpu_custom_call.1} parent=1 // pred_fallthru
      _
    // Predicated region
    $region74: #{tpu_custom_call.1} parent=1 // pred_check
      _
    $region75: #{tpu_custom_call.1} parent=1 // pred_check_branch
      %3116 = sbr.rel (0) target = $region77
    $region76: #{tpu_custom_call.1} parent=1 // pred_region
      %3117 = dma.done [#allocation4], 32
    $region77: #{tpu_custom_call.1} parent=1 // pred_fallthru
      _
    %3118 = vsyncpa [#allocation3], 1
    %3119 = vsyncpa [#allocation6], 1
    %3120 = vsyncpa [#allocation9], 1
    %3121 = vsyncpa [#allocation12], 1
    %3122 = vsyncpa [#allocation4], 1

</llo_original>
